<compile_context>
chip_gen: v5e
topology: v5e:2x2
jax: 0.10.0
libtpu: 0.0.40
codegen_flags: <defaults>
</compile_context>

<pallas_src>
import jax
import jax.numpy as jnp
from jax import lax
from jax.experimental import pallas as pl
from jax.experimental.pallas import tpu as pltpu

# Module hyper-parameters.
NUM_HIDDENS = 128            # in_channels == num_hiddens (residual add requires it)
NUM_RESIDUAL_HIDDENS = 32
NUM_RESIDUAL_LAYERS = 2

B, H, W = 2, 8, 8
C = NUM_HIDDENS
CMID = NUM_RESIDUAL_HIDDENS
L = NUM_RESIDUAL_LAYERS

BH = B * H          # 16
M = B * H * W       # 128 MXU rows


def residual_stack_kernel(x_ref, w1_ref, w2_ref, o_ref, col_ref):
    """Single-program kernel over the whole (flattened) batch.

    x_ref  : (M, C)         f32   input rows ordered (b, y, x)
    w1_ref : (L, 9*C, CMID) bf16  3x3 weights, rows ordered (dy, dx, cin)
    w2_ref : (L, CMID, C)   bf16  1x1 weights
    o_ref  : (M, C)         f32   output
    col_ref: (M, 9*C)       bf16  VMEM im2col slab (fully rewritten per layer)
    """
    cur = x_ref[...]                                          # (M, C) f32 residual path

    # Spatial coordinates per row, computed once and reused by both layers.
    yy = lax.broadcasted_iota(jnp.int32, (BH, W, C), 0) % H   # image row y
    xx = lax.broadcasted_iota(jnp.int32, (BH, W, C), 1)       # image col x
    y_ok = [yy >= 1, None, yy <= H - 2]                       # dy = 0, 1, 2
    x_ok = [xx >= 1, None, xx <= W - 2]                       # dx = 0, 1, 2

    for l in range(L):                                        # static unroll (L = 2)
        h = jnp.maximum(cur, 0.0).reshape(BH, W, C)           # ReLU (free f32 reshape)

        # Three W-shifted copies: sublane rotate on the XLU; wrap is masked later.
        w_shift = [pltpu.roll(h, shift=1, axis=1),            # dx = 0 -> reads x-1
                   h,                                         # dx = 1
                   pltpu.roll(h, shift=W - 1, axis=1)]        # dx = 2 -> reads x+1

        t = 0
        for dy in range(3):
            for dx in range(3):
                sh = w_shift[dx]
                if dy != 1:                                   # H shift: aligned whole-
                    sh = jnp.roll(sh, shift=(1 - dy) % BH, axis=0)   # vreg-tile moves
                mask = None
                if dy != 1:
                    mask = y_ok[dy]
                if dx != 1:
                    mask = x_ok[dx] if mask is None else (mask & x_ok[dx])
                if mask is not None:
                    sh = jnp.where(mask, sh, 0.0)
                col_ref[:, t * C:(t + 1) * C] = (
                    sh.reshape(M, C).astype(jnp.bfloat16))    # lane-aligned store
                t += 1

        # 3x3 conv: single long-K matmul (M, 9C) x (9C, CMID), f32 accumulation.
        mid = jnp.dot(col_ref[...], w1_ref[l],
                      preferred_element_type=jnp.float32)     # (M, CMID)
        mid = jnp.maximum(mid, 0.0).astype(jnp.bfloat16)      # ReLU

        # 1x1 conv + residual add (residual stays f32).
        cur = cur + jnp.dot(mid, w2_ref[l],
                            preferred_element_type=jnp.float32)   # (M, C)

    o_ref[...] = jnp.maximum(cur, 0.0)                        # final ReLU


@jax.jit
def residual_stack(x_nhwc, w1, w2):
    """x_nhwc: (B,H,W,C) f32; w1: (L,3,3,C,CMID) f32; w2: (L,CMID,C) f32."""
    x2 = x_nhwc.reshape(M, C)
    w1b = w1.reshape(L, 9 * C, CMID).astype(jnp.bfloat16)     # rows = (dy, dx, cin)
    w2b = w2.astype(jnp.bfloat16)

    flops = 2 * L * (M * 9 * C * CMID + M * CMID * C)         # ~21 MFLOP
    bytes_accessed = 2 * M * C * 4 + w1b.size * 2 + w2b.size * 2

    out2 = pl.pallas_call(
        residual_stack_kernel,
        out_shape=jax.ShapeDtypeStruct((M, C), x_nhwc.dtype),
        grid_spec=pltpu.PrefetchScalarGridSpec(
            num_scalar_prefetch=0,
            grid=(1,),
            in_specs=[
                pl.BlockSpec((M, C), lambda i: (0, 0)),
                pl.BlockSpec((L, 9 * C, CMID), lambda i: (0, 0, 0)),
                pl.BlockSpec((L, CMID, C), lambda i: (0, 0, 0)),
            ],
            out_specs=pl.BlockSpec((M, C), lambda i: (0, 0)),
            scratch_shapes=[pltpu.VMEM((M, 9 * C), jnp.bfloat16)],
        ),
        compiler_params=pltpu.CompilerParams(
            dimension_semantics=("arbitrary",)),
        cost_estimate=pl.CostEstimate(
            flops=flops, transcendentals=0, bytes_accessed=bytes_accessed),
    )(x2, w1b, w2b)
    # TODO(synk): on v7x (2 TCs) a "parallel" batch grid axis would use both
    # cores; at B=2 we favor the single-TC v5e/v6e layout (M=128 fills the MXU).
    return out2.reshape(B, H, W, C)


def reference_forward(x_nhwc, w1, w2):
    """Pure-JAX f32 reference (mirrors PyTorch ResidualStack in NHWC)."""
    x = x_nhwc
    for l in range(L):
        h = jax.nn.relu(x)
        c1 = lax.conv_general_dilated(
            h, w1[l], window_strides=(1, 1), padding="SAME",
            dimension_numbers=("NHWC", "HWIO", "NHWC"))
        c2 = lax.conv_general_dilated(
            jax.nn.relu(c1), w2[l][None, None], window_strides=(1, 1),
            padding="SAME", dimension_numbers=("NHWC", "HWIO", "NHWC"))
        x = x + c2
    return jax.nn.relu(x)


if __name__ == "__main__":
    key = jax.random.PRNGKey(0)
    kx, kw1, kw2 = jax.random.split(key, 3)

    # Deterministic synthetic parameters (no checkpoint load).
    x = jax.random.normal(kx, (B, H, W, C), dtype=jnp.float32)
    w1 = jax.random.normal(kw1, (L, 3, 3, C, CMID), dtype=jnp.float32) * 0.05
    w2 = jax.random.normal(kw2, (L, CMID, C), dtype=jnp.float32) * 0.05

    out = jax.block_until_ready(residual_stack(x, w1, w2))
    ref = jax.block_until_ready(reference_forward(x, w1, w2))

    assert out.shape == (B, H, W, C)
    # bf16 MXU operands (f32 accumulation) -> loosened tolerance vs f32 reference.
    max_err = float(jnp.max(jnp.abs(out - ref)))
    assert jnp.allclose(out, ref, atol=5e-2, rtol=5e-2), f"mismatch, max_err={max_err}"

    print("KERNEL_OK")
</pallas_src>

<mosaic_0001>
module attributes {stable_mosaic.version = 11 : i64} {
  func.func @residual_stack_kernel(%arg0: i32, %arg1: memref<128x128xf32, #tpu.memory_space<vmem>>, %arg2: memref<2x1152x32xbf16, #tpu.memory_space<vmem>>, %arg3: memref<2x32x128xbf16, #tpu.memory_space<vmem>>, %arg4: memref<128x128xf32, #tpu.memory_space<vmem>>, %arg5: memref<128x1152xbf16, #tpu.memory_space<vmem>>) attributes {dimension_semantics = [#tpu.dimension_semantics<arbitrary>], iteration_bounds = array<i64: 1>, scalar_prefetch = 0 : i64, scratch_operands = 1 : i64, tpu.core_type = #tpu.core_type<tc>, window_params = [{pipeline_mode = #tpu.pipeline_mode<synchronous>, transform_indices = @transform_0, window_bounds = array<i64: 128, 128>}, {pipeline_mode = #tpu.pipeline_mode<synchronous>, transform_indices = @transform_1, window_bounds = array<i64: 2, 1152, 32>}, {pipeline_mode = #tpu.pipeline_mode<synchronous>, transform_indices = @transform_2, window_bounds = array<i64: 2, 32, 128>}, {pipeline_mode = #tpu.pipeline_mode<synchronous>, transform_indices = @transform_3, window_bounds = array<i64: 128, 128>}]} {
    %c0 = arith.constant 0 : index
    %c0_0 = arith.constant 0 : index
    %0 = vector.load %arg1[%c0, %c0_0] : memref<128x128xf32, #tpu.memory_space<vmem>>, vector<128x128xf32>
    %1 = tpu.iota {dimensions = array<i32: 0>} : vector<16x8x128xi32>
    %c8_i32 = arith.constant 8 : i32
    %c0_i32 = arith.constant 0 : i32
    %2 = arith.cmpi eq, %c8_i32, %c0_i32 : i32
    %c1_i32 = arith.constant 1 : i32
    %3 = arith.select %2, %c1_i32, %c8_i32 : i32
    %4 = vector.broadcast %3 : i32 to vector<16x8x128xi32>
    %5 = arith.remsi %1, %4 : vector<16x8x128xi32>
    %c0_i32_1 = arith.constant 0 : i32
    %6 = vector.broadcast %c0_i32_1 : i32 to vector<16x8x128xi32>
    %7 = arith.cmpi ne, %5, %6 : vector<16x8x128xi32>
    %c0_i32_2 = arith.constant 0 : i32
    %8 = vector.broadcast %c0_i32_2 : i32 to vector<16x8x128xi32>
    %9 = arith.cmpi slt, %5, %8 : vector<16x8x128xi32>
    %c0_i32_3 = arith.constant 0 : i32
    %10 = arith.cmpi slt, %3, %c0_i32_3 : i32
    %11 = vector.broadcast %10 : i1 to vector<16x8x128xi1>
    %12 = vector.broadcast %11 : vector<16x8x128xi1> to vector<16x8x128xi1>
    %13 = arith.xori %9, %12 : vector<16x8x128xi1>
    %14 = arith.andi %13, %7 : vector<16x8x128xi1>
    %15 = vector.broadcast %3 : i32 to vector<16x8x128xi32>
    %16 = arith.addi %5, %15 : vector<16x8x128xi32>
    %17 = arith.select %14, %16, %5 : vector<16x8x128xi1>, vector<16x8x128xi32>
    %18 = tpu.iota {dimensions = array<i32: 1>} : vector<16x8x128xi32>
    %c1_i32_4 = arith.constant 1 : i32
    %19 = vector.broadcast %c1_i32_4 : i32 to vector<16x8x128xi32>
    %20 = arith.cmpi sge, %17, %19 : vector<16x8x128xi32>
    %c6_i32 = arith.constant 6 : i32
    %21 = vector.broadcast %c6_i32 : i32 to vector<16x8x128xi32>
    %22 = arith.cmpi sle, %17, %21 : vector<16x8x128xi32>
    %c1_i32_5 = arith.constant 1 : i32
    %23 = vector.broadcast %c1_i32_5 : i32 to vector<16x8x128xi32>
    %24 = arith.cmpi sge, %18, %23 : vector<16x8x128xi32>
    %c6_i32_6 = arith.constant 6 : i32
    %25 = vector.broadcast %c6_i32_6 : i32 to vector<16x8x128xi32>
    %26 = arith.cmpi sle, %18, %25 : vector<16x8x128xi32>
    %cst = arith.constant 0.000000e+00 : f32
    %27 = vector.broadcast %cst : f32 to vector<128x128xf32>
    %28 = arith.maximumf %0, %27 : vector<128x128xf32>
    %29 = vector.shape_cast %28 : vector<128x128xf32> to vector<16x8x128xf32>
    %c1_i32_7 = arith.constant 1 : i32
    %30 = tpu.dynamic_rotate %29 by %c1_i32_7 dim 1 : vector<16x8x128xf32>, i32 -> vector<16x8x128xf32>
    %c7_i32 = arith.constant 7 : i32
    %31 = tpu.dynamic_rotate %29 by %c7_i32 dim 1 : vector<16x8x128xf32>, i32 -> vector<16x8x128xf32>
    %32 = vector.extract_strided_slice %30 {offsets = [15, 0, 0], sizes = [1, 8, 128], strides = [1, 1, 1]} : vector<16x8x128xf32> to vector<1x8x128xf32>
    %33 = vector.extract_strided_slice %30 {offsets = [0, 0, 0], sizes = [15, 8, 128], strides = [1, 1, 1]} : vector<16x8x128xf32> to vector<15x8x128xf32>
    %34 = tpu.concatenate %32, %33 in 0 : vector<1x8x128xf32>, vector<15x8x128xf32> -> vector<16x8x128xf32>
    %35 = arith.andi %20, %24 : vector<16x8x128xi1>
    %cst_8 = arith.constant 0.000000e+00 : f32
    %36 = vector.broadcast %cst_8 : f32 to vector<16x8x128xf32>
    %37 = arith.select %35, %34, %36 : vector<16x8x128xi1>, vector<16x8x128xf32>
    %38 = vector.shape_cast %37 : vector<16x8x128xf32> to vector<128x128xf32>
    %39 = arith.truncf %38 : vector<128x128xf32> to vector<128x128xbf16>
    %c0_9 = arith.constant 0 : index
    %c0_10 = arith.constant 0 : index
    %40 = vector.load %arg5[%c0_9, %c0_10] : memref<128x1152xbf16, #tpu.memory_space<vmem>>, vector<128x128xbf16>
    tpu.vector_store %arg5[%c0_9, %c0_10], %39 {strides = array<i32>} : memref<128x1152xbf16, #tpu.memory_space<vmem>>, vector<128x128xbf16>,
    %41 = vector.extract_strided_slice %29 {offsets = [15, 0, 0], sizes = [1, 8, 128], strides = [1, 1, 1]} : vector<16x8x128xf32> to vector<1x8x128xf32>
    %42 = vector.extract_strided_slice %29 {offsets = [0, 0, 0], sizes = [15, 8, 128], strides = [1, 1, 1]} : vector<16x8x128xf32> to vector<15x8x128xf32>
    %43 = tpu.concatenate %41, %42 in 0 : vector<1x8x128xf32>, vector<15x8x128xf32> -> vector<16x8x128xf32>
    %cst_11 = arith.constant 0.000000e+00 : f32
    %44 = vector.broadcast %cst_11 : f32 to vector<16x8x128xf32>
    %45 = arith.select %20, %43, %44 : vector<16x8x128xi1>, vector<16x8x128xf32>
    %46 = vector.shape_cast %45 : vector<16x8x128xf32> to vector<128x128xf32>
    %47 = arith.truncf %46 : vector<128x128xf32> to vector<128x128xbf16>
    %c0_12 = arith.constant 0 : index
    %c128 = arith.constant 128 : index
    %48 = vector.load %arg5[%c0_12, %c128] : memref<128x1152xbf16, #tpu.memory_space<vmem>>, vector<128x128xbf16>
    tpu.vector_store %arg5[%c0_12, %c128], %47 {strides = array<i32>} : memref<128x1152xbf16, #tpu.memory_space<vmem>>, vector<128x128xbf16>,
    %49 = vector.extract_strided_slice %31 {offsets = [15, 0, 0], sizes = [1, 8, 128], strides = [1, 1, 1]} : vector<16x8x128xf32> to vector<1x8x128xf32>
    %50 = vector.extract_strided_slice %31 {offsets = [0, 0, 0], sizes = [15, 8, 128], strides = [1, 1, 1]} : vector<16x8x128xf32> to vector<15x8x128xf32>
    %51 = tpu.concatenate %49, %50 in 0 : vector<1x8x128xf32>, vector<15x8x128xf32> -> vector<16x8x128xf32>
    %52 = arith.andi %20, %26 : vector<16x8x128xi1>
    %cst_13 = arith.constant 0.000000e+00 : f32
    %53 = vector.broadcast %cst_13 : f32 to vector<16x8x128xf32>
    %54 = arith.select %52, %51, %53 : vector<16x8x128xi1>, vector<16x8x128xf32>
    %55 = vector.shape_cast %54 : vector<16x8x128xf32> to vector<128x128xf32>
    %56 = arith.truncf %55 : vector<128x128xf32> to vector<128x128xbf16>
    %c0_14 = arith.constant 0 : index
    %c256 = arith.constant 256 : index
    %57 = vector.load %arg5[%c0_14, %c256] : memref<128x1152xbf16, #tpu.memory_space<vmem>>, vector<128x128xbf16>
    tpu.vector_store %arg5[%c0_14, %c256], %56 {strides = array<i32>} : memref<128x1152xbf16, #tpu.memory_space<vmem>>, vector<128x128xbf16>,
    %cst_15 = arith.constant 0.000000e+00 : f32
    %58 = vector.broadcast %cst_15 : f32 to vector<16x8x128xf32>
    %59 = arith.select %24, %30, %58 : vector<16x8x128xi1>, vector<16x8x128xf32>
    %60 = vector.shape_cast %59 : vector<16x8x128xf32> to vector<128x128xf32>
    %61 = arith.truncf %60 : vector<128x128xf32> to vector<128x128xbf16>
    %c0_16 = arith.constant 0 : index
    %c384 = arith.constant 384 : index
    %62 = vector.load %arg5[%c0_16, %c384] : memref<128x1152xbf16, #tpu.memory_space<vmem>>, vector<128x128xbf16>
    tpu.vector_store %arg5[%c0_16, %c384], %61 {strides = array<i32>} : memref<128x1152xbf16, #tpu.memory_space<vmem>>, vector<128x128xbf16>,
    %63 = vector.shape_cast %29 : vector<16x8x128xf32> to vector<128x128xf32>
    %64 = arith.truncf %63 : vector<128x128xf32> to vector<128x128xbf16>
    %c0_17 = arith.constant 0 : index
    %c512 = arith.constant 512 : index
    %65 = vector.load %arg5[%c0_17, %c512] : memref<128x1152xbf16, #tpu.memory_space<vmem>>, vector<128x128xbf16>
    tpu.vector_store %arg5[%c0_17, %c512], %64 {strides = array<i32>} : memref<128x1152xbf16, #tpu.memory_space<vmem>>, vector<128x128xbf16>,
    %cst_18 = arith.constant 0.000000e+00 : f32
    %66 = vector.broadcast %cst_18 : f32 to vector<16x8x128xf32>
    %67 = arith.select %26, %31, %66 : vector<16x8x128xi1>, vector<16x8x128xf32>
    %68 = vector.shape_cast %67 : vector<16x8x128xf32> to vector<128x128xf32>
    %69 = arith.truncf %68 : vector<128x128xf32> to vector<128x128xbf16>
    %c0_19 = arith.constant 0 : index
    %c640 = arith.constant 640 : index
    %70 = vector.load %arg5[%c0_19, %c640] : memref<128x1152xbf16, #tpu.memory_space<vmem>>, vector<128x128xbf16>
    tpu.vector_store %arg5[%c0_19, %c640], %69 {strides = array<i32>} : memref<128x1152xbf16, #tpu.memory_space<vmem>>, vector<128x128xbf16>,
    %71 = vector.extract_strided_slice %30 {offsets = [1, 0, 0], sizes = [15, 8, 128], strides = [1, 1, 1]} : vector<16x8x128xf32> to vector<15x8x128xf32>
    %72 = vector.extract_strided_slice %30 {offsets = [0, 0, 0], sizes = [1, 8, 128], strides = [1, 1, 1]} : vector<16x8x128xf32> to vector<1x8x128xf32>
    %73 = tpu.concatenate %71, %72 in 0 : vector<15x8x128xf32>, vector<1x8x128xf32> -> vector<16x8x128xf32>
    %74 = arith.andi %22, %24 : vector<16x8x128xi1>
    %cst_20 = arith.constant 0.000000e+00 : f32
    %75 = vector.broadcast %cst_20 : f32 to vector<16x8x128xf32>
    %76 = arith.select %74, %73, %75 : vector<16x8x128xi1>, vector<16x8x128xf32>
    %77 = vector.shape_cast %76 : vector<16x8x128xf32> to vector<128x128xf32>
    %78 = arith.truncf %77 : vector<128x128xf32> to vector<128x128xbf16>
    %c0_21 = arith.constant 0 : index
    %c768 = arith.constant 768 : index
    %79 = vector.load %arg5[%c0_21, %c768] : memref<128x1152xbf16, #tpu.memory_space<vmem>>, vector<128x128xbf16>
    tpu.vector_store %arg5[%c0_21, %c768], %78 {strides = array<i32>} : memref<128x1152xbf16, #tpu.memory_space<vmem>>, vector<128x128xbf16>,
    %80 = vector.extract_strided_slice %29 {offsets = [1, 0, 0], sizes = [15, 8, 128], strides = [1, 1, 1]} : vector<16x8x128xf32> to vector<15x8x128xf32>
    %81 = vector.extract_strided_slice %29 {offsets = [0, 0, 0], sizes = [1, 8, 128], strides = [1, 1, 1]} : vector<16x8x128xf32> to vector<1x8x128xf32>
    %82 = tpu.concatenate %80, %81 in 0 : vector<15x8x128xf32>, vector<1x8x128xf32> -> vector<16x8x128xf32>
    %cst_22 = arith.constant 0.000000e+00 : f32
    %83 = vector.broadcast %cst_22 : f32 to vector<16x8x128xf32>
    %84 = arith.select %22, %82, %83 : vector<16x8x128xi1>, vector<16x8x128xf32>
    %85 = vector.shape_cast %84 : vector<16x8x128xf32> to vector<128x128xf32>
    %86 = arith.truncf %85 : vector<128x128xf32> to vector<128x128xbf16>
    %c0_23 = arith.constant 0 : index
    %c896 = arith.constant 896 : index
    %87 = vector.load %arg5[%c0_23, %c896] : memref<128x1152xbf16, #tpu.memory_space<vmem>>, vector<128x128xbf16>
    tpu.vector_store %arg5[%c0_23, %c896], %86 {strides = array<i32>} : memref<128x1152xbf16, #tpu.memory_space<vmem>>, vector<128x128xbf16>,
    %88 = vector.extract_strided_slice %31 {offsets = [1, 0, 0], sizes = [15, 8, 128], strides = [1, 1, 1]} : vector<16x8x128xf32> to vector<15x8x128xf32>
    %89 = vector.extract_strided_slice %31 {offsets = [0, 0, 0], sizes = [1, 8, 128], strides = [1, 1, 1]} : vector<16x8x128xf32> to vector<1x8x128xf32>
    %90 = tpu.concatenate %88, %89 in 0 : vector<15x8x128xf32>, vector<1x8x128xf32> -> vector<16x8x128xf32>
    %91 = arith.andi %22, %26 : vector<16x8x128xi1>
    %cst_24 = arith.constant 0.000000e+00 : f32
    %92 = vector.broadcast %cst_24 : f32 to vector<16x8x128xf32>
    %93 = arith.select %91, %90, %92 : vector<16x8x128xi1>, vector<16x8x128xf32>
    %94 = vector.shape_cast %93 : vector<16x8x128xf32> to vector<128x128xf32>
    %95 = arith.truncf %94 : vector<128x128xf32> to vector<128x128xbf16>
    %c0_25 = arith.constant 0 : index
    %c1024 = arith.constant 1024 : index
    %96 = vector.load %arg5[%c0_25, %c1024] : memref<128x1152xbf16, #tpu.memory_space<vmem>>, vector<128x128xbf16>
    tpu.vector_store %arg5[%c0_25, %c1024], %95 {strides = array<i32>} : memref<128x1152xbf16, #tpu.memory_space<vmem>>, vector<128x128xbf16>,
    %c0_26 = arith.constant 0 : index
    %c0_27 = arith.constant 0 : index
    %97 = vector.load %arg5[%c0_26, %c0_27] : memref<128x1152xbf16, #tpu.memory_space<vmem>>, vector<128x1152xbf16>
    %c0_28 = arith.constant 0 : index
    %c0_29 = arith.constant 0 : index
    %c0_30 = arith.constant 0 : index
    %98 = vector.load %arg2[%c0_28, %c0_29, %c0_30] : memref<2x1152x32xbf16, #tpu.memory_space<vmem>>, vector<1x1152x32xbf16>
    %99 = vector.shape_cast %98 : vector<1x1152x32xbf16> to vector<1152x32xbf16>
    %cst_31 = arith.constant dense<0.000000e+00> : vector<128x32xf32>
    %100 = tpu.matmul %97, %99, %cst_31 {dimension_numbers = #tpu.dot_dimension_numbers<[1], [0], [0], [1], [0, 0, 1, 1], [], []>} : vector<128x1152xbf16>, vector<1152x32xbf16>, vector<128x32xf32> -> vector<128x32xf32>
    %cst_32 = arith.constant 0.000000e+00 : f32
    %101 = vector.broadcast %cst_32 : f32 to vector<128x32xf32>
    %102 = arith.maximumf %100, %101 : vector<128x32xf32>
    %103 = arith.truncf %102 : vector<128x32xf32> to vector<128x32xbf16>
    %c0_33 = arith.constant 0 : index
    %c0_34 = arith.constant 0 : index
    %c0_35 = arith.constant 0 : index
    %104 = vector.load %arg3[%c0_33, %c0_34, %c0_35] : memref<2x32x128xbf16, #tpu.memory_space<vmem>>, vector<1x32x128xbf16>
    %105 = vector.shape_cast %104 : vector<1x32x128xbf16> to vector<32x128xbf16>
    %cst_36 = arith.constant dense<0.000000e+00> : vector<128x128xf32>
    %106 = tpu.matmul %103, %105, %cst_36 {dimension_numbers = #tpu.dot_dimension_numbers<[1], [0], [0], [1], [0, 0, 1, 1], [], []>} : vector<128x32xbf16>, vector<32x128xbf16>, vector<128x128xf32> -> vector<128x128xf32>
    %107 = arith.addf %0, %106 : vector<128x128xf32>
    %cst_37 = arith.constant 0.000000e+00 : f32
    %108 = vector.broadcast %cst_37 : f32 to vector<128x128xf32>
    %109 = arith.maximumf %107, %108 : vector<128x128xf32>
    %110 = vector.shape_cast %109 : vector<128x128xf32> to vector<16x8x128xf32>
    %c1_i32_38 = arith.constant 1 : i32
    %111 = tpu.dynamic_rotate %110 by %c1_i32_38 dim 1 : vector<16x8x128xf32>, i32 -> vector<16x8x128xf32>
    %c7_i32_39 = arith.constant 7 : i32
    %112 = tpu.dynamic_rotate %110 by %c7_i32_39 dim 1 : vector<16x8x128xf32>, i32 -> vector<16x8x128xf32>
    %113 = vector.extract_strided_slice %111 {offsets = [15, 0, 0], sizes = [1, 8, 128], strides = [1, 1, 1]} : vector<16x8x128xf32> to vector<1x8x128xf32>
    %114 = vector.extract_strided_slice %111 {offsets = [0, 0, 0], sizes = [15, 8, 128], strides = [1, 1, 1]} : vector<16x8x128xf32> to vector<15x8x128xf32>
    %115 = tpu.concatenate %113, %114 in 0 : vector<1x8x128xf32>, vector<15x8x128xf32> -> vector<16x8x128xf32>
    %116 = arith.andi %20, %24 : vector<16x8x128xi1>
    %cst_40 = arith.constant 0.000000e+00 : f32
    %117 = vector.broadcast %cst_40 : f32 to vector<16x8x128xf32>
    %118 = arith.select %116, %115, %117 : vector<16x8x128xi1>, vector<16x8x128xf32>
    %119 = vector.shape_cast %118 : vector<16x8x128xf32> to vector<128x128xf32>
    %120 = arith.truncf %119 : vector<128x128xf32> to vector<128x128xbf16>
    %c0_41 = arith.constant 0 : index
    %c0_42 = arith.constant 0 : index
    %121 = vector.load %arg5[%c0_41, %c0_42] : memref<128x1152xbf16, #tpu.memory_space<vmem>>, vector<128x128xbf16>
    tpu.vector_store %arg5[%c0_41, %c0_42], %120 {strides = array<i32>} : memref<128x1152xbf16, #tpu.memory_space<vmem>>, vector<128x128xbf16>,
    %122 = vector.extract_strided_slice %110 {offsets = [15, 0, 0], sizes = [1, 8, 128], strides = [1, 1, 1]} : vector<16x8x128xf32> to vector<1x8x128xf32>
    %123 = vector.extract_strided_slice %110 {offsets = [0, 0, 0], sizes = [15, 8, 128], strides = [1, 1, 1]} : vector<16x8x128xf32> to vector<15x8x128xf32>
    %124 = tpu.concatenate %122, %123 in 0 : vector<1x8x128xf32>, vector<15x8x128xf32> -> vector<16x8x128xf32>
    %cst_43 = arith.constant 0.000000e+00 : f32
    %125 = vector.broadcast %cst_43 : f32 to vector<16x8x128xf32>
    %126 = arith.select %20, %124, %125 : vector<16x8x128xi1>, vector<16x8x128xf32>
    %127 = vector.shape_cast %126 : vector<16x8x128xf32> to vector<128x128xf32>
    %128 = arith.truncf %127 : vector<128x128xf32> to vector<128x128xbf16>
    %c0_44 = arith.constant 0 : index
    %c128_45 = arith.constant 128 : index
    %129 = vector.load %arg5[%c0_44, %c128_45] : memref<128x1152xbf16, #tpu.memory_space<vmem>>, vector<128x128xbf16>
    tpu.vector_store %arg5[%c0_44, %c128_45], %128 {strides = array<i32>} : memref<128x1152xbf16, #tpu.memory_space<vmem>>, vector<128x128xbf16>,
    %130 = vector.extract_strided_slice %112 {offsets = [15, 0, 0], sizes = [1, 8, 128], strides = [1, 1, 1]} : vector<16x8x128xf32> to vector<1x8x128xf32>
    %131 = vector.extract_strided_slice %112 {offsets = [0, 0, 0], sizes = [15, 8, 128], strides = [1, 1, 1]} : vector<16x8x128xf32> to vector<15x8x128xf32>
    %132 = tpu.concatenate %130, %131 in 0 : vector<1x8x128xf32>, vector<15x8x128xf32> -> vector<16x8x128xf32>
    %133 = arith.andi %20, %26 : vector<16x8x128xi1>
    %cst_46 = arith.constant 0.000000e+00 : f32
    %134 = vector.broadcast %cst_46 : f32 to vector<16x8x128xf32>
    %135 = arith.select %133, %132, %134 : vector<16x8x128xi1>, vector<16x8x128xf32>
    %136 = vector.shape_cast %135 : vector<16x8x128xf32> to vector<128x128xf32>
    %137 = arith.truncf %136 : vector<128x128xf32> to vector<128x128xbf16>
    %c0_47 = arith.constant 0 : index
    %c256_48 = arith.constant 256 : index
    %138 = vector.load %arg5[%c0_47, %c256_48] : memref<128x1152xbf16, #tpu.memory_space<vmem>>, vector<128x128xbf16>
    tpu.vector_store %arg5[%c0_47, %c256_48], %137 {strides = array<i32>} : memref<128x1152xbf16, #tpu.memory_space<vmem>>, vector<128x128xbf16>,
    %cst_49 = arith.constant 0.000000e+00 : f32
    %139 = vector.broadcast %cst_49 : f32 to vector<16x8x128xf32>
    %140 = arith.select %24, %111, %139 : vector<16x8x128xi1>, vector<16x8x128xf32>
    %141 = vector.shape_cast %140 : vector<16x8x128xf32> to vector<128x128xf32>
    %142 = arith.truncf %141 : vector<128x128xf32> to vector<128x128xbf16>
    %c0_50 = arith.constant 0 : index
    %c384_51 = arith.constant 384 : index
    %143 = vector.load %arg5[%c0_50, %c384_51] : memref<128x1152xbf16, #tpu.memory_space<vmem>>, vector<128x128xbf16>
    tpu.vector_store %arg5[%c0_50, %c384_51], %142 {strides = array<i32>} : memref<128x1152xbf16, #tpu.memory_space<vmem>>, vector<128x128xbf16>,
    %144 = vector.shape_cast %110 : vector<16x8x128xf32> to vector<128x128xf32>
    %145 = arith.truncf %144 : vector<128x128xf32> to vector<128x128xbf16>
    %c0_52 = arith.constant 0 : index
    %c512_53 = arith.constant 512 : index
    %146 = vector.load %arg5[%c0_52, %c512_53] : memref<128x1152xbf16, #tpu.memory_space<vmem>>, vector<128x128xbf16>
    tpu.vector_store %arg5[%c0_52, %c512_53], %145 {strides = array<i32>} : memref<128x1152xbf16, #tpu.memory_space<vmem>>, vector<128x128xbf16>,
    %cst_54 = arith.constant 0.000000e+00 : f32
    %147 = vector.broadcast %cst_54 : f32 to vector<16x8x128xf32>
    %148 = arith.select %26, %112, %147 : vector<16x8x128xi1>, vector<16x8x128xf32>
    %149 = vector.shape_cast %148 : vector<16x8x128xf32> to vector<128x128xf32>
    %150 = arith.truncf %149 : vector<128x128xf32> to vector<128x128xbf16>
    %c0_55 = arith.constant 0 : index
    %c640_56 = arith.constant 640 : index
    %151 = vector.load %arg5[%c0_55, %c640_56] : memref<128x1152xbf16, #tpu.memory_space<vmem>>, vector<128x128xbf16>
    tpu.vector_store %arg5[%c0_55, %c640_56], %150 {strides = array<i32>} : memref<128x1152xbf16, #tpu.memory_space<vmem>>, vector<128x128xbf16>,
    %152 = vector.extract_strided_slice %111 {offsets = [1, 0, 0], sizes = [15, 8, 128], strides = [1, 1, 1]} : vector<16x8x128xf32> to vector<15x8x128xf32>
    %153 = vector.extract_strided_slice %111 {offsets = [0, 0, 0], sizes = [1, 8, 128], strides = [1, 1, 1]} : vector<16x8x128xf32> to vector<1x8x128xf32>
    %154 = tpu.concatenate %152, %153 in 0 : vector<15x8x128xf32>, vector<1x8x128xf32> -> vector<16x8x128xf32>
    %155 = arith.andi %22, %24 : vector<16x8x128xi1>
    %cst_57 = arith.constant 0.000000e+00 : f32
    %156 = vector.broadcast %cst_57 : f32 to vector<16x8x128xf32>
    %157 = arith.select %155, %154, %156 : vector<16x8x128xi1>, vector<16x8x128xf32>
    %158 = vector.shape_cast %157 : vector<16x8x128xf32> to vector<128x128xf32>
    %159 = arith.truncf %158 : vector<128x128xf32> to vector<128x128xbf16>
    %c0_58 = arith.constant 0 : index
    %c768_59 = arith.constant 768 : index
    %160 = vector.load %arg5[%c0_58, %c768_59] : memref<128x1152xbf16, #tpu.memory_space<vmem>>, vector<128x128xbf16>
    tpu.vector_store %arg5[%c0_58, %c768_59], %159 {strides = array<i32>} : memref<128x1152xbf16, #tpu.memory_space<vmem>>, vector<128x128xbf16>,
    %161 = vector.extract_strided_slice %110 {offsets = [1, 0, 0], sizes = [15, 8, 128], strides = [1, 1, 1]} : vector<16x8x128xf32> to vector<15x8x128xf32>
    %162 = vector.extract_strided_slice %110 {offsets = [0, 0, 0], sizes = [1, 8, 128], strides = [1, 1, 1]} : vector<16x8x128xf32> to vector<1x8x128xf32>
    %163 = tpu.concatenate %161, %162 in 0 : vector<15x8x128xf32>, vector<1x8x128xf32> -> vector<16x8x128xf32>
    %cst_60 = arith.constant 0.000000e+00 : f32
    %164 = vector.broadcast %cst_60 : f32 to vector<16x8x128xf32>
    %165 = arith.select %22, %163, %164 : vector<16x8x128xi1>, vector<16x8x128xf32>
    %166 = vector.shape_cast %165 : vector<16x8x128xf32> to vector<128x128xf32>
    %167 = arith.truncf %166 : vector<128x128xf32> to vector<128x128xbf16>
    %c0_61 = arith.constant 0 : index
    %c896_62 = arith.constant 896 : index
    %168 = vector.load %arg5[%c0_61, %c896_62] : memref<128x1152xbf16, #tpu.memory_space<vmem>>, vector<128x128xbf16>
    tpu.vector_store %arg5[%c0_61, %c896_62], %167 {strides = array<i32>} : memref<128x1152xbf16, #tpu.memory_space<vmem>>, vector<128x128xbf16>,
    %169 = vector.extract_strided_slice %112 {offsets = [1, 0, 0], sizes = [15, 8, 128], strides = [1, 1, 1]} : vector<16x8x128xf32> to vector<15x8x128xf32>
    %170 = vector.extract_strided_slice %112 {offsets = [0, 0, 0], sizes = [1, 8, 128], strides = [1, 1, 1]} : vector<16x8x128xf32> to vector<1x8x128xf32>
    %171 = tpu.concatenate %169, %170 in 0 : vector<15x8x128xf32>, vector<1x8x128xf32> -> vector<16x8x128xf32>
    %172 = arith.andi %22, %26 : vector<16x8x128xi1>
    %cst_63 = arith.constant 0.000000e+00 : f32
    %173 = vector.broadcast %cst_63 : f32 to vector<16x8x128xf32>
    %174 = arith.select %172, %171, %173 : vector<16x8x128xi1>, vector<16x8x128xf32>
    %175 = vector.shape_cast %174 : vector<16x8x128xf32> to vector<128x128xf32>
    %176 = arith.truncf %175 : vector<128x128xf32> to vector<128x128xbf16>
    %c0_64 = arith.constant 0 : index
    %c1024_65 = arith.constant 1024 : index
    %177 = vector.load %arg5[%c0_64, %c1024_65] : memref<128x1152xbf16, #tpu.memory_space<vmem>>, vector<128x128xbf16>
    tpu.vector_store %arg5[%c0_64, %c1024_65], %176 {strides = array<i32>} : memref<128x1152xbf16, #tpu.memory_space<vmem>>, vector<128x128xbf16>,
    %c0_66 = arith.constant 0 : index
    %c0_67 = arith.constant 0 : index
    %178 = vector.load %arg5[%c0_66, %c0_67] : memref<128x1152xbf16, #tpu.memory_space<vmem>>, vector<128x1152xbf16>
    %c1 = arith.constant 1 : index
    %c0_68 = arith.constant 0 : index
    %c0_69 = arith.constant 0 : index
    %179 = vector.load %arg2[%c1, %c0_68, %c0_69] : memref<2x1152x32xbf16, #tpu.memory_space<vmem>>, vector<1x1152x32xbf16>
    %180 = vector.shape_cast %179 : vector<1x1152x32xbf16> to vector<1152x32xbf16>
    %cst_70 = arith.constant dense<0.000000e+00> : vector<128x32xf32>
    %181 = tpu.matmul %178, %180, %cst_70 {dimension_numbers = #tpu.dot_dimension_numbers<[1], [0], [0], [1], [0, 0, 1, 1], [], []>} : vector<128x1152xbf16>, vector<1152x32xbf16>, vector<128x32xf32> -> vector<128x32xf32>
    %cst_71 = arith.constant 0.000000e+00 : f32
    %182 = vector.broadcast %cst_71 : f32 to vector<128x32xf32>
    %183 = arith.maximumf %181, %182 : vector<128x32xf32>
    %184 = arith.truncf %183 : vector<128x32xf32> to vector<128x32xbf16>
    %c1_72 = arith.constant 1 : index
    %c0_73 = arith.constant 0 : index
    %c0_74 = arith.constant 0 : index
    %185 = vector.load %arg3[%c1_72, %c0_73, %c0_74] : memref<2x32x128xbf16, #tpu.memory_space<vmem>>, vector<1x32x128xbf16>
    %186 = vector.shape_cast %185 : vector<1x32x128xbf16> to vector<32x128xbf16>
    %cst_75 = arith.constant dense<0.000000e+00> : vector<128x128xf32>
    %187 = tpu.matmul %184, %186, %cst_75 {dimension_numbers = #tpu.dot_dimension_numbers<[1], [0], [0], [1], [0, 0, 1, 1], [], []>} : vector<128x32xbf16>, vector<32x128xbf16>, vector<128x128xf32> -> vector<128x128xf32>
    %188 = arith.addf %107, %187 : vector<128x128xf32>
    %cst_76 = arith.constant 0.000000e+00 : f32
    %189 = vector.broadcast %cst_76 : f32 to vector<128x128xf32>
    %190 = arith.maximumf %188, %189 : vector<128x128xf32>
    %c0_77 = arith.constant 0 : index
    %c0_78 = arith.constant 0 : index
    %191 = vector.load %arg4[%c0_77, %c0_78] : memref<128x128xf32, #tpu.memory_space<vmem>>, vector<128x128xf32>
    tpu.vector_store %arg4[%c0_77, %c0_78], %190 {strides = array<i32>} : memref<128x128xf32, #tpu.memory_space<vmem>>, vector<128x128xf32>,
    return
  }
  func.func @transform_0(%arg0: i32) -> (i32, i32) {
    %c0_i32 = arith.constant 0 : i32
    %c0_i32_0 = arith.constant 0 : i32
    %c0_i32_1 = arith.constant 0 : i32
    return %c0_i32, %c0_i32_0 : i32, i32
  }
  func.func @transform_1(%arg0: i32) -> (i32, i32, i32) {
    %c0_i32 = arith.constant 0 : i32
    %c0_i32_0 = arith.constant 0 : i32
    %c0_i32_1 = arith.constant 0 : i32
    %c0_i32_2 = arith.constant 0 : i32
    return %c0_i32, %c0_i32_0, %c0_i32_1 : i32, i32, i32
  }
  func.func @transform_2(%arg0: i32) -> (i32, i32, i32) {
    %c0_i32 = arith.constant 0 : i32
    %c0_i32_0 = arith.constant 0 : i32
    %c0_i32_1 = arith.constant 0 : i32
    %c0_i32_2 = arith.constant 0 : i32
    return %c0_i32, %c0_i32_0, %c0_i32_1 : i32, i32, i32
  }
  func.func @transform_3(%arg0: i32) -> (i32, i32) {
    %c0_i32 = arith.constant 0 : i32
    %c0_i32_0 = arith.constant 0 : i32
    %c0_i32_1 = arith.constant 0 : i32
    return %c0_i32, %c0_i32_0 : i32, i32
  }
}

</mosaic_0001>

<llo_original>
// kernel: residual_stack.1
$region0: #{residual_stack.1}
  #allocation0 [shape = 'u32[]', space=smem, size = 0x4, offset = 0x4, fixed_abs, tag = 'smem constant byte address 0x4 - core index']
  #allocation1 [shape = 'u32[72,128]{1,0:T(1,128)}', space=vmem, size = 0x9000, scoped, tag = 'internal scratch']
  #allocation2 [shape = 'bf16[128,1152]{1,0:T(8,128)(2,1)}', space=vmem, size = 0x48000, scoped, tag = 'scratch operand']
  %s0 = inlined_call_operand.vmem [shape: f32[128,128], index: 0, kind: input, shape index: {}]
  %s1 = inlined_call_operand.vmem [shape: bf16[2,1152,32], index: 1, kind: input, shape index: {}]
  %s2 = inlined_call_operand.vmem [shape: bf16[2,32,128], index: 2, kind: input, shape index: {}]
  %s3 = inlined_call_operand.hbm [shape: f32[128,128], index: 3, kind: output, shape index: {}]
  %s4 = sld [smem:[#allocation0]]
  $region22: #{residual_stack.1} parent=0
    _
  %s6 = ssub.s32 1, %s4
  %s7 = scalar_select 0, %s6, %s4
  $region1: #{residual_stack.1} parent=0
    #allocation3 [shape = 'u8[65536]{0}', space=vmem, size = 0x10000, scoped, tag = 'output window, operand 0, single buffered']
    #allocation4 [shape = 's32[1]{0}', space=sflag, size = 0x4, scoped, tag = 'scoped memory for residual_stack.1']
    %8 = vsyncpa [#allocation4], 0
    // Predicated region
    $region2: #{residual_stack.1} parent=1 // pred_check
      _
    $region3: #{residual_stack.1} parent=1 // pred_check_branch
      %10 = sbr.rel (0) target = $region5
    $region4: #{residual_stack.1} parent=1 // pred_region
      _
    $region5: #{residual_stack.1} parent=1 // pred_fallthru
      _
    // Predicated region
    $region6: #{residual_stack.1} parent=1 // pred_check
      _
    $region7: #{residual_stack.1} parent=1 // pred_check_branch
      %12 = sbr.rel (0) target = $region9
    $region8: #{residual_stack.1} parent=1 // pred_region
      _
    $region9: #{residual_stack.1} parent=1 // pred_fallthru
      _
    // Predicated region
    $region10: #{residual_stack.1} parent=1 // pred_check
      _
    $region11: #{residual_stack.1} parent=1 // pred_check_branch
      %14 = sbr.rel (0) target = $region13
    $region12: #{residual_stack.1} parent=1 // pred_region
      _
    $region13: #{residual_stack.1} parent=1 // pred_fallthru
      _
    %v16 = vld [vmem:[%s0] sm:$0xff]
    %v17 = vld [vmem:[%s0 + $0x8] sm:$0xff]
    %v18 = vld [vmem:[%s0 + $0x10] sm:$0xff]
    %v19 = vld [vmem:[%s0 + $0x18] sm:$0xff]
    %v20 = vld [vmem:[%s0 + $0x20] sm:$0xff]
    %v21 = vld [vmem:[%s0 + $0x28] sm:$0xff]
    %v22 = vld [vmem:[%s0 + $0x30] sm:$0xff]
    %v23 = vld [vmem:[%s0 + $0x38] sm:$0xff]
    %v24 = vld [vmem:[%s0 + $0x40] sm:$0xff]
    %v25 = vld [vmem:[%s0 + $0x48] sm:$0xff]
    %v26 = vld [vmem:[%s0 + $0x50] sm:$0xff]
    %v27 = vld [vmem:[%s0 + $0x58] sm:$0xff]
    %v28 = vld [vmem:[%s0 + $0x60] sm:$0xff]
    %v29 = vld [vmem:[%s0 + $0x68] sm:$0xff]
    %v30 = vld [vmem:[%s0 + $0x70] sm:$0xff]
    %v31 = vld [vmem:[%s0 + $0x78] sm:$0xff]
    %v32 = vlaneseq
    %v33 = vshrl.u32 %v32, 7
    %vm34 = vcmp.ge.s32.totalorder %v33, 1
    %vm35 = vcmp.le.s32.totalorder %v33, 6
    %v36 = vmax.f32 %v16, 0.0
    %v37 = vmax.f32 %v17, 0.0
    %v38 = vmax.f32 %v18, 0.0
    %v39 = vmax.f32 %v19, 0.0
    %v40 = vmax.f32 %v20, 0.0
    %v41 = vmax.f32 %v21, 0.0
    %v42 = vmax.f32 %v22, 0.0
    %v43 = vmax.f32 %v23, 0.0
    %v44 = vmax.f32 %v24, 0.0
    %v45 = vmax.f32 %v25, 0.0
    %v46 = vmax.f32 %v26, 0.0
    %v47 = vmax.f32 %v27, 0.0
    %v48 = vmax.f32 %v28, 0.0
    %v49 = vmax.f32 %v29, 0.0
    %v50 = vmax.f32 %v30, 0.0
    %v51 = vmax.f32 %v31, 0.0
    %v52 = vrot.slane %v36, 7
    %v53 = vrot.slane %v37, 7
    %v54 = vrot.slane %v38, 7
    %v55 = vrot.slane %v39, 7
    %v56 = vrot.slane %v40, 7
    %v57 = vrot.slane %v41, 7
    %v58 = vrot.slane %v42, 7
    %v59 = vrot.slane %v43, 7
    %v60 = vrot.slane %v44, 7
    %v61 = vrot.slane %v45, 7
    %v62 = vrot.slane %v46, 7
    %v63 = vrot.slane %v47, 7
    %v64 = vrot.slane %v48, 7
    %v65 = vrot.slane %v49, 7
    %v66 = vrot.slane %v50, 7
    %v67 = vrot.slane %v51, 7
    %v68 = vrot.slane %v36, 1
    %v69 = vrot.slane %v37, 1
    %v70 = vrot.slane %v38, 1
    %v71 = vrot.slane %v39, 1
    %v72 = vrot.slane %v40, 1
    %v73 = vrot.slane %v41, 1
    %v74 = vrot.slane %v42, 1
    %v75 = vrot.slane %v43, 1
    %v76 = vrot.slane %v44, 1
    %v77 = vrot.slane %v45, 1
    %v78 = vrot.slane %v46, 1
    %v79 = vrot.slane %v47, 1
    %v80 = vrot.slane %v48, 1
    %v81 = vrot.slane %v49, 1
    %v82 = vrot.slane %v50, 1
    %v83 = vrot.slane %v51, 1
    %vm84 = vmand 0, %vm34
    %vm85 = vmand 1, %vm34
    %v86 = vsel %vm84, %v67, 0.0
    %v87 = vsel %vm85, %v52, 0.0
    %v88 = vsel %vm85, %v53, 0.0
    %v89 = vsel %vm85, %v54, 0.0
    %v90 = vsel %vm85, %v55, 0.0
    %v91 = vsel %vm85, %v56, 0.0
    %v92 = vsel %vm85, %v57, 0.0
    %v93 = vsel %vm85, %v58, 0.0
    %v94 = vsel %vm84, %v59, 0.0
    %v95 = vsel %vm85, %v60, 0.0
    %v96 = vsel %vm85, %v61, 0.0
    %v97 = vsel %vm85, %v62, 0.0
    %v98 = vsel %vm85, %v63, 0.0
    %v99 = vsel %vm85, %v64, 0.0
    %v100 = vsel %vm85, %v65, 0.0
    %v101 = vsel %vm85, %v66, 0.0
    %v102 = vpack.c.bf16 %v86, %v86
    %v103 = vpack.c.bf16 %v87, %v87
    %v104 = vpack.c.bf16 %v88, %v88
    %v105 = vpack.c.bf16 %v89, %v89
    %v106 = vpack.c.bf16 %v90, %v90
    %v107 = vpack.c.bf16 %v91, %v91
    %v108 = vpack.c.bf16 %v92, %v92
    %v109 = vpack.c.bf16 %v93, %v93
    %v110 = vpack.c.bf16 %v94, %v94
    %v111 = vpack.c.bf16 %v95, %v95
    %v112 = vpack.c.bf16 %v96, %v96
    %v113 = vpack.c.bf16 %v97, %v97
    %v114 = vpack.c.bf16 %v98, %v98
    %v115 = vpack.c.bf16 %v99, %v99
    %v116 = vpack.c.bf16 %v100, %v100
    %v117 = vpack.c.bf16 %v101, %v101
    %118 = vst [vmem:[#allocation2] sm:$0xf] %v102
    %119 = vst [vmem:[#allocation2 + $0x24] sm:$0xf] %v103
    %120 = vst [vmem:[#allocation2 + $0x48] sm:$0xf] %v104
    %121 = vst [vmem:[#allocation2 + $0x6c] sm:$0xf] %v105
    %122 = vst [vmem:[#allocation2 + $0x90] sm:$0xf] %v106
    %123 = vst [vmem:[#allocation2 + $0xb4] sm:$0xf] %v107
    %124 = vst [vmem:[#allocation2 + $0xd8] sm:$0xf] %v108
    %125 = vst [vmem:[#allocation2 + $0xfc] sm:$0xf] %v109
    %126 = vst [vmem:[#allocation2 + $0x120] sm:$0xf] %v110
    %127 = vst [vmem:[#allocation2 + $0x144] sm:$0xf] %v111
    %128 = vst [vmem:[#allocation2 + $0x168] sm:$0xf] %v112
    %129 = vst [vmem:[#allocation2 + $0x18c] sm:$0xf] %v113
    %130 = vst [vmem:[#allocation2 + $0x1b0] sm:$0xf] %v114
    %131 = vst [vmem:[#allocation2 + $0x1d4] sm:$0xf] %v115
    %132 = vst [vmem:[#allocation2 + $0x1f8] sm:$0xf] %v116
    %133 = vst [vmem:[#allocation2 + $0x21c] sm:$0xf] %v117
    %v134 = vsel 0, %v51, 0.0
    %v135 = vsel 1, %v36, 0.0
    %v136 = vsel 1, %v37, 0.0
    %v137 = vsel 1, %v38, 0.0
    %v138 = vsel 1, %v39, 0.0
    %v139 = vsel 1, %v40, 0.0
    %v140 = vsel 1, %v41, 0.0
    %v141 = vsel 1, %v42, 0.0
    %v142 = vsel 0, %v43, 0.0
    %v143 = vsel 1, %v44, 0.0
    %v144 = vsel 1, %v45, 0.0
    %v145 = vsel 1, %v46, 0.0
    %v146 = vsel 1, %v47, 0.0
    %v147 = vsel 1, %v48, 0.0
    %v148 = vsel 1, %v49, 0.0
    %v149 = vsel 1, %v50, 0.0
    %v150 = vpack.c.bf16 %v134, %v134
    %v151 = vpack.c.bf16 %v135, %v135
    %v152 = vpack.c.bf16 %v136, %v136
    %v153 = vpack.c.bf16 %v137, %v137
    %v154 = vpack.c.bf16 %v138, %v138
    %v155 = vpack.c.bf16 %v139, %v139
    %v156 = vpack.c.bf16 %v140, %v140
    %v157 = vpack.c.bf16 %v141, %v141
    %v158 = vpack.c.bf16 %v142, %v142
    %v159 = vpack.c.bf16 %v143, %v143
    %v160 = vpack.c.bf16 %v144, %v144
    %v161 = vpack.c.bf16 %v145, %v145
    %v162 = vpack.c.bf16 %v146, %v146
    %v163 = vpack.c.bf16 %v147, %v147
    %v164 = vpack.c.bf16 %v148, %v148
    %v165 = vpack.c.bf16 %v149, %v149
    %166 = vst [vmem:[#allocation2 + $0x4] sm:$0xf] %v150
    %167 = vst [vmem:[#allocation2 + $0x28] sm:$0xf] %v151
    %168 = vst [vmem:[#allocation2 + $0x4c] sm:$0xf] %v152
    %169 = vst [vmem:[#allocation2 + $0x70] sm:$0xf] %v153
    %170 = vst [vmem:[#allocation2 + $0x94] sm:$0xf] %v154
    %171 = vst [vmem:[#allocation2 + $0xb8] sm:$0xf] %v155
    %172 = vst [vmem:[#allocation2 + $0xdc] sm:$0xf] %v156
    %173 = vst [vmem:[#allocation2 + $0x100] sm:$0xf] %v157
    %174 = vst [vmem:[#allocation2 + $0x124] sm:$0xf] %v158
    %175 = vst [vmem:[#allocation2 + $0x148] sm:$0xf] %v159
    %176 = vst [vmem:[#allocation2 + $0x16c] sm:$0xf] %v160
    %177 = vst [vmem:[#allocation2 + $0x190] sm:$0xf] %v161
    %178 = vst [vmem:[#allocation2 + $0x1b4] sm:$0xf] %v162
    %179 = vst [vmem:[#allocation2 + $0x1d8] sm:$0xf] %v163
    %180 = vst [vmem:[#allocation2 + $0x1fc] sm:$0xf] %v164
    %181 = vst [vmem:[#allocation2 + $0x220] sm:$0xf] %v165
    %vm182 = vmand 0, %vm35
    %vm183 = vmand 1, %vm35
    %v184 = vsel %vm182, %v83, 0.0
    %v185 = vsel %vm183, %v68, 0.0
    %v186 = vsel %vm183, %v69, 0.0
    %v187 = vsel %vm183, %v70, 0.0
    %v188 = vsel %vm183, %v71, 0.0
    %v189 = vsel %vm183, %v72, 0.0
    %v190 = vsel %vm183, %v73, 0.0
    %v191 = vsel %vm183, %v74, 0.0
    %v192 = vsel %vm182, %v75, 0.0
    %v193 = vsel %vm183, %v76, 0.0
    %v194 = vsel %vm183, %v77, 0.0
    %v195 = vsel %vm183, %v78, 0.0
    %v196 = vsel %vm183, %v79, 0.0
    %v197 = vsel %vm183, %v80, 0.0
    %v198 = vsel %vm183, %v81, 0.0
    %v199 = vsel %vm183, %v82, 0.0
    %v200 = vpack.c.bf16 %v184, %v184
    %v201 = vpack.c.bf16 %v185, %v185
    %v202 = vpack.c.bf16 %v186, %v186
    %v203 = vpack.c.bf16 %v187, %v187
    %v204 = vpack.c.bf16 %v188, %v188
    %v205 = vpack.c.bf16 %v189, %v189
    %v206 = vpack.c.bf16 %v190, %v190
    %v207 = vpack.c.bf16 %v191, %v191
    %v208 = vpack.c.bf16 %v192, %v192
    %v209 = vpack.c.bf16 %v193, %v193
    %v210 = vpack.c.bf16 %v194, %v194
    %v211 = vpack.c.bf16 %v195, %v195
    %v212 = vpack.c.bf16 %v196, %v196
    %v213 = vpack.c.bf16 %v197, %v197
    %v214 = vpack.c.bf16 %v198, %v198
    %v215 = vpack.c.bf16 %v199, %v199
    %216 = vst [vmem:[#allocation2 + $0x8] sm:$0xf] %v200
    %217 = vst [vmem:[#allocation2 + $0x2c] sm:$0xf] %v201
    %218 = vst [vmem:[#allocation2 + $0x50] sm:$0xf] %v202
    %219 = vst [vmem:[#allocation2 + $0x74] sm:$0xf] %v203
    %220 = vst [vmem:[#allocation2 + $0x98] sm:$0xf] %v204
    %221 = vst [vmem:[#allocation2 + $0xbc] sm:$0xf] %v205
    %222 = vst [vmem:[#allocation2 + $0xe0] sm:$0xf] %v206
    %223 = vst [vmem:[#allocation2 + $0x104] sm:$0xf] %v207
    %224 = vst [vmem:[#allocation2 + $0x128] sm:$0xf] %v208
    %225 = vst [vmem:[#allocation2 + $0x14c] sm:$0xf] %v209
    %226 = vst [vmem:[#allocation2 + $0x170] sm:$0xf] %v210
    %227 = vst [vmem:[#allocation2 + $0x194] sm:$0xf] %v211
    %228 = vst [vmem:[#allocation2 + $0x1b8] sm:$0xf] %v212
    %229 = vst [vmem:[#allocation2 + $0x1dc] sm:$0xf] %v213
    %230 = vst [vmem:[#allocation2 + $0x200] sm:$0xf] %v214
    %231 = vst [vmem:[#allocation2 + $0x224] sm:$0xf] %v215
    %v232 = vsel %vm34, %v52, 0.0
    %v233 = vsel %vm34, %v53, 0.0
    %v234 = vsel %vm34, %v54, 0.0
    %v235 = vsel %vm34, %v55, 0.0
    %v236 = vsel %vm34, %v56, 0.0
    %v237 = vsel %vm34, %v57, 0.0
    %v238 = vsel %vm34, %v58, 0.0
    %v239 = vsel %vm34, %v59, 0.0
    %v240 = vsel %vm34, %v60, 0.0
    %v241 = vsel %vm34, %v61, 0.0
    %v242 = vsel %vm34, %v62, 0.0
    %v243 = vsel %vm34, %v63, 0.0
    %v244 = vsel %vm34, %v64, 0.0
    %v245 = vsel %vm34, %v65, 0.0
    %v246 = vsel %vm34, %v66, 0.0
    %v247 = vsel %vm34, %v67, 0.0
    %v248 = vpack.c.bf16 %v232, %v232
    %v249 = vpack.c.bf16 %v233, %v233
    %v250 = vpack.c.bf16 %v234, %v234
    %v251 = vpack.c.bf16 %v235, %v235
    %v252 = vpack.c.bf16 %v236, %v236
    %v253 = vpack.c.bf16 %v237, %v237
    %v254 = vpack.c.bf16 %v238, %v238
    %v255 = vpack.c.bf16 %v239, %v239
    %v256 = vpack.c.bf16 %v240, %v240
    %v257 = vpack.c.bf16 %v241, %v241
    %v258 = vpack.c.bf16 %v242, %v242
    %v259 = vpack.c.bf16 %v243, %v243
    %v260 = vpack.c.bf16 %v244, %v244
    %v261 = vpack.c.bf16 %v245, %v245
    %v262 = vpack.c.bf16 %v246, %v246
    %v263 = vpack.c.bf16 %v247, %v247
    %264 = vst [vmem:[#allocation2 + $0xc] sm:$0xf] %v248
    %265 = vst [vmem:[#allocation2 + $0x30] sm:$0xf] %v249
    %266 = vst [vmem:[#allocation2 + $0x54] sm:$0xf] %v250
    %267 = vst [vmem:[#allocation2 + $0x78] sm:$0xf] %v251
    %268 = vst [vmem:[#allocation2 + $0x9c] sm:$0xf] %v252
    %269 = vst [vmem:[#allocation2 + $0xc0] sm:$0xf] %v253
    %270 = vst [vmem:[#allocation2 + $0xe4] sm:$0xf] %v254
    %271 = vst [vmem:[#allocation2 + $0x108] sm:$0xf] %v255
    %272 = vst [vmem:[#allocation2 + $0x12c] sm:$0xf] %v256
    %273 = vst [vmem:[#allocation2 + $0x150] sm:$0xf] %v257
    %274 = vst [vmem:[#allocation2 + $0x174] sm:$0xf] %v258
    %275 = vst [vmem:[#allocation2 + $0x198] sm:$0xf] %v259
    %276 = vst [vmem:[#allocation2 + $0x1bc] sm:$0xf] %v260
    %277 = vst [vmem:[#allocation2 + $0x1e0] sm:$0xf] %v261
    %278 = vst [vmem:[#allocation2 + $0x204] sm:$0xf] %v262
    %279 = vst [vmem:[#allocation2 + $0x228] sm:$0xf] %v263
    %v280 = vpack.c.bf16 %v36, %v36
    %v281 = vpack.c.bf16 %v37, %v37
    %v282 = vpack.c.bf16 %v38, %v38
    %v283 = vpack.c.bf16 %v39, %v39
    %v284 = vpack.c.bf16 %v40, %v40
    %v285 = vpack.c.bf16 %v41, %v41
    %v286 = vpack.c.bf16 %v42, %v42
    %v287 = vpack.c.bf16 %v43, %v43
    %v288 = vpack.c.bf16 %v44, %v44
    %v289 = vpack.c.bf16 %v45, %v45
    %v290 = vpack.c.bf16 %v46, %v46
    %v291 = vpack.c.bf16 %v47, %v47
    %v292 = vpack.c.bf16 %v48, %v48
    %v293 = vpack.c.bf16 %v49, %v49
    %v294 = vpack.c.bf16 %v50, %v50
    %v295 = vpack.c.bf16 %v51, %v51
    %296 = vst [vmem:[#allocation2 + $0x10] sm:$0xf] %v280
    %297 = vst [vmem:[#allocation2 + $0x34] sm:$0xf] %v281
    %298 = vst [vmem:[#allocation2 + $0x58] sm:$0xf] %v282
    %299 = vst [vmem:[#allocation2 + $0x7c] sm:$0xf] %v283
    %300 = vst [vmem:[#allocation2 + $0xa0] sm:$0xf] %v284
    %301 = vst [vmem:[#allocation2 + $0xc4] sm:$0xf] %v285
    %302 = vst [vmem:[#allocation2 + $0xe8] sm:$0xf] %v286
    %303 = vst [vmem:[#allocation2 + $0x10c] sm:$0xf] %v287
    %304 = vst [vmem:[#allocation2 + $0x130] sm:$0xf] %v288
    %305 = vst [vmem:[#allocation2 + $0x154] sm:$0xf] %v289
    %306 = vst [vmem:[#allocation2 + $0x178] sm:$0xf] %v290
    %307 = vst [vmem:[#allocation2 + $0x19c] sm:$0xf] %v291
    %308 = vst [vmem:[#allocation2 + $0x1c0] sm:$0xf] %v292
    %309 = vst [vmem:[#allocation2 + $0x1e4] sm:$0xf] %v293
    %310 = vst [vmem:[#allocation2 + $0x208] sm:$0xf] %v294
    %311 = vst [vmem:[#allocation2 + $0x22c] sm:$0xf] %v295
    %v312 = vsel %vm35, %v68, 0.0
    %v313 = vsel %vm35, %v69, 0.0
    %v314 = vsel %vm35, %v70, 0.0
    %v315 = vsel %vm35, %v71, 0.0
    %v316 = vsel %vm35, %v72, 0.0
    %v317 = vsel %vm35, %v73, 0.0
    %v318 = vsel %vm35, %v74, 0.0
    %v319 = vsel %vm35, %v75, 0.0
    %v320 = vsel %vm35, %v76, 0.0
    %v321 = vsel %vm35, %v77, 0.0
    %v322 = vsel %vm35, %v78, 0.0
    %v323 = vsel %vm35, %v79, 0.0
    %v324 = vsel %vm35, %v80, 0.0
    %v325 = vsel %vm35, %v81, 0.0
    %v326 = vsel %vm35, %v82, 0.0
    %v327 = vsel %vm35, %v83, 0.0
    %v328 = vpack.c.bf16 %v312, %v312
    %v329 = vpack.c.bf16 %v313, %v313
    %v330 = vpack.c.bf16 %v314, %v314
    %v331 = vpack.c.bf16 %v315, %v315
    %v332 = vpack.c.bf16 %v316, %v316
    %v333 = vpack.c.bf16 %v317, %v317
    %v334 = vpack.c.bf16 %v318, %v318
    %v335 = vpack.c.bf16 %v319, %v319
    %v336 = vpack.c.bf16 %v320, %v320
    %v337 = vpack.c.bf16 %v321, %v321
    %v338 = vpack.c.bf16 %v322, %v322
    %v339 = vpack.c.bf16 %v323, %v323
    %v340 = vpack.c.bf16 %v324, %v324
    %v341 = vpack.c.bf16 %v325, %v325
    %v342 = vpack.c.bf16 %v326, %v326
    %v343 = vpack.c.bf16 %v327, %v327
    %344 = vst [vmem:[#allocation2 + $0x14] sm:$0xf] %v328
    %345 = vst [vmem:[#allocation2 + $0x38] sm:$0xf] %v329
    %346 = vst [vmem:[#allocation2 + $0x5c] sm:$0xf] %v330
    %347 = vst [vmem:[#allocation2 + $0x80] sm:$0xf] %v331
    %348 = vst [vmem:[#allocation2 + $0xa4] sm:$0xf] %v332
    %349 = vst [vmem:[#allocation2 + $0xc8] sm:$0xf] %v333
    %350 = vst [vmem:[#allocation2 + $0xec] sm:$0xf] %v334
    %351 = vst [vmem:[#allocation2 + $0x110] sm:$0xf] %v335
    %352 = vst [vmem:[#allocation2 + $0x134] sm:$0xf] %v336
    %353 = vst [vmem:[#allocation2 + $0x158] sm:$0xf] %v337
    %354 = vst [vmem:[#allocation2 + $0x17c] sm:$0xf] %v338
    %355 = vst [vmem:[#allocation2 + $0x1a0] sm:$0xf] %v339
    %356 = vst [vmem:[#allocation2 + $0x1c4] sm:$0xf] %v340
    %357 = vst [vmem:[#allocation2 + $0x1e8] sm:$0xf] %v341
    %358 = vst [vmem:[#allocation2 + $0x20c] sm:$0xf] %v342
    %359 = vst [vmem:[#allocation2 + $0x230] sm:$0xf] %v343
    %v360 = vsel %vm85, %v59, 0.0
    %v361 = vsel %vm84, %v60, 0.0
    %v362 = vsel %vm85, %v67, 0.0
    %v363 = vsel %vm84, %v52, 0.0
    %v364 = vpack.c.bf16 %v360, %v360
    %v365 = vpack.c.bf16 %v361, %v361
    %v366 = vpack.c.bf16 %v362, %v362
    %v367 = vpack.c.bf16 %v363, %v363
    %368 = vst [vmem:[#allocation2 + $0x18] sm:$0xf] %v104
    %369 = vst [vmem:[#allocation2 + $0x3c] sm:$0xf] %v105
    %370 = vst [vmem:[#allocation2 + $0x60] sm:$0xf] %v106
    %371 = vst [vmem:[#allocation2 + $0x84] sm:$0xf] %v107
    %372 = vst [vmem:[#allocation2 + $0xa8] sm:$0xf] %v108
    %373 = vst [vmem:[#allocation2 + $0xcc] sm:$0xf] %v109
    %374 = vst [vmem:[#allocation2 + $0xf0] sm:$0xf] %v364
    %375 = vst [vmem:[#allocation2 + $0x114] sm:$0xf] %v365
    %376 = vst [vmem:[#allocation2 + $0x138] sm:$0xf] %v112
    %377 = vst [vmem:[#allocation2 + $0x15c] sm:$0xf] %v113
    %378 = vst [vmem:[#allocation2 + $0x180] sm:$0xf] %v114
    %379 = vst [vmem:[#allocation2 + $0x1a4] sm:$0xf] %v115
    %380 = vst [vmem:[#allocation2 + $0x1c8] sm:$0xf] %v116
    %381 = vst [vmem:[#allocation2 + $0x1ec] sm:$0xf] %v117
    %382 = vst [vmem:[#allocation2 + $0x210] sm:$0xf] %v366
    %383 = vst [vmem:[#allocation2 + $0x234] sm:$0xf] %v367
    %v384 = vsel 1, %v43, 0.0
    %v385 = vsel 0, %v44, 0.0
    %v386 = vsel 1, %v51, 0.0
    %v387 = vsel 0, %v36, 0.0
    %v388 = vpack.c.bf16 %v384, %v384
    %v389 = vpack.c.bf16 %v385, %v385
    %v390 = vpack.c.bf16 %v386, %v386
    %v391 = vpack.c.bf16 %v387, %v387
    %392 = vst [vmem:[#allocation2 + $0x1c] sm:$0xf] %v152
    %393 = vst [vmem:[#allocation2 + $0x40] sm:$0xf] %v153
    %394 = vst [vmem:[#allocation2 + $0x64] sm:$0xf] %v154
    %395 = vst [vmem:[#allocation2 + $0x88] sm:$0xf] %v155
    %396 = vst [vmem:[#allocation2 + $0xac] sm:$0xf] %v156
    %397 = vst [vmem:[#allocation2 + $0xd0] sm:$0xf] %v157
    %398 = vst [vmem:[#allocation2 + $0xf4] sm:$0xf] %v388
    %399 = vst [vmem:[#allocation2 + $0x118] sm:$0xf] %v389
    %400 = vst [vmem:[#allocation2 + $0x13c] sm:$0xf] %v160
    %401 = vst [vmem:[#allocation2 + $0x160] sm:$0xf] %v161
    %402 = vst [vmem:[#allocation2 + $0x184] sm:$0xf] %v162
    %403 = vst [vmem:[#allocation2 + $0x1a8] sm:$0xf] %v163
    %404 = vst [vmem:[#allocation2 + $0x1cc] sm:$0xf] %v164
    %405 = vst [vmem:[#allocation2 + $0x1f0] sm:$0xf] %v165
    %406 = vst [vmem:[#allocation2 + $0x214] sm:$0xf] %v390
    %407 = vst [vmem:[#allocation2 + $0x238] sm:$0xf] %v391
    %v408 = vsel %vm183, %v75, 0.0
    %v409 = vsel %vm182, %v76, 0.0
    %v410 = vsel %vm183, %v83, 0.0
    %v411 = vsel %vm182, %v68, 0.0
    %v412 = vpack.c.bf16 %v408, %v408
    %v413 = vpack.c.bf16 %v409, %v409
    %v414 = vpack.c.bf16 %v410, %v410
    %v415 = vpack.c.bf16 %v411, %v411
    %416 = vst [vmem:[#allocation2 + $0x20] sm:$0xf] %v202
    %417 = vst [vmem:[#allocation2 + $0x44] sm:$0xf] %v203
    %418 = vst [vmem:[#allocation2 + $0x68] sm:$0xf] %v204
    %419 = vst [vmem:[#allocation2 + $0x8c] sm:$0xf] %v205
    %420 = vst [vmem:[#allocation2 + $0xb0] sm:$0xf] %v206
    %421 = vst [vmem:[#allocation2 + $0xd4] sm:$0xf] %v207
    %422 = vst [vmem:[#allocation2 + $0xf8] sm:$0xf] %v412
    %423 = vst [vmem:[#allocation2 + $0x11c] sm:$0xf] %v413
    %424 = vst [vmem:[#allocation2 + $0x140] sm:$0xf] %v210
    %425 = vst [vmem:[#allocation2 + $0x164] sm:$0xf] %v211
    %426 = vst [vmem:[#allocation2 + $0x188] sm:$0xf] %v212
    %427 = vst [vmem:[#allocation2 + $0x1ac] sm:$0xf] %v213
    %428 = vst [vmem:[#allocation2 + $0x1d0] sm:$0xf] %v214
    %429 = vst [vmem:[#allocation2 + $0x1f4] sm:$0xf] %v215
    %430 = vst [vmem:[#allocation2 + $0x218] sm:$0xf] %v414
    %431 = vst [vmem:[#allocation2 + $0x23c] sm:$0xf] %v415
    %v432 = vld [vmem:[#allocation2] sm:$0xff]
    %v433 = vld [vmem:[#allocation2 + $0x8] sm:$0xff]
    %v434 = vld [vmem:[#allocation2 + $0x10] sm:$0xff]
    %v435 = vld [vmem:[#allocation2 + $0x18] sm:$0xff]
    %v436 = vld [vmem:[#allocation2 + $0x20] sm:$0xf]
    %v437 = vld [vmem:[#allocation2 + $0x24] sm:$0xff]
    %v438 = vld [vmem:[#allocation2 + $0x2c] sm:$0xff]
    %v439 = vld [vmem:[#allocation2 + $0x34] sm:$0xff]
    %v440 = vld [vmem:[#allocation2 + $0x3c] sm:$0xff]
    %v441 = vld [vmem:[#allocation2 + $0x44] sm:$0xf]
    %v442 = vld [vmem:[#allocation2 + $0x48] sm:$0xff]
    %v443 = vld [vmem:[#allocation2 + $0x50] sm:$0xff]
    %v444 = vld [vmem:[#allocation2 + $0x58] sm:$0xff]
    %v445 = vld [vmem:[#allocation2 + $0x60] sm:$0xff]
    %v446 = vld [vmem:[#allocation2 + $0x68] sm:$0xf]
    %v447 = vld [vmem:[#allocation2 + $0x6c] sm:$0xff]
    %v448 = vld [vmem:[#allocation2 + $0x74] sm:$0xff]
    %v449 = vld [vmem:[#allocation2 + $0x7c] sm:$0xff]
    %v450 = vld [vmem:[#allocation2 + $0x84] sm:$0xff]
    %v451 = vld [vmem:[#allocation2 + $0x8c] sm:$0xf]
    %v452 = vld [vmem:[#allocation2 + $0x90] sm:$0xff]
    %v453 = vld [vmem:[#allocation2 + $0x98] sm:$0xff]
    %v454 = vld [vmem:[#allocation2 + $0xa0] sm:$0xff]
    %v455 = vld [vmem:[#allocation2 + $0xa8] sm:$0xff]
    %v456 = vld [vmem:[#allocation2 + $0xb0] sm:$0xf]
    %v457 = vld [vmem:[#allocation2 + $0xb4] sm:$0xff]
    %v458 = vld [vmem:[#allocation2 + $0xbc] sm:$0xff]
    %v459 = vld [vmem:[#allocation2 + $0xc4] sm:$0xff]
    %v460 = vld [vmem:[#allocation2 + $0xcc] sm:$0xff]
    %v461 = vld [vmem:[#allocation2 + $0xd4] sm:$0xf]
    %v462 = vld [vmem:[#allocation2 + $0xd8] sm:$0xff]
    %v463 = vld [vmem:[#allocation2 + $0xe0] sm:$0xff]
    %v464 = vld [vmem:[#allocation2 + $0xe8] sm:$0xff]
    %v465 = vld [vmem:[#allocation2 + $0xf0] sm:$0xff]
    %v466 = vld [vmem:[#allocation2 + $0xf8] sm:$0xf]
    %v467 = vld [vmem:[#allocation2 + $0xfc] sm:$0xff]
    %v468 = vld [vmem:[#allocation2 + $0x104] sm:$0xff]
    %v469 = vld [vmem:[#allocation2 + $0x10c] sm:$0xff]
    %v470 = vld [vmem:[#allocation2 + $0x114] sm:$0xff]
    %v471 = vld [vmem:[#allocation2 + $0x11c] sm:$0xf]
    %v472 = vld [vmem:[#allocation2 + $0x120] sm:$0xff]
    %v473 = vld [vmem:[#allocation2 + $0x128] sm:$0xff]
    %v474 = vld [vmem:[#allocation2 + $0x130] sm:$0xff]
    %v475 = vld [vmem:[#allocation2 + $0x138] sm:$0xff]
    %v476 = vld [vmem:[#allocation2 + $0x140] sm:$0xf]
    %v477 = vld [vmem:[#allocation2 + $0x144] sm:$0xff]
    %v478 = vld [vmem:[#allocation2 + $0x14c] sm:$0xff]
    %v479 = vld [vmem:[#allocation2 + $0x154] sm:$0xff]
    %v480 = vld [vmem:[#allocation2 + $0x15c] sm:$0xff]
    %v481 = vld [vmem:[#allocation2 + $0x164] sm:$0xf]
    %v482 = vld [vmem:[#allocation2 + $0x168] sm:$0xff]
    %v483 = vld [vmem:[#allocation2 + $0x170] sm:$0xff]
    %v484 = vld [vmem:[#allocation2 + $0x178] sm:$0xff]
    %v485 = vld [vmem:[#allocation2 + $0x180] sm:$0xff]
    %v486 = vld [vmem:[#allocation2 + $0x188] sm:$0xf]
    %v487 = vld [vmem:[#allocation2 + $0x18c] sm:$0xff]
    %v488 = vld [vmem:[#allocation2 + $0x194] sm:$0xff]
    %v489 = vld [vmem:[#allocation2 + $0x19c] sm:$0xff]
    %v490 = vld [vmem:[#allocation2 + $0x1a4] sm:$0xff]
    %v491 = vld [vmem:[#allocation2 + $0x1ac] sm:$0xf]
    %v492 = vld [vmem:[#allocation2 + $0x1b0] sm:$0xff]
    %v493 = vld [vmem:[#allocation2 + $0x1b8] sm:$0xff]
    %v494 = vld [vmem:[#allocation2 + $0x1c0] sm:$0xff]
    %v495 = vld [vmem:[#allocation2 + $0x1c8] sm:$0xff]
    %v496 = vld [vmem:[#allocation2 + $0x1d0] sm:$0xf]
    %v497 = vld [vmem:[#allocation2 + $0x1d4] sm:$0xff]
    %v498 = vld [vmem:[#allocation2 + $0x1dc] sm:$0xff]
    %v499 = vld [vmem:[#allocation2 + $0x1e4] sm:$0xff]
    %v500 = vld [vmem:[#allocation2 + $0x1ec] sm:$0xff]
    %v501 = vld [vmem:[#allocation2 + $0x1f4] sm:$0xf]
    %v502 = vld [vmem:[#allocation2 + $0x1f8] sm:$0xff]
    %v503 = vld [vmem:[#allocation2 + $0x200] sm:$0xff]
    %v504 = vld [vmem:[#allocation2 + $0x208] sm:$0xff]
    %v505 = vld [vmem:[#allocation2 + $0x210] sm:$0xff]
    %v506 = vld [vmem:[#allocation2 + $0x218] sm:$0xf]
    %v507 = vld [vmem:[#allocation2 + $0x21c] sm:$0xff]
    %v508 = vld [vmem:[#allocation2 + $0x224] sm:$0xff]
    %v509 = vld [vmem:[#allocation2 + $0x22c] sm:$0xff]
    %v510 = vld [vmem:[#allocation2 + $0x234] sm:$0xff]
    %v511 = vld [vmem:[#allocation2 + $0x23c] sm:$0xf]
    %v512 = vld [vmem:[%s1] sm:$0xf]
    %v513 = vld [vmem:[%s1 + $0x4] sm:$0xf]
    %v514 = vld [vmem:[%s1 + $0x8] sm:$0xf]
    %v515 = vld [vmem:[%s1 + $0xc] sm:$0xf]
    %v516 = vld [vmem:[%s1 + $0x10] sm:$0xf]
    %v517 = vld [vmem:[%s1 + $0x14] sm:$0xf]
    %v518 = vld [vmem:[%s1 + $0x18] sm:$0xf]
    %v519 = vld [vmem:[%s1 + $0x1c] sm:$0xf]
    %v520 = vld [vmem:[%s1 + $0x20] sm:$0xf]
    %v521 = vld [vmem:[%s1 + $0x24] sm:$0xf]
    %v522 = vld [vmem:[%s1 + $0x28] sm:$0xf]
    %v523 = vld [vmem:[%s1 + $0x2c] sm:$0xf]
    %v524 = vld [vmem:[%s1 + $0x30] sm:$0xf]
    %v525 = vld [vmem:[%s1 + $0x34] sm:$0xf]
    %v526 = vld [vmem:[%s1 + $0x38] sm:$0xf]
    %v527 = vld [vmem:[%s1 + $0x3c] sm:$0xf]
    %v528 = vld [vmem:[%s1 + $0x40] sm:$0xf]
    %v529 = vld [vmem:[%s1 + $0x44] sm:$0xf]
    %v530 = vld [vmem:[%s1 + $0x48] sm:$0xf]
    %v531 = vld [vmem:[%s1 + $0x4c] sm:$0xf]
    %v532 = vld [vmem:[%s1 + $0x50] sm:$0xf]
    %v533 = vld [vmem:[%s1 + $0x54] sm:$0xf]
    %v534 = vld [vmem:[%s1 + $0x58] sm:$0xf]
    %v535 = vld [vmem:[%s1 + $0x5c] sm:$0xf]
    %v536 = vld [vmem:[%s1 + $0x60] sm:$0xf]
    %v537 = vld [vmem:[%s1 + $0x64] sm:$0xf]
    %v538 = vld [vmem:[%s1 + $0x68] sm:$0xf]
    %v539 = vld [vmem:[%s1 + $0x6c] sm:$0xf]
    %v540 = vld [vmem:[%s1 + $0x70] sm:$0xf]
    %v541 = vld [vmem:[%s1 + $0x74] sm:$0xf]
    %v542 = vld [vmem:[%s1 + $0x78] sm:$0xf]
    %v543 = vld [vmem:[%s1 + $0x7c] sm:$0xf]
    %v544 = vld [vmem:[%s1 + $0x80] sm:$0xf]
    %v545 = vld [vmem:[%s1 + $0x84] sm:$0xf]
    %v546 = vld [vmem:[%s1 + $0x88] sm:$0xf]
    %v547 = vld [vmem:[%s1 + $0x8c] sm:$0xf]
    %v548 = vld [vmem:[%s1 + $0x90] sm:$0xf]
    %v549 = vld [vmem:[%s1 + $0x94] sm:$0xf]
    %v550 = vld [vmem:[%s1 + $0x98] sm:$0xf]
    %v551 = vld [vmem:[%s1 + $0x9c] sm:$0xf]
    %v552 = vld [vmem:[%s1 + $0xa0] sm:$0xf]
    %v553 = vld [vmem:[%s1 + $0xa4] sm:$0xf]
    %v554 = vld [vmem:[%s1 + $0xa8] sm:$0xf]
    %v555 = vld [vmem:[%s1 + $0xac] sm:$0xf]
    %v556 = vld [vmem:[%s1 + $0xb0] sm:$0xf]
    %v557 = vld [vmem:[%s1 + $0xb4] sm:$0xf]
    %v558 = vld [vmem:[%s1 + $0xb8] sm:$0xf]
    %v559 = vld [vmem:[%s1 + $0xbc] sm:$0xf]
    %v560 = vld [vmem:[%s1 + $0xc0] sm:$0xf]
    %v561 = vld [vmem:[%s1 + $0xc4] sm:$0xf]
    %v562 = vld [vmem:[%s1 + $0xc8] sm:$0xf]
    %v563 = vld [vmem:[%s1 + $0xcc] sm:$0xf]
    %v564 = vld [vmem:[%s1 + $0xd0] sm:$0xf]
    %v565 = vld [vmem:[%s1 + $0xd4] sm:$0xf]
    %v566 = vld [vmem:[%s1 + $0xd8] sm:$0xf]
    %v567 = vld [vmem:[%s1 + $0xdc] sm:$0xf]
    %v568 = vld [vmem:[%s1 + $0xe0] sm:$0xf]
    %v569 = vld [vmem:[%s1 + $0xe4] sm:$0xf]
    %v570 = vld [vmem:[%s1 + $0xe8] sm:$0xf]
    %v571 = vld [vmem:[%s1 + $0xec] sm:$0xf]
    %v572 = vld [vmem:[%s1 + $0xf0] sm:$0xf]
    %v573 = vld [vmem:[%s1 + $0xf4] sm:$0xf]
    %v574 = vld [vmem:[%s1 + $0xf8] sm:$0xf]
    %v575 = vld [vmem:[%s1 + $0xfc] sm:$0xf]
    %v576 = vld [vmem:[%s1 + $0x100] sm:$0xf]
    %v577 = vld [vmem:[%s1 + $0x104] sm:$0xf]
    %v578 = vld [vmem:[%s1 + $0x108] sm:$0xf]
    %v579 = vld [vmem:[%s1 + $0x10c] sm:$0xf]
    %v580 = vld [vmem:[%s1 + $0x110] sm:$0xf]
    %v581 = vld [vmem:[%s1 + $0x114] sm:$0xf]
    %v582 = vld [vmem:[%s1 + $0x118] sm:$0xf]
    %v583 = vld [vmem:[%s1 + $0x11c] sm:$0xf]
    %v584 = vld [vmem:[%s1 + $0x120] sm:$0xf]
    %v585 = vld [vmem:[%s1 + $0x124] sm:$0xf]
    %v586 = vld [vmem:[%s1 + $0x128] sm:$0xf]
    %v587 = vld [vmem:[%s1 + $0x12c] sm:$0xf]
    %v588 = vld [vmem:[%s1 + $0x130] sm:$0xf]
    %v589 = vld [vmem:[%s1 + $0x134] sm:$0xf]
    %v590 = vld [vmem:[%s1 + $0x138] sm:$0xf]
    %v591 = vld [vmem:[%s1 + $0x13c] sm:$0xf]
    %v592 = vld [vmem:[%s1 + $0x140] sm:$0xf]
    %v593 = vld [vmem:[%s1 + $0x144] sm:$0xf]
    %v594 = vld [vmem:[%s1 + $0x148] sm:$0xf]
    %v595 = vld [vmem:[%s1 + $0x14c] sm:$0xf]
    %v596 = vld [vmem:[%s1 + $0x150] sm:$0xf]
    %v597 = vld [vmem:[%s1 + $0x154] sm:$0xf]
    %v598 = vld [vmem:[%s1 + $0x158] sm:$0xf]
    %v599 = vld [vmem:[%s1 + $0x15c] sm:$0xf]
    %v600 = vld [vmem:[%s1 + $0x160] sm:$0xf]
    %v601 = vld [vmem:[%s1 + $0x164] sm:$0xf]
    %v602 = vld [vmem:[%s1 + $0x168] sm:$0xf]
    %v603 = vld [vmem:[%s1 + $0x16c] sm:$0xf]
    %v604 = vld [vmem:[%s1 + $0x170] sm:$0xf]
    %v605 = vld [vmem:[%s1 + $0x174] sm:$0xf]
    %v606 = vld [vmem:[%s1 + $0x178] sm:$0xf]
    %v607 = vld [vmem:[%s1 + $0x17c] sm:$0xf]
    %v608 = vld [vmem:[%s1 + $0x180] sm:$0xf]
    %v609 = vld [vmem:[%s1 + $0x184] sm:$0xf]
    %v610 = vld [vmem:[%s1 + $0x188] sm:$0xf]
    %v611 = vld [vmem:[%s1 + $0x18c] sm:$0xf]
    %v612 = vld [vmem:[%s1 + $0x190] sm:$0xf]
    %v613 = vld [vmem:[%s1 + $0x194] sm:$0xf]
    %v614 = vld [vmem:[%s1 + $0x198] sm:$0xf]
    %v615 = vld [vmem:[%s1 + $0x19c] sm:$0xf]
    %v616 = vld [vmem:[%s1 + $0x1a0] sm:$0xf]
    %v617 = vld [vmem:[%s1 + $0x1a4] sm:$0xf]
    %v618 = vld [vmem:[%s1 + $0x1a8] sm:$0xf]
    %v619 = vld [vmem:[%s1 + $0x1ac] sm:$0xf]
    %v620 = vld [vmem:[%s1 + $0x1b0] sm:$0xf]
    %v621 = vld [vmem:[%s1 + $0x1b4] sm:$0xf]
    %v622 = vld [vmem:[%s1 + $0x1b8] sm:$0xf]
    %v623 = vld [vmem:[%s1 + $0x1bc] sm:$0xf]
    %v624 = vld [vmem:[%s1 + $0x1c0] sm:$0xf]
    %v625 = vld [vmem:[%s1 + $0x1c4] sm:$0xf]
    %v626 = vld [vmem:[%s1 + $0x1c8] sm:$0xf]
    %v627 = vld [vmem:[%s1 + $0x1cc] sm:$0xf]
    %v628 = vld [vmem:[%s1 + $0x1d0] sm:$0xf]
    %v629 = vld [vmem:[%s1 + $0x1d4] sm:$0xf]
    %v630 = vld [vmem:[%s1 + $0x1d8] sm:$0xf]
    %v631 = vld [vmem:[%s1 + $0x1dc] sm:$0xf]
    %v632 = vld [vmem:[%s1 + $0x1e0] sm:$0xf]
    %v633 = vld [vmem:[%s1 + $0x1e4] sm:$0xf]
    %v634 = vld [vmem:[%s1 + $0x1e8] sm:$0xf]
    %v635 = vld [vmem:[%s1 + $0x1ec] sm:$0xf]
    %v636 = vld [vmem:[%s1 + $0x1f0] sm:$0xf]
    %v637 = vld [vmem:[%s1 + $0x1f4] sm:$0xf]
    %v638 = vld [vmem:[%s1 + $0x1f8] sm:$0xf]
    %v639 = vld [vmem:[%s1 + $0x1fc] sm:$0xf]
    %v640 = vld [vmem:[%s1 + $0x200] sm:$0xf]
    %v641 = vld [vmem:[%s1 + $0x204] sm:$0xf]
    %v642 = vld [vmem:[%s1 + $0x208] sm:$0xf]
    %v643 = vld [vmem:[%s1 + $0x20c] sm:$0xf]
    %v644 = vld [vmem:[%s1 + $0x210] sm:$0xf]
    %v645 = vld [vmem:[%s1 + $0x214] sm:$0xf]
    %v646 = vld [vmem:[%s1 + $0x218] sm:$0xf]
    %v647 = vld [vmem:[%s1 + $0x21c] sm:$0xf]
    %v648 = vld [vmem:[%s1 + $0x220] sm:$0xf]
    %v649 = vld [vmem:[%s1 + $0x224] sm:$0xf]
    %v650 = vld [vmem:[%s1 + $0x228] sm:$0xf]
    %v651 = vld [vmem:[%s1 + $0x22c] sm:$0xf]
    %v652 = vld [vmem:[%s1 + $0x230] sm:$0xf]
    %v653 = vld [vmem:[%s1 + $0x234] sm:$0xf]
    %v654 = vld [vmem:[%s1 + $0x238] sm:$0xf]
    %v655 = vld [vmem:[%s1 + $0x23c] sm:$0xf]
    %v736 = vunpack.c.l.b16 %v432
    %v737 = vunpack.c.h.b16 %v432
    %v738 = vunpack.c.l.b16 %v433
    %v739 = vunpack.c.h.b16 %v433
    %v740 = vunpack.c.l.b16 %v434
    %v741 = vunpack.c.h.b16 %v434
    %v742 = vunpack.c.l.b16 %v435
    %v743 = vunpack.c.h.b16 %v435
    %v744 = vunpack.c.l.b16 %v436
    %v745 = vunpack.c.l.b16 %v437
    %v746 = vunpack.c.h.b16 %v437
    %v747 = vunpack.c.l.b16 %v438
    %v748 = vunpack.c.h.b16 %v438
    %v749 = vunpack.c.l.b16 %v439
    %v750 = vunpack.c.h.b16 %v439
    %v751 = vunpack.c.l.b16 %v440
    %v752 = vunpack.c.h.b16 %v440
    %v753 = vunpack.c.l.b16 %v441
    %v754 = vunpack.c.l.b16 %v442
    %v755 = vunpack.c.h.b16 %v442
    %v756 = vunpack.c.l.b16 %v443
    %v757 = vunpack.c.h.b16 %v443
    %v758 = vunpack.c.l.b16 %v444
    %v759 = vunpack.c.h.b16 %v444
    %v760 = vunpack.c.l.b16 %v445
    %v761 = vunpack.c.h.b16 %v445
    %v762 = vunpack.c.l.b16 %v446
    %v763 = vunpack.c.l.b16 %v447
    %v764 = vunpack.c.h.b16 %v447
    %v765 = vunpack.c.l.b16 %v448
    %v766 = vunpack.c.h.b16 %v448
    %v767 = vunpack.c.l.b16 %v449
    %v768 = vunpack.c.h.b16 %v449
    %v769 = vunpack.c.l.b16 %v450
    %v770 = vunpack.c.h.b16 %v450
    %v771 = vunpack.c.l.b16 %v451
    %v772 = vunpack.c.l.b16 %v452
    %v773 = vunpack.c.h.b16 %v452
    %v774 = vunpack.c.l.b16 %v453
    %v775 = vunpack.c.h.b16 %v453
    %v776 = vunpack.c.l.b16 %v454
    %v777 = vunpack.c.h.b16 %v454
    %v778 = vunpack.c.l.b16 %v455
    %v779 = vunpack.c.h.b16 %v455
    %v780 = vunpack.c.l.b16 %v456
    %v781 = vunpack.c.l.b16 %v457
    %v782 = vunpack.c.h.b16 %v457
    %v783 = vunpack.c.l.b16 %v458
    %v784 = vunpack.c.h.b16 %v458
    %v785 = vunpack.c.l.b16 %v459
    %v786 = vunpack.c.h.b16 %v459
    %v787 = vunpack.c.l.b16 %v460
    %v788 = vunpack.c.h.b16 %v460
    %v789 = vunpack.c.l.b16 %v461
    %v790 = vunpack.c.l.b16 %v462
    %v791 = vunpack.c.h.b16 %v462
    %v792 = vunpack.c.l.b16 %v463
    %v793 = vunpack.c.h.b16 %v463
    %v794 = vunpack.c.l.b16 %v464
    %v795 = vunpack.c.h.b16 %v464
    %v796 = vunpack.c.l.b16 %v465
    %v797 = vunpack.c.h.b16 %v465
    %v798 = vunpack.c.l.b16 %v466
    %v799 = vunpack.c.l.b16 %v467
    %v800 = vunpack.c.h.b16 %v467
    %v801 = vunpack.c.l.b16 %v468
    %v802 = vunpack.c.h.b16 %v468
    %v803 = vunpack.c.l.b16 %v469
    %v804 = vunpack.c.h.b16 %v469
    %v805 = vunpack.c.l.b16 %v470
    %v806 = vunpack.c.h.b16 %v470
    %v807 = vunpack.c.l.b16 %v471
    %v808 = vunpack.c.l.b16 %v472
    %v809 = vunpack.c.h.b16 %v472
    %v810 = vunpack.c.l.b16 %v473
    %v811 = vunpack.c.h.b16 %v473
    %v812 = vunpack.c.l.b16 %v474
    %v813 = vunpack.c.h.b16 %v474
    %v814 = vunpack.c.l.b16 %v475
    %v815 = vunpack.c.h.b16 %v475
    %v816 = vunpack.c.l.b16 %v476
    %v817 = vunpack.c.l.b16 %v477
    %v818 = vunpack.c.h.b16 %v477
    %v819 = vunpack.c.l.b16 %v478
    %v820 = vunpack.c.h.b16 %v478
    %v821 = vunpack.c.l.b16 %v479
    %v822 = vunpack.c.h.b16 %v479
    %v823 = vunpack.c.l.b16 %v480
    %v824 = vunpack.c.h.b16 %v480
    %v825 = vunpack.c.l.b16 %v481
    %v826 = vunpack.c.l.b16 %v482
    %v827 = vunpack.c.h.b16 %v482
    %v828 = vunpack.c.l.b16 %v483
    %v829 = vunpack.c.h.b16 %v483
    %v830 = vunpack.c.l.b16 %v484
    %v831 = vunpack.c.h.b16 %v484
    %v832 = vunpack.c.l.b16 %v485
    %v833 = vunpack.c.h.b16 %v485
    %v834 = vunpack.c.l.b16 %v486
    %v835 = vunpack.c.l.b16 %v487
    %v836 = vunpack.c.h.b16 %v487
    %v837 = vunpack.c.l.b16 %v488
    %v838 = vunpack.c.h.b16 %v488
    %v839 = vunpack.c.l.b16 %v489
    %v840 = vunpack.c.h.b16 %v489
    %v841 = vunpack.c.l.b16 %v490
    %v842 = vunpack.c.h.b16 %v490
    %v843 = vunpack.c.l.b16 %v491
    %v844 = vunpack.c.l.b16 %v492
    %v845 = vunpack.c.h.b16 %v492
    %v846 = vunpack.c.l.b16 %v493
    %v847 = vunpack.c.h.b16 %v493
    %v848 = vunpack.c.l.b16 %v494
    %v849 = vunpack.c.h.b16 %v494
    %v850 = vunpack.c.l.b16 %v495
    %v851 = vunpack.c.h.b16 %v495
    %v852 = vunpack.c.l.b16 %v496
    %v853 = vunpack.c.l.b16 %v497
    %v854 = vunpack.c.h.b16 %v497
    %v855 = vunpack.c.l.b16 %v498
    %v856 = vunpack.c.h.b16 %v498
    %v857 = vunpack.c.l.b16 %v499
    %v858 = vunpack.c.h.b16 %v499
    %v859 = vunpack.c.l.b16 %v500
    %v860 = vunpack.c.h.b16 %v500
    %v861 = vunpack.c.l.b16 %v501
    %v862 = vunpack.c.l.b16 %v502
    %v863 = vunpack.c.h.b16 %v502
    %v864 = vunpack.c.l.b16 %v503
    %v865 = vunpack.c.h.b16 %v503
    %v866 = vunpack.c.l.b16 %v504
    %v867 = vunpack.c.h.b16 %v504
    %v868 = vunpack.c.l.b16 %v505
    %v869 = vunpack.c.h.b16 %v505
    %v870 = vunpack.c.l.b16 %v506
    %v871 = vunpack.c.l.b16 %v507
    %v872 = vunpack.c.h.b16 %v507
    %v873 = vunpack.c.l.b16 %v508
    %v874 = vunpack.c.h.b16 %v508
    %v875 = vunpack.c.l.b16 %v509
    %v876 = vunpack.c.h.b16 %v509
    %v877 = vunpack.c.l.b16 %v510
    %v878 = vunpack.c.h.b16 %v510
    %v879 = vunpack.c.l.b16 %v511
    %v880 = vpack.c.b16 %v745, %v736
    %v881 = vpack.c.b16 %v746, %v737
    %v882 = vpack.c.b16 %v747, %v738
    %v883 = vpack.c.b16 %v748, %v739
    %v884 = vpack.c.b16 %v749, %v740
    %v885 = vpack.c.b16 %v750, %v741
    %v886 = vpack.c.b16 %v751, %v742
    %v887 = vpack.c.b16 %v752, %v743
    %v888 = vpack.c.b16 %v753, %v744
    %v889 = vpack.c.b16 %v763, %v754
    %v890 = vpack.c.b16 %v764, %v755
    %v891 = vpack.c.b16 %v765, %v756
    %v892 = vpack.c.b16 %v766, %v757
    %v893 = vpack.c.b16 %v767, %v758
    %v894 = vpack.c.b16 %v768, %v759
    %v895 = vpack.c.b16 %v769, %v760
    %v896 = vpack.c.b16 %v770, %v761
    %v897 = vpack.c.b16 %v771, %v762
    %v898 = vpack.c.b16 %v781, %v772
    %v899 = vpack.c.b16 %v782, %v773
    %v900 = vpack.c.b16 %v783, %v774
    %v901 = vpack.c.b16 %v784, %v775
    %v902 = vpack.c.b16 %v785, %v776
    %v903 = vpack.c.b16 %v786, %v777
    %v904 = vpack.c.b16 %v787, %v778
    %v905 = vpack.c.b16 %v788, %v779
    %v906 = vpack.c.b16 %v789, %v780
    %v907 = vpack.c.b16 %v799, %v790
    %v908 = vpack.c.b16 %v800, %v791
    %v909 = vpack.c.b16 %v801, %v792
    %v910 = vpack.c.b16 %v802, %v793
    %v911 = vpack.c.b16 %v803, %v794
    %v912 = vpack.c.b16 %v804, %v795
    %v913 = vpack.c.b16 %v805, %v796
    %v914 = vpack.c.b16 %v806, %v797
    %v915 = vpack.c.b16 %v807, %v798
    %v916 = vpack.c.b16 %v817, %v808
    %v917 = vpack.c.b16 %v818, %v809
    %v918 = vpack.c.b16 %v819, %v810
    %v919 = vpack.c.b16 %v820, %v811
    %v920 = vpack.c.b16 %v821, %v812
    %v921 = vpack.c.b16 %v822, %v813
    %v922 = vpack.c.b16 %v823, %v814
    %v923 = vpack.c.b16 %v824, %v815
    %v924 = vpack.c.b16 %v825, %v816
    %v925 = vpack.c.b16 %v835, %v826
    %v926 = vpack.c.b16 %v836, %v827
    %v927 = vpack.c.b16 %v837, %v828
    %v928 = vpack.c.b16 %v838, %v829
    %v929 = vpack.c.b16 %v839, %v830
    %v930 = vpack.c.b16 %v840, %v831
    %v931 = vpack.c.b16 %v841, %v832
    %v932 = vpack.c.b16 %v842, %v833
    %v933 = vpack.c.b16 %v843, %v834
    %v934 = vpack.c.b16 %v853, %v844
    %v935 = vpack.c.b16 %v854, %v845
    %v936 = vpack.c.b16 %v855, %v846
    %v937 = vpack.c.b16 %v856, %v847
    %v938 = vpack.c.b16 %v857, %v848
    %v939 = vpack.c.b16 %v858, %v849
    %v940 = vpack.c.b16 %v859, %v850
    %v941 = vpack.c.b16 %v860, %v851
    %v942 = vpack.c.b16 %v861, %v852
    %v943 = vpack.c.b16 %v871, %v862
    %v944 = vpack.c.b16 %v872, %v863
    %v945 = vpack.c.b16 %v873, %v864
    %v946 = vpack.c.b16 %v874, %v865
    %v947 = vpack.c.b16 %v875, %v866
    %v948 = vpack.c.b16 %v876, %v867
    %v949 = vpack.c.b16 %v877, %v868
    %v950 = vpack.c.b16 %v878, %v869
    %v951 = vpack.c.b16 %v879, %v870
    %v1168 = vunpack.c.l.b16 %v512
    %v1169 = vunpack.c.l.b16 %v513
    %v1170 = vunpack.c.l.b16 %v514
    %v1171 = vunpack.c.l.b16 %v515
    %v1172 = vunpack.c.l.b16 %v516
    %v1173 = vunpack.c.l.b16 %v517
    %v1174 = vunpack.c.l.b16 %v518
    %v1175 = vunpack.c.l.b16 %v519
    %v1176 = vunpack.c.l.b16 %v520
    %v1177 = vunpack.c.l.b16 %v521
    %v1178 = vunpack.c.l.b16 %v522
    %v1179 = vunpack.c.l.b16 %v523
    %v1180 = vunpack.c.l.b16 %v524
    %v1181 = vunpack.c.l.b16 %v525
    %v1182 = vunpack.c.l.b16 %v526
    %v1183 = vunpack.c.l.b16 %v527
    %v1184 = vunpack.c.l.b16 %v528
    %v1185 = vunpack.c.l.b16 %v529
    %v1186 = vunpack.c.l.b16 %v530
    %v1187 = vunpack.c.l.b16 %v531
    %v1188 = vunpack.c.l.b16 %v532
    %v1189 = vunpack.c.l.b16 %v533
    %v1190 = vunpack.c.l.b16 %v534
    %v1191 = vunpack.c.l.b16 %v535
    %v1192 = vunpack.c.l.b16 %v536
    %v1193 = vunpack.c.l.b16 %v537
    %v1194 = vunpack.c.l.b16 %v538
    %v1195 = vunpack.c.l.b16 %v539
    %v1196 = vunpack.c.l.b16 %v540
    %v1197 = vunpack.c.l.b16 %v541
    %v1198 = vunpack.c.l.b16 %v542
    %v1199 = vunpack.c.l.b16 %v543
    %v1200 = vunpack.c.l.b16 %v544
    %v1201 = vunpack.c.l.b16 %v545
    %v1202 = vunpack.c.l.b16 %v546
    %v1203 = vunpack.c.l.b16 %v547
    %v1204 = vunpack.c.l.b16 %v548
    %v1205 = vunpack.c.l.b16 %v549
    %v1206 = vunpack.c.l.b16 %v550
    %v1207 = vunpack.c.l.b16 %v551
    %v1208 = vunpack.c.l.b16 %v552
    %v1209 = vunpack.c.l.b16 %v553
    %v1210 = vunpack.c.l.b16 %v554
    %v1211 = vunpack.c.l.b16 %v555
    %v1212 = vunpack.c.l.b16 %v556
    %v1213 = vunpack.c.l.b16 %v557
    %v1214 = vunpack.c.l.b16 %v558
    %v1215 = vunpack.c.l.b16 %v559
    %v1216 = vunpack.c.l.b16 %v560
    %v1217 = vunpack.c.l.b16 %v561
    %v1218 = vunpack.c.l.b16 %v562
    %v1219 = vunpack.c.l.b16 %v563
    %v1220 = vunpack.c.l.b16 %v564
    %v1221 = vunpack.c.l.b16 %v565
    %v1222 = vunpack.c.l.b16 %v566
    %v1223 = vunpack.c.l.b16 %v567
    %v1224 = vunpack.c.l.b16 %v568
    %v1225 = vunpack.c.l.b16 %v569
    %v1226 = vunpack.c.l.b16 %v570
    %v1227 = vunpack.c.l.b16 %v571
    %v1228 = vunpack.c.l.b16 %v572
    %v1229 = vunpack.c.l.b16 %v573
    %v1230 = vunpack.c.l.b16 %v574
    %v1231 = vunpack.c.l.b16 %v575
    %v1232 = vunpack.c.l.b16 %v576
    %v1233 = vunpack.c.l.b16 %v577
    %v1234 = vunpack.c.l.b16 %v578
    %v1235 = vunpack.c.l.b16 %v579
    %v1236 = vunpack.c.l.b16 %v580
    %v1237 = vunpack.c.l.b16 %v581
    %v1238 = vunpack.c.l.b16 %v582
    %v1239 = vunpack.c.l.b16 %v583
    %v1240 = vunpack.c.l.b16 %v584
    %v1241 = vunpack.c.l.b16 %v585
    %v1242 = vunpack.c.l.b16 %v586
    %v1243 = vunpack.c.l.b16 %v587
    %v1244 = vunpack.c.l.b16 %v588
    %v1245 = vunpack.c.l.b16 %v589
    %v1246 = vunpack.c.l.b16 %v590
    %v1247 = vunpack.c.l.b16 %v591
    %v1248 = vunpack.c.l.b16 %v592
    %v1249 = vunpack.c.l.b16 %v593
    %v1250 = vunpack.c.l.b16 %v594
    %v1251 = vunpack.c.l.b16 %v595
    %v1252 = vunpack.c.l.b16 %v596
    %v1253 = vunpack.c.l.b16 %v597
    %v1254 = vunpack.c.l.b16 %v598
    %v1255 = vunpack.c.l.b16 %v599
    %v1256 = vunpack.c.l.b16 %v600
    %v1257 = vunpack.c.l.b16 %v601
    %v1258 = vunpack.c.l.b16 %v602
    %v1259 = vunpack.c.l.b16 %v603
    %v1260 = vunpack.c.l.b16 %v604
    %v1261 = vunpack.c.l.b16 %v605
    %v1262 = vunpack.c.l.b16 %v606
    %v1263 = vunpack.c.l.b16 %v607
    %v1264 = vunpack.c.l.b16 %v608
    %v1265 = vunpack.c.l.b16 %v609
    %v1266 = vunpack.c.l.b16 %v610
    %v1267 = vunpack.c.l.b16 %v611
    %v1268 = vunpack.c.l.b16 %v612
    %v1269 = vunpack.c.l.b16 %v613
    %v1270 = vunpack.c.l.b16 %v614
    %v1271 = vunpack.c.l.b16 %v615
    %v1272 = vunpack.c.l.b16 %v616
    %v1273 = vunpack.c.l.b16 %v617
    %v1274 = vunpack.c.l.b16 %v618
    %v1275 = vunpack.c.l.b16 %v619
    %v1276 = vunpack.c.l.b16 %v620
    %v1277 = vunpack.c.l.b16 %v621
    %v1278 = vunpack.c.l.b16 %v622
    %v1279 = vunpack.c.l.b16 %v623
    %v1280 = vunpack.c.l.b16 %v624
    %v1281 = vunpack.c.l.b16 %v625
    %v1282 = vunpack.c.l.b16 %v626
    %v1283 = vunpack.c.l.b16 %v627
    %v1284 = vunpack.c.l.b16 %v628
    %v1285 = vunpack.c.l.b16 %v629
    %v1286 = vunpack.c.l.b16 %v630
    %v1287 = vunpack.c.l.b16 %v631
    %v1288 = vunpack.c.l.b16 %v632
    %v1289 = vunpack.c.l.b16 %v633
    %v1290 = vunpack.c.l.b16 %v634
    %v1291 = vunpack.c.l.b16 %v635
    %v1292 = vunpack.c.l.b16 %v636
    %v1293 = vunpack.c.l.b16 %v637
    %v1294 = vunpack.c.l.b16 %v638
    %v1295 = vunpack.c.l.b16 %v639
    %v1296 = vunpack.c.l.b16 %v640
    %v1297 = vunpack.c.l.b16 %v641
    %v1298 = vunpack.c.l.b16 %v642
    %v1299 = vunpack.c.l.b16 %v643
    %v1300 = vunpack.c.l.b16 %v644
    %v1301 = vunpack.c.l.b16 %v645
    %v1302 = vunpack.c.l.b16 %v646
    %v1303 = vunpack.c.l.b16 %v647
    %v1304 = vunpack.c.l.b16 %v648
    %v1305 = vunpack.c.l.b16 %v649
    %v1306 = vunpack.c.l.b16 %v650
    %v1307 = vunpack.c.l.b16 %v651
    %v1308 = vunpack.c.l.b16 %v652
    %v1309 = vunpack.c.l.b16 %v653
    %v1310 = vunpack.c.l.b16 %v654
    %v1311 = vunpack.c.l.b16 %v655
    %v1312 = vpack.c.b16 %v1169, %v1168
    %v1313 = vpack.c.b16 %v1171, %v1170
    %v1314 = vpack.c.b16 %v1173, %v1172
    %v1315 = vpack.c.b16 %v1175, %v1174
    %v1316 = vpack.c.b16 %v1177, %v1176
    %v1317 = vpack.c.b16 %v1179, %v1178
    %v1318 = vpack.c.b16 %v1181, %v1180
    %v1319 = vpack.c.b16 %v1183, %v1182
    %v1320 = vpack.c.b16 %v1185, %v1184
    %v1321 = vpack.c.b16 %v1187, %v1186
    %v1322 = vpack.c.b16 %v1189, %v1188
    %v1323 = vpack.c.b16 %v1191, %v1190
    %v1324 = vpack.c.b16 %v1193, %v1192
    %v1325 = vpack.c.b16 %v1195, %v1194
    %v1326 = vpack.c.b16 %v1197, %v1196
    %v1327 = vpack.c.b16 %v1199, %v1198
    %v1328 = vpack.c.b16 %v1201, %v1200
    %v1329 = vpack.c.b16 %v1203, %v1202
    %v1330 = vpack.c.b16 %v1205, %v1204
    %v1331 = vpack.c.b16 %v1207, %v1206
    %v1332 = vpack.c.b16 %v1209, %v1208
    %v1333 = vpack.c.b16 %v1211, %v1210
    %v1334 = vpack.c.b16 %v1213, %v1212
    %v1335 = vpack.c.b16 %v1215, %v1214
    %v1336 = vpack.c.b16 %v1217, %v1216
    %v1337 = vpack.c.b16 %v1219, %v1218
    %v1338 = vpack.c.b16 %v1221, %v1220
    %v1339 = vpack.c.b16 %v1223, %v1222
    %v1340 = vpack.c.b16 %v1225, %v1224
    %v1341 = vpack.c.b16 %v1227, %v1226
    %v1342 = vpack.c.b16 %v1229, %v1228
    %v1343 = vpack.c.b16 %v1231, %v1230
    %v1344 = vpack.c.b16 %v1233, %v1232
    %v1345 = vpack.c.b16 %v1235, %v1234
    %v1346 = vpack.c.b16 %v1237, %v1236
    %v1347 = vpack.c.b16 %v1239, %v1238
    %v1348 = vpack.c.b16 %v1241, %v1240
    %v1349 = vpack.c.b16 %v1243, %v1242
    %v1350 = vpack.c.b16 %v1245, %v1244
    %v1351 = vpack.c.b16 %v1247, %v1246
    %v1352 = vpack.c.b16 %v1249, %v1248
    %v1353 = vpack.c.b16 %v1251, %v1250
    %v1354 = vpack.c.b16 %v1253, %v1252
    %v1355 = vpack.c.b16 %v1255, %v1254
    %v1356 = vpack.c.b16 %v1257, %v1256
    %v1357 = vpack.c.b16 %v1259, %v1258
    %v1358 = vpack.c.b16 %v1261, %v1260
    %v1359 = vpack.c.b16 %v1263, %v1262
    %v1360 = vpack.c.b16 %v1265, %v1264
    %v1361 = vpack.c.b16 %v1267, %v1266
    %v1362 = vpack.c.b16 %v1269, %v1268
    %v1363 = vpack.c.b16 %v1271, %v1270
    %v1364 = vpack.c.b16 %v1273, %v1272
    %v1365 = vpack.c.b16 %v1275, %v1274
    %v1366 = vpack.c.b16 %v1277, %v1276
    %v1367 = vpack.c.b16 %v1279, %v1278
    %v1368 = vpack.c.b16 %v1281, %v1280
    %v1369 = vpack.c.b16 %v1283, %v1282
    %v1370 = vpack.c.b16 %v1285, %v1284
    %v1371 = vpack.c.b16 %v1287, %v1286
    %v1372 = vpack.c.b16 %v1289, %v1288
    %v1373 = vpack.c.b16 %v1291, %v1290
    %v1374 = vpack.c.b16 %v1293, %v1292
    %v1375 = vpack.c.b16 %v1295, %v1294
    %v1376 = vpack.c.b16 %v1297, %v1296
    %v1377 = vpack.c.b16 %v1299, %v1298
    %v1378 = vpack.c.b16 %v1301, %v1300
    %v1379 = vpack.c.b16 %v1303, %v1302
    %v1380 = vpack.c.b16 %v1305, %v1304
    %v1381 = vpack.c.b16 %v1307, %v1306
    %v1382 = vpack.c.b16 %v1309, %v1308
    %v1383 = vpack.c.b16 %v1311, %v1310
    %1456 = vmatpush.bf16.msra.mxu0 %v1319
    %1457 = vmatpush.bf16.msra.mxu0 %v1318
    %1458 = vmatpush.bf16.msra.mxu0 %v1317
    %1459 = vmatpush.bf16.msra.mxu0 %v1316
    %1460 = vmatpush.bf16.msra.mxu0 %v1315
    %1461 = vmatpush.bf16.msra.mxu0 %v1314
    %1462 = vmatpush.bf16.msra.mxu0 %v1313
    %1463 = vmatpush.bf16.msra.mxu0 %v1312
    %1464 = vmatmul.bf16.gmra.mxu0 %v880
    %v1465 = vpop.f32.mrf.mxu0
    %v1466 = vadd.f32 0.0, %v1465
    %v1467 = vpop.f32.mrf.mxu0
    %v1468 = vadd.f32 0.0, %v1467
    %1469 = vmatmul.bf16.gmra.mxu0 %v889
    %v1470 = vpop.f32.mrf.mxu0
    %v1471 = vadd.f32 0.0, %v1470
    %v1472 = vpop.f32.mrf.mxu0
    %v1473 = vadd.f32 0.0, %v1472
    %1474 = vmatmul.bf16.gmra.mxu0 %v898
    %v1475 = vpop.f32.mrf.mxu0
    %v1476 = vadd.f32 0.0, %v1475
    %v1477 = vpop.f32.mrf.mxu0
    %v1478 = vadd.f32 0.0, %v1477
    %1479 = vmatmul.bf16.gmra.mxu0 %v907
    %v1480 = vpop.f32.mrf.mxu0
    %v1481 = vadd.f32 0.0, %v1480
    %v1482 = vpop.f32.mrf.mxu0
    %v1483 = vadd.f32 0.0, %v1482
    %1484 = vmatmul.bf16.gmra.mxu0 %v916
    %v1485 = vpop.f32.mrf.mxu0
    %v1486 = vadd.f32 0.0, %v1485
    %v1487 = vpop.f32.mrf.mxu0
    %v1488 = vadd.f32 0.0, %v1487
    %1489 = vmatmul.bf16.gmra.mxu0 %v925
    %v1490 = vpop.f32.mrf.mxu0
    %v1491 = vadd.f32 0.0, %v1490
    %v1492 = vpop.f32.mrf.mxu0
    %v1493 = vadd.f32 0.0, %v1492
    %1494 = vmatmul.bf16.gmra.mxu0 %v934
    %v1495 = vpop.f32.mrf.mxu0
    %v1496 = vadd.f32 0.0, %v1495
    %v1497 = vpop.f32.mrf.mxu0
    %v1498 = vadd.f32 0.0, %v1497
    %1499 = vmatmul.bf16.gmra.mxu0 %v943
    %v1500 = vpop.f32.mrf.mxu0
    %v1501 = vadd.f32 0.0, %v1500
    %v1502 = vpop.f32.mrf.mxu0
    %v1503 = vadd.f32 0.0, %v1502
    %1504 = vdwg.mxu0
    %1505 = vmatpush.bf16.msra.mxu0 %v1327
    %1506 = vmatpush.bf16.msra.mxu0 %v1326
    %1507 = vmatpush.bf16.msra.mxu0 %v1325
    %1508 = vmatpush.bf16.msra.mxu0 %v1324
    %1509 = vmatpush.bf16.msra.mxu0 %v1323
    %1510 = vmatpush.bf16.msra.mxu0 %v1322
    %1511 = vmatpush.bf16.msra.mxu0 %v1321
    %1512 = vmatpush.bf16.msra.mxu0 %v1320
    %1513 = vmatmul.bf16.gmra.mxu0 %v881
    %v1514 = vpop.f32.mrf.mxu0
    %v1515 = vadd.f32 %v1466, %v1514
    %v1516 = vpop.f32.mrf.mxu0
    %v1517 = vadd.f32 %v1468, %v1516
    %1518 = vmatmul.bf16.gmra.mxu0 %v890
    %v1519 = vpop.f32.mrf.mxu0
    %v1520 = vadd.f32 %v1471, %v1519
    %v1521 = vpop.f32.mrf.mxu0
    %v1522 = vadd.f32 %v1473, %v1521
    %1523 = vmatmul.bf16.gmra.mxu0 %v899
    %v1524 = vpop.f32.mrf.mxu0
    %v1525 = vadd.f32 %v1476, %v1524
    %v1526 = vpop.f32.mrf.mxu0
    %v1527 = vadd.f32 %v1478, %v1526
    %1528 = vmatmul.bf16.gmra.mxu0 %v908
    %v1529 = vpop.f32.mrf.mxu0
    %v1530 = vadd.f32 %v1481, %v1529
    %v1531 = vpop.f32.mrf.mxu0
    %v1532 = vadd.f32 %v1483, %v1531
    %1533 = vmatmul.bf16.gmra.mxu0 %v917
    %v1534 = vpop.f32.mrf.mxu0
    %v1535 = vadd.f32 %v1486, %v1534
    %v1536 = vpop.f32.mrf.mxu0
    %v1537 = vadd.f32 %v1488, %v1536
    %1538 = vmatmul.bf16.gmra.mxu0 %v926
    %v1539 = vpop.f32.mrf.mxu0
    %v1540 = vadd.f32 %v1491, %v1539
    %v1541 = vpop.f32.mrf.mxu0
    %v1542 = vadd.f32 %v1493, %v1541
    %1543 = vmatmul.bf16.gmra.mxu0 %v935
    %v1544 = vpop.f32.mrf.mxu0
    %v1545 = vadd.f32 %v1496, %v1544
    %v1546 = vpop.f32.mrf.mxu0
    %v1547 = vadd.f32 %v1498, %v1546
    %1548 = vmatmul.bf16.gmra.mxu0 %v944
    %v1549 = vpop.f32.mrf.mxu0
    %v1550 = vadd.f32 %v1501, %v1549
    %v1551 = vpop.f32.mrf.mxu0
    %v1552 = vadd.f32 %v1503, %v1551
    %1553 = vdwg.mxu0
    %1554 = vmatpush.bf16.msra.mxu0 %v1335
    %1555 = vmatpush.bf16.msra.mxu0 %v1334
    %1556 = vmatpush.bf16.msra.mxu0 %v1333
    %1557 = vmatpush.bf16.msra.mxu0 %v1332
    %1558 = vmatpush.bf16.msra.mxu0 %v1331
    %1559 = vmatpush.bf16.msra.mxu0 %v1330
    %1560 = vmatpush.bf16.msra.mxu0 %v1329
    %1561 = vmatpush.bf16.msra.mxu0 %v1328
    %1562 = vmatmul.bf16.gmra.mxu0 %v882
    %v1563 = vpop.f32.mrf.mxu0
    %v1564 = vadd.f32 %v1515, %v1563
    %v1565 = vpop.f32.mrf.mxu0
    %v1566 = vadd.f32 %v1517, %v1565
    %1567 = vmatmul.bf16.gmra.mxu0 %v891
    %v1568 = vpop.f32.mrf.mxu0
    %v1569 = vadd.f32 %v1520, %v1568
    %v1570 = vpop.f32.mrf.mxu0
    %v1571 = vadd.f32 %v1522, %v1570
    %1572 = vmatmul.bf16.gmra.mxu0 %v900
    %v1573 = vpop.f32.mrf.mxu0
    %v1574 = vadd.f32 %v1525, %v1573
    %v1575 = vpop.f32.mrf.mxu0
    %v1576 = vadd.f32 %v1527, %v1575
    %1577 = vmatmul.bf16.gmra.mxu0 %v909
    %v1578 = vpop.f32.mrf.mxu0
    %v1579 = vadd.f32 %v1530, %v1578
    %v1580 = vpop.f32.mrf.mxu0
    %v1581 = vadd.f32 %v1532, %v1580
    %1582 = vmatmul.bf16.gmra.mxu0 %v918
    %v1583 = vpop.f32.mrf.mxu0
    %v1584 = vadd.f32 %v1535, %v1583
    %v1585 = vpop.f32.mrf.mxu0
    %v1586 = vadd.f32 %v1537, %v1585
    %1587 = vmatmul.bf16.gmra.mxu0 %v927
    %v1588 = vpop.f32.mrf.mxu0
    %v1589 = vadd.f32 %v1540, %v1588
    %v1590 = vpop.f32.mrf.mxu0
    %v1591 = vadd.f32 %v1542, %v1590
    %1592 = vmatmul.bf16.gmra.mxu0 %v936
    %v1593 = vpop.f32.mrf.mxu0
    %v1594 = vadd.f32 %v1545, %v1593
    %v1595 = vpop.f32.mrf.mxu0
    %v1596 = vadd.f32 %v1547, %v1595
    %1597 = vmatmul.bf16.gmra.mxu0 %v945
    %v1598 = vpop.f32.mrf.mxu0
    %v1599 = vadd.f32 %v1550, %v1598
    %v1600 = vpop.f32.mrf.mxu0
    %v1601 = vadd.f32 %v1552, %v1600
    %1602 = vdwg.mxu0
    %1603 = vmatpush.bf16.msra.mxu0 %v1343
    %1604 = vmatpush.bf16.msra.mxu0 %v1342
    %1605 = vmatpush.bf16.msra.mxu0 %v1341
    %1606 = vmatpush.bf16.msra.mxu0 %v1340
    %1607 = vmatpush.bf16.msra.mxu0 %v1339
    %1608 = vmatpush.bf16.msra.mxu0 %v1338
    %1609 = vmatpush.bf16.msra.mxu0 %v1337
    %1610 = vmatpush.bf16.msra.mxu0 %v1336
    %1611 = vmatmul.bf16.gmra.mxu0 %v883
    %v1612 = vpop.f32.mrf.mxu0
    %v1613 = vadd.f32 %v1564, %v1612
    %v1614 = vpop.f32.mrf.mxu0
    %v1615 = vadd.f32 %v1566, %v1614
    %1616 = vmatmul.bf16.gmra.mxu0 %v892
    %v1617 = vpop.f32.mrf.mxu0
    %v1618 = vadd.f32 %v1569, %v1617
    %v1619 = vpop.f32.mrf.mxu0
    %v1620 = vadd.f32 %v1571, %v1619
    %1621 = vmatmul.bf16.gmra.mxu0 %v901
    %v1622 = vpop.f32.mrf.mxu0
    %v1623 = vadd.f32 %v1574, %v1622
    %v1624 = vpop.f32.mrf.mxu0
    %v1625 = vadd.f32 %v1576, %v1624
    %1626 = vmatmul.bf16.gmra.mxu0 %v910
    %v1627 = vpop.f32.mrf.mxu0
    %v1628 = vadd.f32 %v1579, %v1627
    %v1629 = vpop.f32.mrf.mxu0
    %v1630 = vadd.f32 %v1581, %v1629
    %1631 = vmatmul.bf16.gmra.mxu0 %v919
    %v1632 = vpop.f32.mrf.mxu0
    %v1633 = vadd.f32 %v1584, %v1632
    %v1634 = vpop.f32.mrf.mxu0
    %v1635 = vadd.f32 %v1586, %v1634
    %1636 = vmatmul.bf16.gmra.mxu0 %v928
    %v1637 = vpop.f32.mrf.mxu0
    %v1638 = vadd.f32 %v1589, %v1637
    %v1639 = vpop.f32.mrf.mxu0
    %v1640 = vadd.f32 %v1591, %v1639
    %1641 = vmatmul.bf16.gmra.mxu0 %v937
    %v1642 = vpop.f32.mrf.mxu0
    %v1643 = vadd.f32 %v1594, %v1642
    %v1644 = vpop.f32.mrf.mxu0
    %v1645 = vadd.f32 %v1596, %v1644
    %1646 = vmatmul.bf16.gmra.mxu0 %v946
    %v1647 = vpop.f32.mrf.mxu0
    %v1648 = vadd.f32 %v1599, %v1647
    %v1649 = vpop.f32.mrf.mxu0
    %v1650 = vadd.f32 %v1601, %v1649
    %1651 = vdwg.mxu0
    %1652 = vmatpush.bf16.msra.mxu0 %v1351
    %1653 = vmatpush.bf16.msra.mxu0 %v1350
    %1654 = vmatpush.bf16.msra.mxu0 %v1349
    %1655 = vmatpush.bf16.msra.mxu0 %v1348
    %1656 = vmatpush.bf16.msra.mxu0 %v1347
    %1657 = vmatpush.bf16.msra.mxu0 %v1346
    %1658 = vmatpush.bf16.msra.mxu0 %v1345
    %1659 = vmatpush.bf16.msra.mxu0 %v1344
    %1660 = vmatmul.bf16.gmra.mxu0 %v884
    %v1661 = vpop.f32.mrf.mxu0
    %v1662 = vadd.f32 %v1613, %v1661
    %v1663 = vpop.f32.mrf.mxu0
    %v1664 = vadd.f32 %v1615, %v1663
    %1665 = vmatmul.bf16.gmra.mxu0 %v893
    %v1666 = vpop.f32.mrf.mxu0
    %v1667 = vadd.f32 %v1618, %v1666
    %v1668 = vpop.f32.mrf.mxu0
    %v1669 = vadd.f32 %v1620, %v1668
    %1670 = vmatmul.bf16.gmra.mxu0 %v902
    %v1671 = vpop.f32.mrf.mxu0
    %v1672 = vadd.f32 %v1623, %v1671
    %v1673 = vpop.f32.mrf.mxu0
    %v1674 = vadd.f32 %v1625, %v1673
    %1675 = vmatmul.bf16.gmra.mxu0 %v911
    %v1676 = vpop.f32.mrf.mxu0
    %v1677 = vadd.f32 %v1628, %v1676
    %v1678 = vpop.f32.mrf.mxu0
    %v1679 = vadd.f32 %v1630, %v1678
    %1680 = vmatmul.bf16.gmra.mxu0 %v920
    %v1681 = vpop.f32.mrf.mxu0
    %v1682 = vadd.f32 %v1633, %v1681
    %v1683 = vpop.f32.mrf.mxu0
    %v1684 = vadd.f32 %v1635, %v1683
    %1685 = vmatmul.bf16.gmra.mxu0 %v929
    %v1686 = vpop.f32.mrf.mxu0
    %v1687 = vadd.f32 %v1638, %v1686
    %v1688 = vpop.f32.mrf.mxu0
    %v1689 = vadd.f32 %v1640, %v1688
    %1690 = vmatmul.bf16.gmra.mxu0 %v938
    %v1691 = vpop.f32.mrf.mxu0
    %v1692 = vadd.f32 %v1643, %v1691
    %v1693 = vpop.f32.mrf.mxu0
    %v1694 = vadd.f32 %v1645, %v1693
    %1695 = vmatmul.bf16.gmra.mxu0 %v947
    %v1696 = vpop.f32.mrf.mxu0
    %v1697 = vadd.f32 %v1648, %v1696
    %v1698 = vpop.f32.mrf.mxu0
    %v1699 = vadd.f32 %v1650, %v1698
    %1700 = vdwg.mxu0
    %1701 = vmatpush.bf16.msra.mxu0 %v1359
    %1702 = vmatpush.bf16.msra.mxu0 %v1358
    %1703 = vmatpush.bf16.msra.mxu0 %v1357
    %1704 = vmatpush.bf16.msra.mxu0 %v1356
    %1705 = vmatpush.bf16.msra.mxu0 %v1355
    %1706 = vmatpush.bf16.msra.mxu0 %v1354
    %1707 = vmatpush.bf16.msra.mxu0 %v1353
    %1708 = vmatpush.bf16.msra.mxu0 %v1352
    %1709 = vmatmul.bf16.gmra.mxu0 %v885
    %v1710 = vpop.f32.mrf.mxu0
    %v1711 = vadd.f32 %v1662, %v1710
    %v1712 = vpop.f32.mrf.mxu0
    %v1713 = vadd.f32 %v1664, %v1712
    %1714 = vmatmul.bf16.gmra.mxu0 %v894
    %v1715 = vpop.f32.mrf.mxu0
    %v1716 = vadd.f32 %v1667, %v1715
    %v1717 = vpop.f32.mrf.mxu0
    %v1718 = vadd.f32 %v1669, %v1717
    %1719 = vmatmul.bf16.gmra.mxu0 %v903
    %v1720 = vpop.f32.mrf.mxu0
    %v1721 = vadd.f32 %v1672, %v1720
    %v1722 = vpop.f32.mrf.mxu0
    %v1723 = vadd.f32 %v1674, %v1722
    %1724 = vmatmul.bf16.gmra.mxu0 %v912
    %v1725 = vpop.f32.mrf.mxu0
    %v1726 = vadd.f32 %v1677, %v1725
    %v1727 = vpop.f32.mrf.mxu0
    %v1728 = vadd.f32 %v1679, %v1727
    %1729 = vmatmul.bf16.gmra.mxu0 %v921
    %v1730 = vpop.f32.mrf.mxu0
    %v1731 = vadd.f32 %v1682, %v1730
    %v1732 = vpop.f32.mrf.mxu0
    %v1733 = vadd.f32 %v1684, %v1732
    %1734 = vmatmul.bf16.gmra.mxu0 %v930
    %v1735 = vpop.f32.mrf.mxu0
    %v1736 = vadd.f32 %v1687, %v1735
    %v1737 = vpop.f32.mrf.mxu0
    %v1738 = vadd.f32 %v1689, %v1737
    %1739 = vmatmul.bf16.gmra.mxu0 %v939
    %v1740 = vpop.f32.mrf.mxu0
    %v1741 = vadd.f32 %v1692, %v1740
    %v1742 = vpop.f32.mrf.mxu0
    %v1743 = vadd.f32 %v1694, %v1742
    %1744 = vmatmul.bf16.gmra.mxu0 %v948
    %v1745 = vpop.f32.mrf.mxu0
    %v1746 = vadd.f32 %v1697, %v1745
    %v1747 = vpop.f32.mrf.mxu0
    %v1748 = vadd.f32 %v1699, %v1747
    %1749 = vdwg.mxu0
    %1750 = vmatpush.bf16.msra.mxu0 %v1367
    %1751 = vmatpush.bf16.msra.mxu0 %v1366
    %1752 = vmatpush.bf16.msra.mxu0 %v1365
    %1753 = vmatpush.bf16.msra.mxu0 %v1364
    %1754 = vmatpush.bf16.msra.mxu0 %v1363
    %1755 = vmatpush.bf16.msra.mxu0 %v1362
    %1756 = vmatpush.bf16.msra.mxu0 %v1361
    %1757 = vmatpush.bf16.msra.mxu0 %v1360
    %1758 = vmatmul.bf16.gmra.mxu0 %v886
    %v1759 = vpop.f32.mrf.mxu0
    %v1760 = vadd.f32 %v1711, %v1759
    %v1761 = vpop.f32.mrf.mxu0
    %v1762 = vadd.f32 %v1713, %v1761
    %1763 = vmatmul.bf16.gmra.mxu0 %v895
    %v1764 = vpop.f32.mrf.mxu0
    %v1765 = vadd.f32 %v1716, %v1764
    %v1766 = vpop.f32.mrf.mxu0
    %v1767 = vadd.f32 %v1718, %v1766
    %1768 = vmatmul.bf16.gmra.mxu0 %v904
    %v1769 = vpop.f32.mrf.mxu0
    %v1770 = vadd.f32 %v1721, %v1769
    %v1771 = vpop.f32.mrf.mxu0
    %v1772 = vadd.f32 %v1723, %v1771
    %1773 = vmatmul.bf16.gmra.mxu0 %v913
    %v1774 = vpop.f32.mrf.mxu0
    %v1775 = vadd.f32 %v1726, %v1774
    %v1776 = vpop.f32.mrf.mxu0
    %v1777 = vadd.f32 %v1728, %v1776
    %1778 = vmatmul.bf16.gmra.mxu0 %v922
    %v1779 = vpop.f32.mrf.mxu0
    %v1780 = vadd.f32 %v1731, %v1779
    %v1781 = vpop.f32.mrf.mxu0
    %v1782 = vadd.f32 %v1733, %v1781
    %1783 = vmatmul.bf16.gmra.mxu0 %v931
    %v1784 = vpop.f32.mrf.mxu0
    %v1785 = vadd.f32 %v1736, %v1784
    %v1786 = vpop.f32.mrf.mxu0
    %v1787 = vadd.f32 %v1738, %v1786
    %1788 = vmatmul.bf16.gmra.mxu0 %v940
    %v1789 = vpop.f32.mrf.mxu0
    %v1790 = vadd.f32 %v1741, %v1789
    %v1791 = vpop.f32.mrf.mxu0
    %v1792 = vadd.f32 %v1743, %v1791
    %1793 = vmatmul.bf16.gmra.mxu0 %v949
    %v1794 = vpop.f32.mrf.mxu0
    %v1795 = vadd.f32 %v1746, %v1794
    %v1796 = vpop.f32.mrf.mxu0
    %v1797 = vadd.f32 %v1748, %v1796
    %1798 = vdwg.mxu0
    %1799 = vmatpush.bf16.msra.mxu0 %v1375
    %1800 = vmatpush.bf16.msra.mxu0 %v1374
    %1801 = vmatpush.bf16.msra.mxu0 %v1373
    %1802 = vmatpush.bf16.msra.mxu0 %v1372
    %1803 = vmatpush.bf16.msra.mxu0 %v1371
    %1804 = vmatpush.bf16.msra.mxu0 %v1370
    %1805 = vmatpush.bf16.msra.mxu0 %v1369
    %1806 = vmatpush.bf16.msra.mxu0 %v1368
    %1807 = vmatmul.bf16.gmra.mxu0 %v887
    %v1808 = vpop.f32.mrf.mxu0
    %v1809 = vadd.f32 %v1760, %v1808
    %v1810 = vpop.f32.mrf.mxu0
    %v1811 = vadd.f32 %v1762, %v1810
    %1812 = vmatmul.bf16.gmra.mxu0 %v896
    %v1813 = vpop.f32.mrf.mxu0
    %v1814 = vadd.f32 %v1765, %v1813
    %v1815 = vpop.f32.mrf.mxu0
    %v1816 = vadd.f32 %v1767, %v1815
    %1817 = vmatmul.bf16.gmra.mxu0 %v905
    %v1818 = vpop.f32.mrf.mxu0
    %v1819 = vadd.f32 %v1770, %v1818
    %v1820 = vpop.f32.mrf.mxu0
    %v1821 = vadd.f32 %v1772, %v1820
    %1822 = vmatmul.bf16.gmra.mxu0 %v914
    %v1823 = vpop.f32.mrf.mxu0
    %v1824 = vadd.f32 %v1775, %v1823
    %v1825 = vpop.f32.mrf.mxu0
    %v1826 = vadd.f32 %v1777, %v1825
    %1827 = vmatmul.bf16.gmra.mxu0 %v923
    %v1828 = vpop.f32.mrf.mxu0
    %v1829 = vadd.f32 %v1780, %v1828
    %v1830 = vpop.f32.mrf.mxu0
    %v1831 = vadd.f32 %v1782, %v1830
    %1832 = vmatmul.bf16.gmra.mxu0 %v932
    %v1833 = vpop.f32.mrf.mxu0
    %v1834 = vadd.f32 %v1785, %v1833
    %v1835 = vpop.f32.mrf.mxu0
    %v1836 = vadd.f32 %v1787, %v1835
    %1837 = vmatmul.bf16.gmra.mxu0 %v941
    %v1838 = vpop.f32.mrf.mxu0
    %v1839 = vadd.f32 %v1790, %v1838
    %v1840 = vpop.f32.mrf.mxu0
    %v1841 = vadd.f32 %v1792, %v1840
    %1842 = vmatmul.bf16.gmra.mxu0 %v950
    %v1843 = vpop.f32.mrf.mxu0
    %v1844 = vadd.f32 %v1795, %v1843
    %v1845 = vpop.f32.mrf.mxu0
    %v1846 = vadd.f32 %v1797, %v1845
    %1847 = vdwg.mxu0
    %1848 = vmatpush.bf16.msra.mxu0 %v1383
    %1849 = vmatpush.bf16.msra.mxu0 %v1382
    %1850 = vmatpush.bf16.msra.mxu0 %v1381
    %1851 = vmatpush.bf16.msra.mxu0 %v1380
    %1852 = vmatpush.bf16.msra.mxu0 %v1379
    %1853 = vmatpush.bf16.msra.mxu0 %v1378
    %1854 = vmatpush.bf16.msra.mxu0 %v1377
    %1855 = vmatpush.bf16.msra.mxu0 %v1376
    %1856 = vmatmul.bf16.gmra.mxu0 %v888
    %v1857 = vpop.f32.mrf.mxu0
    %v1858 = vadd.f32 %v1809, %v1857
    %v1859 = vpop.f32.mrf.mxu0
    %v1860 = vadd.f32 %v1811, %v1859
    %1861 = vmatmul.bf16.gmra.mxu0 %v897
    %v1862 = vpop.f32.mrf.mxu0
    %v1863 = vadd.f32 %v1814, %v1862
    %v1864 = vpop.f32.mrf.mxu0
    %v1865 = vadd.f32 %v1816, %v1864
    %1866 = vmatmul.bf16.gmra.mxu0 %v906
    %v1867 = vpop.f32.mrf.mxu0
    %v1868 = vadd.f32 %v1819, %v1867
    %v1869 = vpop.f32.mrf.mxu0
    %v1870 = vadd.f32 %v1821, %v1869
    %1871 = vmatmul.bf16.gmra.mxu0 %v915
    %v1872 = vpop.f32.mrf.mxu0
    %v1873 = vadd.f32 %v1824, %v1872
    %v1874 = vpop.f32.mrf.mxu0
    %v1875 = vadd.f32 %v1826, %v1874
    %1876 = vmatmul.bf16.gmra.mxu0 %v924
    %v1877 = vpop.f32.mrf.mxu0
    %v1878 = vadd.f32 %v1829, %v1877
    %v1879 = vpop.f32.mrf.mxu0
    %v1880 = vadd.f32 %v1831, %v1879
    %1881 = vmatmul.bf16.gmra.mxu0 %v933
    %v1882 = vpop.f32.mrf.mxu0
    %v1883 = vadd.f32 %v1834, %v1882
    %v1884 = vpop.f32.mrf.mxu0
    %v1885 = vadd.f32 %v1836, %v1884
    %1886 = vmatmul.bf16.gmra.mxu0 %v942
    %v1887 = vpop.f32.mrf.mxu0
    %v1888 = vadd.f32 %v1839, %v1887
    %v1889 = vpop.f32.mrf.mxu0
    %v1890 = vadd.f32 %v1841, %v1889
    %1891 = vmatmul.bf16.gmra.mxu0 %v951
    %v1892 = vpop.f32.mrf.mxu0
    %v1893 = vadd.f32 %v1844, %v1892
    %v1894 = vpop.f32.mrf.mxu0
    %v1895 = vadd.f32 %v1846, %v1894
    %1896 = vdwg.mxu0
    %v1897 = vmax.f32 %v1858, 0.0
    %v1898 = vmax.f32 %v1860, 0.0
    %v1899 = vmax.f32 %v1863, 0.0
    %v1900 = vmax.f32 %v1865, 0.0
    %v1901 = vmax.f32 %v1868, 0.0
    %v1902 = vmax.f32 %v1870, 0.0
    %v1903 = vmax.f32 %v1873, 0.0
    %v1904 = vmax.f32 %v1875, 0.0
    %v1905 = vmax.f32 %v1878, 0.0
    %v1906 = vmax.f32 %v1880, 0.0
    %v1907 = vmax.f32 %v1883, 0.0
    %v1908 = vmax.f32 %v1885, 0.0
    %v1909 = vmax.f32 %v1888, 0.0
    %v1910 = vmax.f32 %v1890, 0.0
    %v1911 = vmax.f32 %v1893, 0.0
    %v1912 = vmax.f32 %v1895, 0.0
    %v1913 = vpack.c.bf16 %v1898, %v1897
    %v1914 = vpack.c.bf16 %v1900, %v1899
    %v1915 = vpack.c.bf16 %v1902, %v1901
    %v1916 = vpack.c.bf16 %v1904, %v1903
    %v1917 = vpack.c.bf16 %v1906, %v1905
    %v1918 = vpack.c.bf16 %v1908, %v1907
    %v1919 = vpack.c.bf16 %v1910, %v1909
    %v1920 = vpack.c.bf16 %v1912, %v1911
    %v1921 = vld [vmem:[%s2] sm:$0xf]
    %v1922 = vld [vmem:[%s2 + $0x4] sm:$0xf]
    %v1923 = vld [vmem:[%s2 + $0x8] sm:$0xf]
    %v1924 = vld [vmem:[%s2 + $0xc] sm:$0xf]
    %v1929 = vunpack.c.l.b16 %v1921
    %v1930 = vunpack.c.l.b16 %v1922
    %v1931 = vunpack.c.l.b16 %v1923
    %v1932 = vunpack.c.l.b16 %v1924
    %v1933 = vpack.c.b16 %v1930, %v1929
    %v1934 = vpack.c.b16 %v1932, %v1931
    %vm1937 = vcmask 261120
    %v1939 = vsel %vm1937, %v1913, 0
    %v1942 = vsel %vm1937, %v1914, 0
    %v1945 = vsel %vm1937, %v1915, 0
    %v1948 = vsel %vm1937, %v1916, 0
    %v1951 = vsel %vm1937, %v1917, 0
    %v1954 = vsel %vm1937, %v1918, 0
    %v1957 = vsel %vm1937, %v1919, 0
    %v1960 = vsel %vm1937, %v1920, 0
    %1962 = vmatpush.bf16.msra.mxu0 0
    %1963 = vmatpush.bf16.msra.mxu0 0
    %1964 = vmatpush.bf16.msra.mxu0 0
    %1965 = vmatpush.bf16.msra.mxu0 0
    %1966 = vmatpush.bf16.msra.mxu0 0
    %1967 = vmatpush.bf16.msra.mxu0 0
    %1968 = vmatpush.bf16.msra.mxu0 %v1934
    %1969 = vmatpush.bf16.msra.mxu0 %v1933
    %1970 = vmatmul.bf16.gmra.mxu0 %v1939
    %v1971 = vpop.f32.mrf.mxu0
    %v1972 = vadd.f32 0.0, %v1971
    %v1973 = vpop.f32.mrf.mxu0
    %v1974 = vadd.f32 0.0, %v1973
    %1975 = vmatmul.bf16.gmra.mxu0 %v1942
    %v1976 = vpop.f32.mrf.mxu0
    %v1977 = vadd.f32 0.0, %v1976
    %v1978 = vpop.f32.mrf.mxu0
    %v1979 = vadd.f32 0.0, %v1978
    %1980 = vmatmul.bf16.gmra.mxu0 %v1945
    %v1981 = vpop.f32.mrf.mxu0
    %v1982 = vadd.f32 0.0, %v1981
    %v1983 = vpop.f32.mrf.mxu0
    %v1984 = vadd.f32 0.0, %v1983
    %1985 = vmatmul.bf16.gmra.mxu0 %v1948
    %v1986 = vpop.f32.mrf.mxu0
    %v1987 = vadd.f32 0.0, %v1986
    %v1988 = vpop.f32.mrf.mxu0
    %v1989 = vadd.f32 0.0, %v1988
    %1990 = vmatmul.bf16.gmra.mxu0 %v1951
    %v1991 = vpop.f32.mrf.mxu0
    %v1992 = vadd.f32 0.0, %v1991
    %v1993 = vpop.f32.mrf.mxu0
    %v1994 = vadd.f32 0.0, %v1993
    %1995 = vmatmul.bf16.gmra.mxu0 %v1954
    %v1996 = vpop.f32.mrf.mxu0
    %v1997 = vadd.f32 0.0, %v1996
    %v1998 = vpop.f32.mrf.mxu0
    %v1999 = vadd.f32 0.0, %v1998
    %2000 = vmatmul.bf16.gmra.mxu0 %v1957
    %v2001 = vpop.f32.mrf.mxu0
    %v2002 = vadd.f32 0.0, %v2001
    %v2003 = vpop.f32.mrf.mxu0
    %v2004 = vadd.f32 0.0, %v2003
    %2005 = vmatmul.bf16.gmra.mxu0 %v1960
    %v2006 = vpop.f32.mrf.mxu0
    %v2007 = vadd.f32 0.0, %v2006
    %v2008 = vpop.f32.mrf.mxu0
    %v2009 = vadd.f32 0.0, %v2008
    %2010 = vdwg.mxu0
    %v2011 = vadd.f32 %v16, %v1972
    %v2012 = vadd.f32 %v17, %v1974
    %v2013 = vadd.f32 %v18, %v1977
    %v2014 = vadd.f32 %v19, %v1979
    %v2015 = vadd.f32 %v20, %v1982
    %v2016 = vadd.f32 %v21, %v1984
    %v2017 = vadd.f32 %v22, %v1987
    %v2018 = vadd.f32 %v23, %v1989
    %v2019 = vadd.f32 %v24, %v1992
    %v2020 = vadd.f32 %v25, %v1994
    %v2021 = vadd.f32 %v26, %v1997
    %v2022 = vadd.f32 %v27, %v1999
    %v2023 = vadd.f32 %v28, %v2002
    %v2024 = vadd.f32 %v29, %v2004
    %v2025 = vadd.f32 %v30, %v2007
    %v2026 = vadd.f32 %v31, %v2009
    %v2027 = vmax.f32 %v2011, 0.0
    %v2028 = vmax.f32 %v2012, 0.0
    %v2029 = vmax.f32 %v2013, 0.0
    %v2030 = vmax.f32 %v2014, 0.0
    %v2031 = vmax.f32 %v2015, 0.0
    %v2032 = vmax.f32 %v2016, 0.0
    %v2033 = vmax.f32 %v2017, 0.0
    %v2034 = vmax.f32 %v2018, 0.0
    %v2035 = vmax.f32 %v2019, 0.0
    %v2036 = vmax.f32 %v2020, 0.0
    %v2037 = vmax.f32 %v2021, 0.0
    %v2038 = vmax.f32 %v2022, 0.0
    %v2039 = vmax.f32 %v2023, 0.0
    %v2040 = vmax.f32 %v2024, 0.0
    %v2041 = vmax.f32 %v2025, 0.0
    %v2042 = vmax.f32 %v2026, 0.0
    %v2043 = vrot.slane %v2027, 7
    %v2044 = vrot.slane %v2028, 7
    %v2045 = vrot.slane %v2029, 7
    %v2046 = vrot.slane %v2030, 7
    %v2047 = vrot.slane %v2031, 7
    %v2048 = vrot.slane %v2032, 7
    %v2049 = vrot.slane %v2033, 7
    %v2050 = vrot.slane %v2034, 7
    %v2051 = vrot.slane %v2035, 7
    %v2052 = vrot.slane %v2036, 7
    %v2053 = vrot.slane %v2037, 7
    %v2054 = vrot.slane %v2038, 7
    %v2055 = vrot.slane %v2039, 7
    %v2056 = vrot.slane %v2040, 7
    %v2057 = vrot.slane %v2041, 7
    %v2058 = vrot.slane %v2042, 7
    %v2059 = vrot.slane %v2027, 1
    %v2060 = vrot.slane %v2028, 1
    %v2061 = vrot.slane %v2029, 1
    %v2062 = vrot.slane %v2030, 1
    %v2063 = vrot.slane %v2031, 1
    %v2064 = vrot.slane %v2032, 1
    %v2065 = vrot.slane %v2033, 1
    %v2066 = vrot.slane %v2034, 1
    %v2067 = vrot.slane %v2035, 1
    %v2068 = vrot.slane %v2036, 1
    %v2069 = vrot.slane %v2037, 1
    %v2070 = vrot.slane %v2038, 1
    %v2071 = vrot.slane %v2039, 1
    %v2072 = vrot.slane %v2040, 1
    %v2073 = vrot.slane %v2041, 1
    %v2074 = vrot.slane %v2042, 1
    %v2075 = vsel %vm84, %v2058, 0.0
    %v2076 = vsel %vm85, %v2043, 0.0
    %v2077 = vsel %vm85, %v2044, 0.0
    %v2078 = vsel %vm85, %v2045, 0.0
    %v2079 = vsel %vm85, %v2046, 0.0
    %v2080 = vsel %vm85, %v2047, 0.0
    %v2081 = vsel %vm85, %v2048, 0.0
    %v2082 = vsel %vm85, %v2049, 0.0
    %v2083 = vsel %vm84, %v2050, 0.0
    %v2084 = vsel %vm85, %v2051, 0.0
    %v2085 = vsel %vm85, %v2052, 0.0
    %v2086 = vsel %vm85, %v2053, 0.0
    %v2087 = vsel %vm85, %v2054, 0.0
    %v2088 = vsel %vm85, %v2055, 0.0
    %v2089 = vsel %vm85, %v2056, 0.0
    %v2090 = vsel %vm85, %v2057, 0.0
    %v2091 = vpack.c.bf16 %v2075, %v2075
    %v2092 = vpack.c.bf16 %v2076, %v2076
    %v2093 = vpack.c.bf16 %v2077, %v2077
    %v2094 = vpack.c.bf16 %v2078, %v2078
    %v2095 = vpack.c.bf16 %v2079, %v2079
    %v2096 = vpack.c.bf16 %v2080, %v2080
    %v2097 = vpack.c.bf16 %v2081, %v2081
    %v2098 = vpack.c.bf16 %v2082, %v2082
    %v2099 = vpack.c.bf16 %v2083, %v2083
    %v2100 = vpack.c.bf16 %v2084, %v2084
    %v2101 = vpack.c.bf16 %v2085, %v2085
    %v2102 = vpack.c.bf16 %v2086, %v2086
    %v2103 = vpack.c.bf16 %v2087, %v2087
    %v2104 = vpack.c.bf16 %v2088, %v2088
    %v2105 = vpack.c.bf16 %v2089, %v2089
    %v2106 = vpack.c.bf16 %v2090, %v2090
    %2107 = vst [vmem:[#allocation2] sm:$0xf] %v2091
    %2108 = vst [vmem:[#allocation2 + $0x24] sm:$0xf] %v2092
    %2109 = vst [vmem:[#allocation2 + $0x48] sm:$0xf] %v2093
    %2110 = vst [vmem:[#allocation2 + $0x6c] sm:$0xf] %v2094
    %2111 = vst [vmem:[#allocation2 + $0x90] sm:$0xf] %v2095
    %2112 = vst [vmem:[#allocation2 + $0xb4] sm:$0xf] %v2096
    %2113 = vst [vmem:[#allocation2 + $0xd8] sm:$0xf] %v2097
    %2114 = vst [vmem:[#allocation2 + $0xfc] sm:$0xf] %v2098
    %2115 = vst [vmem:[#allocation2 + $0x120] sm:$0xf] %v2099
    %2116 = vst [vmem:[#allocation2 + $0x144] sm:$0xf] %v2100
    %2117 = vst [vmem:[#allocation2 + $0x168] sm:$0xf] %v2101
    %2118 = vst [vmem:[#allocation2 + $0x18c] sm:$0xf] %v2102
    %2119 = vst [vmem:[#allocation2 + $0x1b0] sm:$0xf] %v2103
    %2120 = vst [vmem:[#allocation2 + $0x1d4] sm:$0xf] %v2104
    %2121 = vst [vmem:[#allocation2 + $0x1f8] sm:$0xf] %v2105
    %2122 = vst [vmem:[#allocation2 + $0x21c] sm:$0xf] %v2106
    %v2123 = vsel 0, %v2042, 0.0
    %v2124 = vsel 1, %v2027, 0.0
    %v2125 = vsel 1, %v2028, 0.0
    %v2126 = vsel 1, %v2029, 0.0
    %v2127 = vsel 1, %v2030, 0.0
    %v2128 = vsel 1, %v2031, 0.0
    %v2129 = vsel 1, %v2032, 0.0
    %v2130 = vsel 1, %v2033, 0.0
    %v2131 = vsel 0, %v2034, 0.0
    %v2132 = vsel 1, %v2035, 0.0
    %v2133 = vsel 1, %v2036, 0.0
    %v2134 = vsel 1, %v2037, 0.0
    %v2135 = vsel 1, %v2038, 0.0
    %v2136 = vsel 1, %v2039, 0.0
    %v2137 = vsel 1, %v2040, 0.0
    %v2138 = vsel 1, %v2041, 0.0
    %v2139 = vpack.c.bf16 %v2123, %v2123
    %v2140 = vpack.c.bf16 %v2124, %v2124
    %v2141 = vpack.c.bf16 %v2125, %v2125
    %v2142 = vpack.c.bf16 %v2126, %v2126
    %v2143 = vpack.c.bf16 %v2127, %v2127
    %v2144 = vpack.c.bf16 %v2128, %v2128
    %v2145 = vpack.c.bf16 %v2129, %v2129
    %v2146 = vpack.c.bf16 %v2130, %v2130
    %v2147 = vpack.c.bf16 %v2131, %v2131
    %v2148 = vpack.c.bf16 %v2132, %v2132
    %v2149 = vpack.c.bf16 %v2133, %v2133
    %v2150 = vpack.c.bf16 %v2134, %v2134
    %v2151 = vpack.c.bf16 %v2135, %v2135
    %v2152 = vpack.c.bf16 %v2136, %v2136
    %v2153 = vpack.c.bf16 %v2137, %v2137
    %v2154 = vpack.c.bf16 %v2138, %v2138
    %2155 = vst [vmem:[#allocation2 + $0x4] sm:$0xf] %v2139
    %2156 = vst [vmem:[#allocation2 + $0x28] sm:$0xf] %v2140
    %2157 = vst [vmem:[#allocation2 + $0x4c] sm:$0xf] %v2141
    %2158 = vst [vmem:[#allocation2 + $0x70] sm:$0xf] %v2142
    %2159 = vst [vmem:[#allocation2 + $0x94] sm:$0xf] %v2143
    %2160 = vst [vmem:[#allocation2 + $0xb8] sm:$0xf] %v2144
    %2161 = vst [vmem:[#allocation2 + $0xdc] sm:$0xf] %v2145
    %2162 = vst [vmem:[#allocation2 + $0x100] sm:$0xf] %v2146
    %2163 = vst [vmem:[#allocation2 + $0x124] sm:$0xf] %v2147
    %2164 = vst [vmem:[#allocation2 + $0x148] sm:$0xf] %v2148
    %2165 = vst [vmem:[#allocation2 + $0x16c] sm:$0xf] %v2149
    %2166 = vst [vmem:[#allocation2 + $0x190] sm:$0xf] %v2150
    %2167 = vst [vmem:[#allocation2 + $0x1b4] sm:$0xf] %v2151
    %2168 = vst [vmem:[#allocation2 + $0x1d8] sm:$0xf] %v2152
    %2169 = vst [vmem:[#allocation2 + $0x1fc] sm:$0xf] %v2153
    %2170 = vst [vmem:[#allocation2 + $0x220] sm:$0xf] %v2154
    %v2171 = vsel %vm182, %v2074, 0.0
    %v2172 = vsel %vm183, %v2059, 0.0
    %v2173 = vsel %vm183, %v2060, 0.0
    %v2174 = vsel %vm183, %v2061, 0.0
    %v2175 = vsel %vm183, %v2062, 0.0
    %v2176 = vsel %vm183, %v2063, 0.0
    %v2177 = vsel %vm183, %v2064, 0.0
    %v2178 = vsel %vm183, %v2065, 0.0
    %v2179 = vsel %vm182, %v2066, 0.0
    %v2180 = vsel %vm183, %v2067, 0.0
    %v2181 = vsel %vm183, %v2068, 0.0
    %v2182 = vsel %vm183, %v2069, 0.0
    %v2183 = vsel %vm183, %v2070, 0.0
    %v2184 = vsel %vm183, %v2071, 0.0
    %v2185 = vsel %vm183, %v2072, 0.0
    %v2186 = vsel %vm183, %v2073, 0.0
    %v2187 = vpack.c.bf16 %v2171, %v2171
    %v2188 = vpack.c.bf16 %v2172, %v2172
    %v2189 = vpack.c.bf16 %v2173, %v2173
    %v2190 = vpack.c.bf16 %v2174, %v2174
    %v2191 = vpack.c.bf16 %v2175, %v2175
    %v2192 = vpack.c.bf16 %v2176, %v2176
    %v2193 = vpack.c.bf16 %v2177, %v2177
    %v2194 = vpack.c.bf16 %v2178, %v2178
    %v2195 = vpack.c.bf16 %v2179, %v2179
    %v2196 = vpack.c.bf16 %v2180, %v2180
    %v2197 = vpack.c.bf16 %v2181, %v2181
    %v2198 = vpack.c.bf16 %v2182, %v2182
    %v2199 = vpack.c.bf16 %v2183, %v2183
    %v2200 = vpack.c.bf16 %v2184, %v2184
    %v2201 = vpack.c.bf16 %v2185, %v2185
    %v2202 = vpack.c.bf16 %v2186, %v2186
    %2203 = vst [vmem:[#allocation2 + $0x8] sm:$0xf] %v2187
    %2204 = vst [vmem:[#allocation2 + $0x2c] sm:$0xf] %v2188
    %2205 = vst [vmem:[#allocation2 + $0x50] sm:$0xf] %v2189
    %2206 = vst [vmem:[#allocation2 + $0x74] sm:$0xf] %v2190
    %2207 = vst [vmem:[#allocation2 + $0x98] sm:$0xf] %v2191
    %2208 = vst [vmem:[#allocation2 + $0xbc] sm:$0xf] %v2192
    %2209 = vst [vmem:[#allocation2 + $0xe0] sm:$0xf] %v2193
    %2210 = vst [vmem:[#allocation2 + $0x104] sm:$0xf] %v2194
    %2211 = vst [vmem:[#allocation2 + $0x128] sm:$0xf] %v2195
    %2212 = vst [vmem:[#allocation2 + $0x14c] sm:$0xf] %v2196
    %2213 = vst [vmem:[#allocation2 + $0x170] sm:$0xf] %v2197
    %2214 = vst [vmem:[#allocation2 + $0x194] sm:$0xf] %v2198
    %2215 = vst [vmem:[#allocation2 + $0x1b8] sm:$0xf] %v2199
    %2216 = vst [vmem:[#allocation2 + $0x1dc] sm:$0xf] %v2200
    %2217 = vst [vmem:[#allocation2 + $0x200] sm:$0xf] %v2201
    %2218 = vst [vmem:[#allocation2 + $0x224] sm:$0xf] %v2202
    %v2219 = vsel %vm34, %v2043, 0.0
    %v2220 = vsel %vm34, %v2044, 0.0
    %v2221 = vsel %vm34, %v2045, 0.0
    %v2222 = vsel %vm34, %v2046, 0.0
    %v2223 = vsel %vm34, %v2047, 0.0
    %v2224 = vsel %vm34, %v2048, 0.0
    %v2225 = vsel %vm34, %v2049, 0.0
    %v2226 = vsel %vm34, %v2050, 0.0
    %v2227 = vsel %vm34, %v2051, 0.0
    %v2228 = vsel %vm34, %v2052, 0.0
    %v2229 = vsel %vm34, %v2053, 0.0
    %v2230 = vsel %vm34, %v2054, 0.0
    %v2231 = vsel %vm34, %v2055, 0.0
    %v2232 = vsel %vm34, %v2056, 0.0
    %v2233 = vsel %vm34, %v2057, 0.0
    %v2234 = vsel %vm34, %v2058, 0.0
    %v2235 = vpack.c.bf16 %v2219, %v2219
    %v2236 = vpack.c.bf16 %v2220, %v2220
    %v2237 = vpack.c.bf16 %v2221, %v2221
    %v2238 = vpack.c.bf16 %v2222, %v2222
    %v2239 = vpack.c.bf16 %v2223, %v2223
    %v2240 = vpack.c.bf16 %v2224, %v2224
    %v2241 = vpack.c.bf16 %v2225, %v2225
    %v2242 = vpack.c.bf16 %v2226, %v2226
    %v2243 = vpack.c.bf16 %v2227, %v2227
    %v2244 = vpack.c.bf16 %v2228, %v2228
    %v2245 = vpack.c.bf16 %v2229, %v2229
    %v2246 = vpack.c.bf16 %v2230, %v2230
    %v2247 = vpack.c.bf16 %v2231, %v2231
    %v2248 = vpack.c.bf16 %v2232, %v2232
    %v2249 = vpack.c.bf16 %v2233, %v2233
    %v2250 = vpack.c.bf16 %v2234, %v2234
    %2251 = vst [vmem:[#allocation2 + $0xc] sm:$0xf] %v2235
    %2252 = vst [vmem:[#allocation2 + $0x30] sm:$0xf] %v2236
    %2253 = vst [vmem:[#allocation2 + $0x54] sm:$0xf] %v2237
    %2254 = vst [vmem:[#allocation2 + $0x78] sm:$0xf] %v2238
    %2255 = vst [vmem:[#allocation2 + $0x9c] sm:$0xf] %v2239
    %2256 = vst [vmem:[#allocation2 + $0xc0] sm:$0xf] %v2240
    %2257 = vst [vmem:[#allocation2 + $0xe4] sm:$0xf] %v2241
    %2258 = vst [vmem:[#allocation2 + $0x108] sm:$0xf] %v2242
    %2259 = vst [vmem:[#allocation2 + $0x12c] sm:$0xf] %v2243
    %2260 = vst [vmem:[#allocation2 + $0x150] sm:$0xf] %v2244
    %2261 = vst [vmem:[#allocation2 + $0x174] sm:$0xf] %v2245
    %2262 = vst [vmem:[#allocation2 + $0x198] sm:$0xf] %v2246
    %2263 = vst [vmem:[#allocation2 + $0x1bc] sm:$0xf] %v2247
    %2264 = vst [vmem:[#allocation2 + $0x1e0] sm:$0xf] %v2248
    %2265 = vst [vmem:[#allocation2 + $0x204] sm:$0xf] %v2249
    %2266 = vst [vmem:[#allocation2 + $0x228] sm:$0xf] %v2250
    %v2267 = vpack.c.bf16 %v2027, %v2027
    %v2268 = vpack.c.bf16 %v2028, %v2028
    %v2269 = vpack.c.bf16 %v2029, %v2029
    %v2270 = vpack.c.bf16 %v2030, %v2030
    %v2271 = vpack.c.bf16 %v2031, %v2031
    %v2272 = vpack.c.bf16 %v2032, %v2032
    %v2273 = vpack.c.bf16 %v2033, %v2033
    %v2274 = vpack.c.bf16 %v2034, %v2034
    %v2275 = vpack.c.bf16 %v2035, %v2035
    %v2276 = vpack.c.bf16 %v2036, %v2036
    %v2277 = vpack.c.bf16 %v2037, %v2037
    %v2278 = vpack.c.bf16 %v2038, %v2038
    %v2279 = vpack.c.bf16 %v2039, %v2039
    %v2280 = vpack.c.bf16 %v2040, %v2040
    %v2281 = vpack.c.bf16 %v2041, %v2041
    %v2282 = vpack.c.bf16 %v2042, %v2042
    %2283 = vst [vmem:[#allocation2 + $0x10] sm:$0xf] %v2267
    %2284 = vst [vmem:[#allocation2 + $0x34] sm:$0xf] %v2268
    %2285 = vst [vmem:[#allocation2 + $0x58] sm:$0xf] %v2269
    %2286 = vst [vmem:[#allocation2 + $0x7c] sm:$0xf] %v2270
    %2287 = vst [vmem:[#allocation2 + $0xa0] sm:$0xf] %v2271
    %2288 = vst [vmem:[#allocation2 + $0xc4] sm:$0xf] %v2272
    %2289 = vst [vmem:[#allocation2 + $0xe8] sm:$0xf] %v2273
    %2290 = vst [vmem:[#allocation2 + $0x10c] sm:$0xf] %v2274
    %2291 = vst [vmem:[#allocation2 + $0x130] sm:$0xf] %v2275
    %2292 = vst [vmem:[#allocation2 + $0x154] sm:$0xf] %v2276
    %2293 = vst [vmem:[#allocation2 + $0x178] sm:$0xf] %v2277
    %2294 = vst [vmem:[#allocation2 + $0x19c] sm:$0xf] %v2278
    %2295 = vst [vmem:[#allocation2 + $0x1c0] sm:$0xf] %v2279
    %2296 = vst [vmem:[#allocation2 + $0x1e4] sm:$0xf] %v2280
    %2297 = vst [vmem:[#allocation2 + $0x208] sm:$0xf] %v2281
    %2298 = vst [vmem:[#allocation2 + $0x22c] sm:$0xf] %v2282
    %v2299 = vsel %vm35, %v2059, 0.0
    %v2300 = vsel %vm35, %v2060, 0.0
    %v2301 = vsel %vm35, %v2061, 0.0
    %v2302 = vsel %vm35, %v2062, 0.0
    %v2303 = vsel %vm35, %v2063, 0.0
    %v2304 = vsel %vm35, %v2064, 0.0
    %v2305 = vsel %vm35, %v2065, 0.0
    %v2306 = vsel %vm35, %v2066, 0.0
    %v2307 = vsel %vm35, %v2067, 0.0
    %v2308 = vsel %vm35, %v2068, 0.0
    %v2309 = vsel %vm35, %v2069, 0.0
    %v2310 = vsel %vm35, %v2070, 0.0
    %v2311 = vsel %vm35, %v2071, 0.0
    %v2312 = vsel %vm35, %v2072, 0.0
    %v2313 = vsel %vm35, %v2073, 0.0
    %v2314 = vsel %vm35, %v2074, 0.0
    %v2315 = vpack.c.bf16 %v2299, %v2299
    %v2316 = vpack.c.bf16 %v2300, %v2300
    %v2317 = vpack.c.bf16 %v2301, %v2301
    %v2318 = vpack.c.bf16 %v2302, %v2302
    %v2319 = vpack.c.bf16 %v2303, %v2303
    %v2320 = vpack.c.bf16 %v2304, %v2304
    %v2321 = vpack.c.bf16 %v2305, %v2305
    %v2322 = vpack.c.bf16 %v2306, %v2306
    %v2323 = vpack.c.bf16 %v2307, %v2307
    %v2324 = vpack.c.bf16 %v2308, %v2308
    %v2325 = vpack.c.bf16 %v2309, %v2309
    %v2326 = vpack.c.bf16 %v2310, %v2310
    %v2327 = vpack.c.bf16 %v2311, %v2311
    %v2328 = vpack.c.bf16 %v2312, %v2312
    %v2329 = vpack.c.bf16 %v2313, %v2313
    %v2330 = vpack.c.bf16 %v2314, %v2314
    %2331 = vst [vmem:[#allocation2 + $0x14] sm:$0xf] %v2315
    %2332 = vst [vmem:[#allocation2 + $0x38] sm:$0xf] %v2316
    %2333 = vst [vmem:[#allocation2 + $0x5c] sm:$0xf] %v2317
    %2334 = vst [vmem:[#allocation2 + $0x80] sm:$0xf] %v2318
    %2335 = vst [vmem:[#allocation2 + $0xa4] sm:$0xf] %v2319
    %2336 = vst [vmem:[#allocation2 + $0xc8] sm:$0xf] %v2320
    %2337 = vst [vmem:[#allocation2 + $0xec] sm:$0xf] %v2321
    %2338 = vst [vmem:[#allocation2 + $0x110] sm:$0xf] %v2322
    %2339 = vst [vmem:[#allocation2 + $0x134] sm:$0xf] %v2323
    %2340 = vst [vmem:[#allocation2 + $0x158] sm:$0xf] %v2324
    %2341 = vst [vmem:[#allocation2 + $0x17c] sm:$0xf] %v2325
    %2342 = vst [vmem:[#allocation2 + $0x1a0] sm:$0xf] %v2326
    %2343 = vst [vmem:[#allocation2 + $0x1c4] sm:$0xf] %v2327
    %2344 = vst [vmem:[#allocation2 + $0x1e8] sm:$0xf] %v2328
    %2345 = vst [vmem:[#allocation2 + $0x20c] sm:$0xf] %v2329
    %2346 = vst [vmem:[#allocation2 + $0x230] sm:$0xf] %v2330
    %v2347 = vsel %vm85, %v2050, 0.0
    %v2348 = vsel %vm84, %v2051, 0.0
    %v2349 = vsel %vm85, %v2058, 0.0
    %v2350 = vsel %vm84, %v2043, 0.0
    %v2351 = vpack.c.bf16 %v2347, %v2347
    %v2352 = vpack.c.bf16 %v2348, %v2348
    %v2353 = vpack.c.bf16 %v2349, %v2349
    %v2354 = vpack.c.bf16 %v2350, %v2350
    %2355 = vst [vmem:[#allocation2 + $0x18] sm:$0xf] %v2093
    %2356 = vst [vmem:[#allocation2 + $0x3c] sm:$0xf] %v2094
    %2357 = vst [vmem:[#allocation2 + $0x60] sm:$0xf] %v2095
    %2358 = vst [vmem:[#allocation2 + $0x84] sm:$0xf] %v2096
    %2359 = vst [vmem:[#allocation2 + $0xa8] sm:$0xf] %v2097
    %2360 = vst [vmem:[#allocation2 + $0xcc] sm:$0xf] %v2098
    %2361 = vst [vmem:[#allocation2 + $0xf0] sm:$0xf] %v2351
    %2362 = vst [vmem:[#allocation2 + $0x114] sm:$0xf] %v2352
    %2363 = vst [vmem:[#allocation2 + $0x138] sm:$0xf] %v2101
    %2364 = vst [vmem:[#allocation2 + $0x15c] sm:$0xf] %v2102
    %2365 = vst [vmem:[#allocation2 + $0x180] sm:$0xf] %v2103
    %2366 = vst [vmem:[#allocation2 + $0x1a4] sm:$0xf] %v2104
    %2367 = vst [vmem:[#allocation2 + $0x1c8] sm:$0xf] %v2105
    %2368 = vst [vmem:[#allocation2 + $0x1ec] sm:$0xf] %v2106
    %2369 = vst [vmem:[#allocation2 + $0x210] sm:$0xf] %v2353
    %2370 = vst [vmem:[#allocation2 + $0x234] sm:$0xf] %v2354
    %v2371 = vsel 1, %v2034, 0.0
    %v2372 = vsel 0, %v2035, 0.0
    %v2373 = vsel 1, %v2042, 0.0
    %v2374 = vsel 0, %v2027, 0.0
    %v2375 = vpack.c.bf16 %v2371, %v2371
    %v2376 = vpack.c.bf16 %v2372, %v2372
    %v2377 = vpack.c.bf16 %v2373, %v2373
    %v2378 = vpack.c.bf16 %v2374, %v2374
    %2379 = vst [vmem:[#allocation2 + $0x1c] sm:$0xf] %v2141
    %2380 = vst [vmem:[#allocation2 + $0x40] sm:$0xf] %v2142
    %2381 = vst [vmem:[#allocation2 + $0x64] sm:$0xf] %v2143
    %2382 = vst [vmem:[#allocation2 + $0x88] sm:$0xf] %v2144
    %2383 = vst [vmem:[#allocation2 + $0xac] sm:$0xf] %v2145
    %2384 = vst [vmem:[#allocation2 + $0xd0] sm:$0xf] %v2146
    %2385 = vst [vmem:[#allocation2 + $0xf4] sm:$0xf] %v2375
    %2386 = vst [vmem:[#allocation2 + $0x118] sm:$0xf] %v2376
    %2387 = vst [vmem:[#allocation2 + $0x13c] sm:$0xf] %v2149
    %2388 = vst [vmem:[#allocation2 + $0x160] sm:$0xf] %v2150
    %2389 = vst [vmem:[#allocation2 + $0x184] sm:$0xf] %v2151
    %2390 = vst [vmem:[#allocation2 + $0x1a8] sm:$0xf] %v2152
    %2391 = vst [vmem:[#allocation2 + $0x1cc] sm:$0xf] %v2153
    %2392 = vst [vmem:[#allocation2 + $0x1f0] sm:$0xf] %v2154
    %2393 = vst [vmem:[#allocation2 + $0x214] sm:$0xf] %v2377
    %2394 = vst [vmem:[#allocation2 + $0x238] sm:$0xf] %v2378
    %v2395 = vsel %vm183, %v2066, 0.0
    %v2396 = vsel %vm182, %v2067, 0.0
    %v2397 = vsel %vm183, %v2074, 0.0
    %v2398 = vsel %vm182, %v2059, 0.0
    %v2399 = vpack.c.bf16 %v2395, %v2395
    %v2400 = vpack.c.bf16 %v2396, %v2396
    %v2401 = vpack.c.bf16 %v2397, %v2397
    %v2402 = vpack.c.bf16 %v2398, %v2398
    %2403 = vst [vmem:[#allocation2 + $0x20] sm:$0xf] %v2189
    %2404 = vst [vmem:[#allocation2 + $0x44] sm:$0xf] %v2190
    %2405 = vst [vmem:[#allocation2 + $0x68] sm:$0xf] %v2191
    %2406 = vst [vmem:[#allocation2 + $0x8c] sm:$0xf] %v2192
    %2407 = vst [vmem:[#allocation2 + $0xb0] sm:$0xf] %v2193
    %2408 = vst [vmem:[#allocation2 + $0xd4] sm:$0xf] %v2194
    %2409 = vst [vmem:[#allocation2 + $0xf8] sm:$0xf] %v2399
    %2410 = vst [vmem:[#allocation2 + $0x11c] sm:$0xf] %v2400
    %2411 = vst [vmem:[#allocation2 + $0x140] sm:$0xf] %v2197
    %2412 = vst [vmem:[#allocation2 + $0x164] sm:$0xf] %v2198
    %2413 = vst [vmem:[#allocation2 + $0x188] sm:$0xf] %v2199
    %2414 = vst [vmem:[#allocation2 + $0x1ac] sm:$0xf] %v2200
    %2415 = vst [vmem:[#allocation2 + $0x1d0] sm:$0xf] %v2201
    %2416 = vst [vmem:[#allocation2 + $0x1f4] sm:$0xf] %v2202
    %2417 = vst [vmem:[#allocation2 + $0x218] sm:$0xf] %v2401
    %2418 = vst [vmem:[#allocation2 + $0x23c] sm:$0xf] %v2402
    %v2419 = vld [vmem:[#allocation2] sm:$0xff]
    %v2420 = vld [vmem:[#allocation2 + $0x8] sm:$0xff]
    %v2421 = vld [vmem:[#allocation2 + $0x10] sm:$0xff]
    %v2422 = vld [vmem:[#allocation2 + $0x18] sm:$0xff]
    %v2423 = vld [vmem:[#allocation2 + $0x20] sm:$0xf]
    %v2424 = vld [vmem:[#allocation2 + $0x24] sm:$0xff]
    %v2425 = vld [vmem:[#allocation2 + $0x2c] sm:$0xff]
    %v2426 = vld [vmem:[#allocation2 + $0x34] sm:$0xff]
    %v2427 = vld [vmem:[#allocation2 + $0x3c] sm:$0xff]
    %v2428 = vld [vmem:[#allocation2 + $0x44] sm:$0xf]
    %v2429 = vld [vmem:[#allocation2 + $0x48] sm:$0xff]
    %v2430 = vld [vmem:[#allocation2 + $0x50] sm:$0xff]
    %v2431 = vld [vmem:[#allocation2 + $0x58] sm:$0xff]
    %v2432 = vld [vmem:[#allocation2 + $0x60] sm:$0xff]
    %v2433 = vld [vmem:[#allocation2 + $0x68] sm:$0xf]
    %v2434 = vld [vmem:[#allocation2 + $0x6c] sm:$0xff]
    %v2435 = vld [vmem:[#allocation2 + $0x74] sm:$0xff]
    %v2436 = vld [vmem:[#allocation2 + $0x7c] sm:$0xff]
    %v2437 = vld [vmem:[#allocation2 + $0x84] sm:$0xff]
    %v2438 = vld [vmem:[#allocation2 + $0x8c] sm:$0xf]
    %v2439 = vld [vmem:[#allocation2 + $0x90] sm:$0xff]
    %v2440 = vld [vmem:[#allocation2 + $0x98] sm:$0xff]
    %v2441 = vld [vmem:[#allocation2 + $0xa0] sm:$0xff]
    %v2442 = vld [vmem:[#allocation2 + $0xa8] sm:$0xff]
    %v2443 = vld [vmem:[#allocation2 + $0xb0] sm:$0xf]
    %v2444 = vld [vmem:[#allocation2 + $0xb4] sm:$0xff]
    %v2445 = vld [vmem:[#allocation2 + $0xbc] sm:$0xff]
    %v2446 = vld [vmem:[#allocation2 + $0xc4] sm:$0xff]
    %v2447 = vld [vmem:[#allocation2 + $0xcc] sm:$0xff]
    %v2448 = vld [vmem:[#allocation2 + $0xd4] sm:$0xf]
    %v2449 = vld [vmem:[#allocation2 + $0xd8] sm:$0xff]
    %v2450 = vld [vmem:[#allocation2 + $0xe0] sm:$0xff]
    %v2451 = vld [vmem:[#allocation2 + $0xe8] sm:$0xff]
    %v2452 = vld [vmem:[#allocation2 + $0xf0] sm:$0xff]
    %v2453 = vld [vmem:[#allocation2 + $0xf8] sm:$0xf]
    %v2454 = vld [vmem:[#allocation2 + $0xfc] sm:$0xff]
    %v2455 = vld [vmem:[#allocation2 + $0x104] sm:$0xff]
    %v2456 = vld [vmem:[#allocation2 + $0x10c] sm:$0xff]
    %v2457 = vld [vmem:[#allocation2 + $0x114] sm:$0xff]
    %v2458 = vld [vmem:[#allocation2 + $0x11c] sm:$0xf]
    %v2459 = vld [vmem:[#allocation2 + $0x120] sm:$0xff]
    %v2460 = vld [vmem:[#allocation2 + $0x128] sm:$0xff]
    %v2461 = vld [vmem:[#allocation2 + $0x130] sm:$0xff]
    %v2462 = vld [vmem:[#allocation2 + $0x138] sm:$0xff]
    %v2463 = vld [vmem:[#allocation2 + $0x140] sm:$0xf]
    %v2464 = vld [vmem:[#allocation2 + $0x144] sm:$0xff]
    %v2465 = vld [vmem:[#allocation2 + $0x14c] sm:$0xff]
    %v2466 = vld [vmem:[#allocation2 + $0x154] sm:$0xff]
    %v2467 = vld [vmem:[#allocation2 + $0x15c] sm:$0xff]
    %v2468 = vld [vmem:[#allocation2 + $0x164] sm:$0xf]
    %v2469 = vld [vmem:[#allocation2 + $0x168] sm:$0xff]
    %v2470 = vld [vmem:[#allocation2 + $0x170] sm:$0xff]
    %v2471 = vld [vmem:[#allocation2 + $0x178] sm:$0xff]
    %v2472 = vld [vmem:[#allocation2 + $0x180] sm:$0xff]
    %v2473 = vld [vmem:[#allocation2 + $0x188] sm:$0xf]
    %v2474 = vld [vmem:[#allocation2 + $0x18c] sm:$0xff]
    %v2475 = vld [vmem:[#allocation2 + $0x194] sm:$0xff]
    %v2476 = vld [vmem:[#allocation2 + $0x19c] sm:$0xff]
    %v2477 = vld [vmem:[#allocation2 + $0x1a4] sm:$0xff]
    %v2478 = vld [vmem:[#allocation2 + $0x1ac] sm:$0xf]
    %v2479 = vld [vmem:[#allocation2 + $0x1b0] sm:$0xff]
    %v2480 = vld [vmem:[#allocation2 + $0x1b8] sm:$0xff]
    %v2481 = vld [vmem:[#allocation2 + $0x1c0] sm:$0xff]
    %v2482 = vld [vmem:[#allocation2 + $0x1c8] sm:$0xff]
    %v2483 = vld [vmem:[#allocation2 + $0x1d0] sm:$0xf]
    %v2484 = vld [vmem:[#allocation2 + $0x1d4] sm:$0xff]
    %v2485 = vld [vmem:[#allocation2 + $0x1dc] sm:$0xff]
    %v2486 = vld [vmem:[#allocation2 + $0x1e4] sm:$0xff]
    %v2487 = vld [vmem:[#allocation2 + $0x1ec] sm:$0xff]
    %v2488 = vld [vmem:[#allocation2 + $0x1f4] sm:$0xf]
    %v2489 = vld [vmem:[#allocation2 + $0x1f8] sm:$0xff]
    %v2490 = vld [vmem:[#allocation2 + $0x200] sm:$0xff]
    %v2491 = vld [vmem:[#allocation2 + $0x208] sm:$0xff]
    %v2492 = vld [vmem:[#allocation2 + $0x210] sm:$0xff]
    %v2493 = vld [vmem:[#allocation2 + $0x218] sm:$0xf]
    %v2494 = vld [vmem:[#allocation2 + $0x21c] sm:$0xff]
    %v2495 = vld [vmem:[#allocation2 + $0x224] sm:$0xff]
    %v2496 = vld [vmem:[#allocation2 + $0x22c] sm:$0xff]
    %v2497 = vld [vmem:[#allocation2 + $0x234] sm:$0xff]
    %v2498 = vld [vmem:[#allocation2 + $0x23c] sm:$0xf]
    %s2499 = scalar_lea.vmem %s1, 576
    %v2500 = vld [vmem:[%s2499] sm:$0xf]
    %v2501 = vld [vmem:[%s2499 + $0x4] sm:$0xf]
    %v2502 = vld [vmem:[%s2499 + $0x8] sm:$0xf]
    %v2503 = vld [vmem:[%s2499 + $0xc] sm:$0xf]
    %v2504 = vld [vmem:[%s2499 + $0x10] sm:$0xf]
    %v2505 = vld [vmem:[%s2499 + $0x14] sm:$0xf]
    %v2506 = vld [vmem:[%s2499 + $0x18] sm:$0xf]
    %v2507 = vld [vmem:[%s2499 + $0x1c] sm:$0xf]
    %v2508 = vld [vmem:[%s2499 + $0x20] sm:$0xf]
    %v2509 = vld [vmem:[%s2499 + $0x24] sm:$0xf]
    %v2510 = vld [vmem:[%s2499 + $0x28] sm:$0xf]
    %v2511 = vld [vmem:[%s2499 + $0x2c] sm:$0xf]
    %v2512 = vld [vmem:[%s2499 + $0x30] sm:$0xf]
    %v2513 = vld [vmem:[%s2499 + $0x34] sm:$0xf]
    %v2514 = vld [vmem:[%s2499 + $0x38] sm:$0xf]
    %v2515 = vld [vmem:[%s2499 + $0x3c] sm:$0xf]
    %v2516 = vld [vmem:[%s2499 + $0x40] sm:$0xf]
    %v2517 = vld [vmem:[%s2499 + $0x44] sm:$0xf]
    %v2518 = vld [vmem:[%s2499 + $0x48] sm:$0xf]
    %v2519 = vld [vmem:[%s2499 + $0x4c] sm:$0xf]
    %v2520 = vld [vmem:[%s2499 + $0x50] sm:$0xf]
    %v2521 = vld [vmem:[%s2499 + $0x54] sm:$0xf]
    %v2522 = vld [vmem:[%s2499 + $0x58] sm:$0xf]
    %v2523 = vld [vmem:[%s2499 + $0x5c] sm:$0xf]
    %v2524 = vld [vmem:[%s2499 + $0x60] sm:$0xf]
    %v2525 = vld [vmem:[%s2499 + $0x64] sm:$0xf]
    %v2526 = vld [vmem:[%s2499 + $0x68] sm:$0xf]
    %v2527 = vld [vmem:[%s2499 + $0x6c] sm:$0xf]
    %v2528 = vld [vmem:[%s2499 + $0x70] sm:$0xf]
    %v2529 = vld [vmem:[%s2499 + $0x74] sm:$0xf]
    %v2530 = vld [vmem:[%s2499 + $0x78] sm:$0xf]
    %v2531 = vld [vmem:[%s2499 + $0x7c] sm:$0xf]
    %v2532 = vld [vmem:[%s2499 + $0x80] sm:$0xf]
    %v2533 = vld [vmem:[%s2499 + $0x84] sm:$0xf]
    %v2534 = vld [vmem:[%s2499 + $0x88] sm:$0xf]
    %v2535 = vld [vmem:[%s2499 + $0x8c] sm:$0xf]
    %v2536 = vld [vmem:[%s2499 + $0x90] sm:$0xf]
    %v2537 = vld [vmem:[%s2499 + $0x94] sm:$0xf]
    %v2538 = vld [vmem:[%s2499 + $0x98] sm:$0xf]
    %v2539 = vld [vmem:[%s2499 + $0x9c] sm:$0xf]
    %v2540 = vld [vmem:[%s2499 + $0xa0] sm:$0xf]
    %v2541 = vld [vmem:[%s2499 + $0xa4] sm:$0xf]
    %v2542 = vld [vmem:[%s2499 + $0xa8] sm:$0xf]
    %v2543 = vld [vmem:[%s2499 + $0xac] sm:$0xf]
    %v2544 = vld [vmem:[%s2499 + $0xb0] sm:$0xf]
    %v2545 = vld [vmem:[%s2499 + $0xb4] sm:$0xf]
    %v2546 = vld [vmem:[%s2499 + $0xb8] sm:$0xf]
    %v2547 = vld [vmem:[%s2499 + $0xbc] sm:$0xf]
    %v2548 = vld [vmem:[%s2499 + $0xc0] sm:$0xf]
    %v2549 = vld [vmem:[%s2499 + $0xc4] sm:$0xf]
    %v2550 = vld [vmem:[%s2499 + $0xc8] sm:$0xf]
    %v2551 = vld [vmem:[%s2499 + $0xcc] sm:$0xf]
    %v2552 = vld [vmem:[%s2499 + $0xd0] sm:$0xf]
    %v2553 = vld [vmem:[%s2499 + $0xd4] sm:$0xf]
    %v2554 = vld [vmem:[%s2499 + $0xd8] sm:$0xf]
    %v2555 = vld [vmem:[%s2499 + $0xdc] sm:$0xf]
    %v2556 = vld [vmem:[%s2499 + $0xe0] sm:$0xf]
    %v2557 = vld [vmem:[%s2499 + $0xe4] sm:$0xf]
    %v2558 = vld [vmem:[%s2499 + $0xe8] sm:$0xf]
    %v2559 = vld [vmem:[%s2499 + $0xec] sm:$0xf]
    %v2560 = vld [vmem:[%s2499 + $0xf0] sm:$0xf]
    %v2561 = vld [vmem:[%s2499 + $0xf4] sm:$0xf]
    %v2562 = vld [vmem:[%s2499 + $0xf8] sm:$0xf]
    %v2563 = vld [vmem:[%s2499 + $0xfc] sm:$0xf]
    %v2564 = vld [vmem:[%s2499 + $0x100] sm:$0xf]
    %v2565 = vld [vmem:[%s2499 + $0x104] sm:$0xf]
    %v2566 = vld [vmem:[%s2499 + $0x108] sm:$0xf]
    %v2567 = vld [vmem:[%s2499 + $0x10c] sm:$0xf]
    %v2568 = vld [vmem:[%s2499 + $0x110] sm:$0xf]
    %v2569 = vld [vmem:[%s2499 + $0x114] sm:$0xf]
    %v2570 = vld [vmem:[%s2499 + $0x118] sm:$0xf]
    %v2571 = vld [vmem:[%s2499 + $0x11c] sm:$0xf]
    %v2572 = vld [vmem:[%s2499 + $0x120] sm:$0xf]
    %v2573 = vld [vmem:[%s2499 + $0x124] sm:$0xf]
    %v2574 = vld [vmem:[%s2499 + $0x128] sm:$0xf]
    %v2575 = vld [vmem:[%s2499 + $0x12c] sm:$0xf]
    %v2576 = vld [vmem:[%s2499 + $0x130] sm:$0xf]
    %v2577 = vld [vmem:[%s2499 + $0x134] sm:$0xf]
    %v2578 = vld [vmem:[%s2499 + $0x138] sm:$0xf]
    %v2579 = vld [vmem:[%s2499 + $0x13c] sm:$0xf]
    %v2580 = vld [vmem:[%s2499 + $0x140] sm:$0xf]
    %v2581 = vld [vmem:[%s2499 + $0x144] sm:$0xf]
    %v2582 = vld [vmem:[%s2499 + $0x148] sm:$0xf]
    %v2583 = vld [vmem:[%s2499 + $0x14c] sm:$0xf]
    %v2584 = vld [vmem:[%s2499 + $0x150] sm:$0xf]
    %v2585 = vld [vmem:[%s2499 + $0x154] sm:$0xf]
    %v2586 = vld [vmem:[%s2499 + $0x158] sm:$0xf]
    %v2587 = vld [vmem:[%s2499 + $0x15c] sm:$0xf]
    %v2588 = vld [vmem:[%s2499 + $0x160] sm:$0xf]
    %v2589 = vld [vmem:[%s2499 + $0x164] sm:$0xf]
    %v2590 = vld [vmem:[%s2499 + $0x168] sm:$0xf]
    %v2591 = vld [vmem:[%s2499 + $0x16c] sm:$0xf]
    %v2592 = vld [vmem:[%s2499 + $0x170] sm:$0xf]
    %v2593 = vld [vmem:[%s2499 + $0x174] sm:$0xf]
    %v2594 = vld [vmem:[%s2499 + $0x178] sm:$0xf]
    %v2595 = vld [vmem:[%s2499 + $0x17c] sm:$0xf]
    %v2596 = vld [vmem:[%s2499 + $0x180] sm:$0xf]
    %v2597 = vld [vmem:[%s2499 + $0x184] sm:$0xf]
    %v2598 = vld [vmem:[%s2499 + $0x188] sm:$0xf]
    %v2599 = vld [vmem:[%s2499 + $0x18c] sm:$0xf]
    %v2600 = vld [vmem:[%s2499 + $0x190] sm:$0xf]
    %v2601 = vld [vmem:[%s2499 + $0x194] sm:$0xf]
    %v2602 = vld [vmem:[%s2499 + $0x198] sm:$0xf]
    %v2603 = vld [vmem:[%s2499 + $0x19c] sm:$0xf]
    %v2604 = vld [vmem:[%s2499 + $0x1a0] sm:$0xf]
    %v2605 = vld [vmem:[%s2499 + $0x1a4] sm:$0xf]
    %v2606 = vld [vmem:[%s2499 + $0x1a8] sm:$0xf]
    %v2607 = vld [vmem:[%s2499 + $0x1ac] sm:$0xf]
    %v2608 = vld [vmem:[%s2499 + $0x1b0] sm:$0xf]
    %v2609 = vld [vmem:[%s2499 + $0x1b4] sm:$0xf]
    %v2610 = vld [vmem:[%s2499 + $0x1b8] sm:$0xf]
    %v2611 = vld [vmem:[%s2499 + $0x1bc] sm:$0xf]
    %v2612 = vld [vmem:[%s2499 + $0x1c0] sm:$0xf]
    %v2613 = vld [vmem:[%s2499 + $0x1c4] sm:$0xf]
    %v2614 = vld [vmem:[%s2499 + $0x1c8] sm:$0xf]
    %v2615 = vld [vmem:[%s2499 + $0x1cc] sm:$0xf]
    %v2616 = vld [vmem:[%s2499 + $0x1d0] sm:$0xf]
    %v2617 = vld [vmem:[%s2499 + $0x1d4] sm:$0xf]
    %v2618 = vld [vmem:[%s2499 + $0x1d8] sm:$0xf]
    %v2619 = vld [vmem:[%s2499 + $0x1dc] sm:$0xf]
    %v2620 = vld [vmem:[%s2499 + $0x1e0] sm:$0xf]
    %v2621 = vld [vmem:[%s2499 + $0x1e4] sm:$0xf]
    %v2622 = vld [vmem:[%s2499 + $0x1e8] sm:$0xf]
    %v2623 = vld [vmem:[%s2499 + $0x1ec] sm:$0xf]
    %v2624 = vld [vmem:[%s2499 + $0x1f0] sm:$0xf]
    %v2625 = vld [vmem:[%s2499 + $0x1f4] sm:$0xf]
    %v2626 = vld [vmem:[%s2499 + $0x1f8] sm:$0xf]
    %v2627 = vld [vmem:[%s2499 + $0x1fc] sm:$0xf]
    %v2628 = vld [vmem:[%s2499 + $0x200] sm:$0xf]
    %v2629 = vld [vmem:[%s2499 + $0x204] sm:$0xf]
    %v2630 = vld [vmem:[%s2499 + $0x208] sm:$0xf]
    %v2631 = vld [vmem:[%s2499 + $0x20c] sm:$0xf]
    %v2632 = vld [vmem:[%s2499 + $0x210] sm:$0xf]
    %v2633 = vld [vmem:[%s2499 + $0x214] sm:$0xf]
    %v2634 = vld [vmem:[%s2499 + $0x218] sm:$0xf]
    %v2635 = vld [vmem:[%s2499 + $0x21c] sm:$0xf]
    %v2636 = vld [vmem:[%s2499 + $0x220] sm:$0xf]
    %v2637 = vld [vmem:[%s2499 + $0x224] sm:$0xf]
    %v2638 = vld [vmem:[%s2499 + $0x228] sm:$0xf]
    %v2639 = vld [vmem:[%s2499 + $0x22c] sm:$0xf]
    %v2640 = vld [vmem:[%s2499 + $0x230] sm:$0xf]
    %v2641 = vld [vmem:[%s2499 + $0x234] sm:$0xf]
    %v2642 = vld [vmem:[%s2499 + $0x238] sm:$0xf]
    %v2643 = vld [vmem:[%s2499 + $0x23c] sm:$0xf]
    %v2724 = vunpack.c.l.b16 %v2419
    %v2725 = vunpack.c.h.b16 %v2419
    %v2726 = vunpack.c.l.b16 %v2420
    %v2727 = vunpack.c.h.b16 %v2420
    %v2728 = vunpack.c.l.b16 %v2421
    %v2729 = vunpack.c.h.b16 %v2421
    %v2730 = vunpack.c.l.b16 %v2422
    %v2731 = vunpack.c.h.b16 %v2422
    %v2732 = vunpack.c.l.b16 %v2423
    %v2733 = vunpack.c.l.b16 %v2424
    %v2734 = vunpack.c.h.b16 %v2424
    %v2735 = vunpack.c.l.b16 %v2425
    %v2736 = vunpack.c.h.b16 %v2425
    %v2737 = vunpack.c.l.b16 %v2426
    %v2738 = vunpack.c.h.b16 %v2426
    %v2739 = vunpack.c.l.b16 %v2427
    %v2740 = vunpack.c.h.b16 %v2427
    %v2741 = vunpack.c.l.b16 %v2428
    %v2742 = vunpack.c.l.b16 %v2429
    %v2743 = vunpack.c.h.b16 %v2429
    %v2744 = vunpack.c.l.b16 %v2430
    %v2745 = vunpack.c.h.b16 %v2430
    %v2746 = vunpack.c.l.b16 %v2431
    %v2747 = vunpack.c.h.b16 %v2431
    %v2748 = vunpack.c.l.b16 %v2432
    %v2749 = vunpack.c.h.b16 %v2432
    %v2750 = vunpack.c.l.b16 %v2433
    %v2751 = vunpack.c.l.b16 %v2434
    %v2752 = vunpack.c.h.b16 %v2434
    %v2753 = vunpack.c.l.b16 %v2435
    %v2754 = vunpack.c.h.b16 %v2435
    %v2755 = vunpack.c.l.b16 %v2436
    %v2756 = vunpack.c.h.b16 %v2436
    %v2757 = vunpack.c.l.b16 %v2437
    %v2758 = vunpack.c.h.b16 %v2437
    %v2759 = vunpack.c.l.b16 %v2438
    %v2760 = vunpack.c.l.b16 %v2439
    %v2761 = vunpack.c.h.b16 %v2439
    %v2762 = vunpack.c.l.b16 %v2440
    %v2763 = vunpack.c.h.b16 %v2440
    %v2764 = vunpack.c.l.b16 %v2441
    %v2765 = vunpack.c.h.b16 %v2441
    %v2766 = vunpack.c.l.b16 %v2442
    %v2767 = vunpack.c.h.b16 %v2442
    %v2768 = vunpack.c.l.b16 %v2443
    %v2769 = vunpack.c.l.b16 %v2444
    %v2770 = vunpack.c.h.b16 %v2444
    %v2771 = vunpack.c.l.b16 %v2445
    %v2772 = vunpack.c.h.b16 %v2445
    %v2773 = vunpack.c.l.b16 %v2446
    %v2774 = vunpack.c.h.b16 %v2446
    %v2775 = vunpack.c.l.b16 %v2447
    %v2776 = vunpack.c.h.b16 %v2447
    %v2777 = vunpack.c.l.b16 %v2448
    %v2778 = vunpack.c.l.b16 %v2449
    %v2779 = vunpack.c.h.b16 %v2449
    %v2780 = vunpack.c.l.b16 %v2450
    %v2781 = vunpack.c.h.b16 %v2450
    %v2782 = vunpack.c.l.b16 %v2451
    %v2783 = vunpack.c.h.b16 %v2451
    %v2784 = vunpack.c.l.b16 %v2452
    %v2785 = vunpack.c.h.b16 %v2452
    %v2786 = vunpack.c.l.b16 %v2453
    %v2787 = vunpack.c.l.b16 %v2454
    %v2788 = vunpack.c.h.b16 %v2454
    %v2789 = vunpack.c.l.b16 %v2455
    %v2790 = vunpack.c.h.b16 %v2455
    %v2791 = vunpack.c.l.b16 %v2456
    %v2792 = vunpack.c.h.b16 %v2456
    %v2793 = vunpack.c.l.b16 %v2457
    %v2794 = vunpack.c.h.b16 %v2457
    %v2795 = vunpack.c.l.b16 %v2458
    %v2796 = vunpack.c.l.b16 %v2459
    %v2797 = vunpack.c.h.b16 %v2459
    %v2798 = vunpack.c.l.b16 %v2460
    %v2799 = vunpack.c.h.b16 %v2460
    %v2800 = vunpack.c.l.b16 %v2461
    %v2801 = vunpack.c.h.b16 %v2461
    %v2802 = vunpack.c.l.b16 %v2462
    %v2803 = vunpack.c.h.b16 %v2462
    %v2804 = vunpack.c.l.b16 %v2463
    %v2805 = vunpack.c.l.b16 %v2464
    %v2806 = vunpack.c.h.b16 %v2464
    %v2807 = vunpack.c.l.b16 %v2465
    %v2808 = vunpack.c.h.b16 %v2465
    %v2809 = vunpack.c.l.b16 %v2466
    %v2810 = vunpack.c.h.b16 %v2466
    %v2811 = vunpack.c.l.b16 %v2467
    %v2812 = vunpack.c.h.b16 %v2467
    %v2813 = vunpack.c.l.b16 %v2468
    %v2814 = vunpack.c.l.b16 %v2469
    %v2815 = vunpack.c.h.b16 %v2469
    %v2816 = vunpack.c.l.b16 %v2470
    %v2817 = vunpack.c.h.b16 %v2470
    %v2818 = vunpack.c.l.b16 %v2471
    %v2819 = vunpack.c.h.b16 %v2471
    %v2820 = vunpack.c.l.b16 %v2472
    %v2821 = vunpack.c.h.b16 %v2472
    %v2822 = vunpack.c.l.b16 %v2473
    %v2823 = vunpack.c.l.b16 %v2474
    %v2824 = vunpack.c.h.b16 %v2474
    %v2825 = vunpack.c.l.b16 %v2475
    %v2826 = vunpack.c.h.b16 %v2475
    %v2827 = vunpack.c.l.b16 %v2476
    %v2828 = vunpack.c.h.b16 %v2476
    %v2829 = vunpack.c.l.b16 %v2477
    %v2830 = vunpack.c.h.b16 %v2477
    %v2831 = vunpack.c.l.b16 %v2478
    %v2832 = vunpack.c.l.b16 %v2479
    %v2833 = vunpack.c.h.b16 %v2479
    %v2834 = vunpack.c.l.b16 %v2480
    %v2835 = vunpack.c.h.b16 %v2480
    %v2836 = vunpack.c.l.b16 %v2481
    %v2837 = vunpack.c.h.b16 %v2481
    %v2838 = vunpack.c.l.b16 %v2482
    %v2839 = vunpack.c.h.b16 %v2482
    %v2840 = vunpack.c.l.b16 %v2483
    %v2841 = vunpack.c.l.b16 %v2484
    %v2842 = vunpack.c.h.b16 %v2484
    %v2843 = vunpack.c.l.b16 %v2485
    %v2844 = vunpack.c.h.b16 %v2485
    %v2845 = vunpack.c.l.b16 %v2486
    %v2846 = vunpack.c.h.b16 %v2486
    %v2847 = vunpack.c.l.b16 %v2487
    %v2848 = vunpack.c.h.b16 %v2487
    %v2849 = vunpack.c.l.b16 %v2488
    %v2850 = vunpack.c.l.b16 %v2489
    %v2851 = vunpack.c.h.b16 %v2489
    %v2852 = vunpack.c.l.b16 %v2490
    %v2853 = vunpack.c.h.b16 %v2490
    %v2854 = vunpack.c.l.b16 %v2491
    %v2855 = vunpack.c.h.b16 %v2491
    %v2856 = vunpack.c.l.b16 %v2492
    %v2857 = vunpack.c.h.b16 %v2492
    %v2858 = vunpack.c.l.b16 %v2493
    %v2859 = vunpack.c.l.b16 %v2494
    %v2860 = vunpack.c.h.b16 %v2494
    %v2861 = vunpack.c.l.b16 %v2495
    %v2862 = vunpack.c.h.b16 %v2495
    %v2863 = vunpack.c.l.b16 %v2496
    %v2864 = vunpack.c.h.b16 %v2496
    %v2865 = vunpack.c.l.b16 %v2497
    %v2866 = vunpack.c.h.b16 %v2497
    %v2867 = vunpack.c.l.b16 %v2498
    %v2868 = vpack.c.b16 %v2733, %v2724
    %v2869 = vpack.c.b16 %v2734, %v2725
    %v2870 = vpack.c.b16 %v2735, %v2726
    %v2871 = vpack.c.b16 %v2736, %v2727
    %v2872 = vpack.c.b16 %v2737, %v2728
    %v2873 = vpack.c.b16 %v2738, %v2729
    %v2874 = vpack.c.b16 %v2739, %v2730
    %v2875 = vpack.c.b16 %v2740, %v2731
    %v2876 = vpack.c.b16 %v2741, %v2732
    %v2877 = vpack.c.b16 %v2751, %v2742
    %v2878 = vpack.c.b16 %v2752, %v2743
    %v2879 = vpack.c.b16 %v2753, %v2744
    %v2880 = vpack.c.b16 %v2754, %v2745
    %v2881 = vpack.c.b16 %v2755, %v2746
    %v2882 = vpack.c.b16 %v2756, %v2747
    %v2883 = vpack.c.b16 %v2757, %v2748
    %v2884 = vpack.c.b16 %v2758, %v2749
    %v2885 = vpack.c.b16 %v2759, %v2750
    %v2886 = vpack.c.b16 %v2769, %v2760
    %v2887 = vpack.c.b16 %v2770, %v2761
    %v2888 = vpack.c.b16 %v2771, %v2762
    %v2889 = vpack.c.b16 %v2772, %v2763
    %v2890 = vpack.c.b16 %v2773, %v2764
    %v2891 = vpack.c.b16 %v2774, %v2765
    %v2892 = vpack.c.b16 %v2775, %v2766
    %v2893 = vpack.c.b16 %v2776, %v2767
    %v2894 = vpack.c.b16 %v2777, %v2768
    %v2895 = vpack.c.b16 %v2787, %v2778
    %v2896 = vpack.c.b16 %v2788, %v2779
    %v2897 = vpack.c.b16 %v2789, %v2780
    %v2898 = vpack.c.b16 %v2790, %v2781
    %v2899 = vpack.c.b16 %v2791, %v2782
    %v2900 = vpack.c.b16 %v2792, %v2783
    %v2901 = vpack.c.b16 %v2793, %v2784
    %v2902 = vpack.c.b16 %v2794, %v2785
    %v2903 = vpack.c.b16 %v2795, %v2786
    %v2904 = vpack.c.b16 %v2805, %v2796
    %v2905 = vpack.c.b16 %v2806, %v2797
    %v2906 = vpack.c.b16 %v2807, %v2798
    %v2907 = vpack.c.b16 %v2808, %v2799
    %v2908 = vpack.c.b16 %v2809, %v2800
    %v2909 = vpack.c.b16 %v2810, %v2801
    %v2910 = vpack.c.b16 %v2811, %v2802
    %v2911 = vpack.c.b16 %v2812, %v2803
    %v2912 = vpack.c.b16 %v2813, %v2804
    %v2913 = vpack.c.b16 %v2823, %v2814
    %v2914 = vpack.c.b16 %v2824, %v2815
    %v2915 = vpack.c.b16 %v2825, %v2816
    %v2916 = vpack.c.b16 %v2826, %v2817
    %v2917 = vpack.c.b16 %v2827, %v2818
    %v2918 = vpack.c.b16 %v2828, %v2819
    %v2919 = vpack.c.b16 %v2829, %v2820
    %v2920 = vpack.c.b16 %v2830, %v2821
    %v2921 = vpack.c.b16 %v2831, %v2822
    %v2922 = vpack.c.b16 %v2841, %v2832
    %v2923 = vpack.c.b16 %v2842, %v2833
    %v2924 = vpack.c.b16 %v2843, %v2834
    %v2925 = vpack.c.b16 %v2844, %v2835
    %v2926 = vpack.c.b16 %v2845, %v2836
    %v2927 = vpack.c.b16 %v2846, %v2837
    %v2928 = vpack.c.b16 %v2847, %v2838
    %v2929 = vpack.c.b16 %v2848, %v2839
    %v2930 = vpack.c.b16 %v2849, %v2840
    %v2931 = vpack.c.b16 %v2859, %v2850
    %v2932 = vpack.c.b16 %v2860, %v2851
    %v2933 = vpack.c.b16 %v2861, %v2852
    %v2934 = vpack.c.b16 %v2862, %v2853
    %v2935 = vpack.c.b16 %v2863, %v2854
    %v2936 = vpack.c.b16 %v2864, %v2855
    %v2937 = vpack.c.b16 %v2865, %v2856
    %v2938 = vpack.c.b16 %v2866, %v2857
    %v2939 = vpack.c.b16 %v2867, %v2858
    %v3156 = vunpack.c.l.b16 %v2500
    %v3157 = vunpack.c.l.b16 %v2501
    %v3158 = vunpack.c.l.b16 %v2502
    %v3159 = vunpack.c.l.b16 %v2503
    %v3160 = vunpack.c.l.b16 %v2504
    %v3161 = vunpack.c.l.b16 %v2505
    %v3162 = vunpack.c.l.b16 %v2506
    %v3163 = vunpack.c.l.b16 %v2507
    %v3164 = vunpack.c.l.b16 %v2508
    %v3165 = vunpack.c.l.b16 %v2509
    %v3166 = vunpack.c.l.b16 %v2510
    %v3167 = vunpack.c.l.b16 %v2511
    %v3168 = vunpack.c.l.b16 %v2512
    %v3169 = vunpack.c.l.b16 %v2513
    %v3170 = vunpack.c.l.b16 %v2514
    %v3171 = vunpack.c.l.b16 %v2515
    %v3172 = vunpack.c.l.b16 %v2516
    %v3173 = vunpack.c.l.b16 %v2517
    %v3174 = vunpack.c.l.b16 %v2518
    %v3175 = vunpack.c.l.b16 %v2519
    %v3176 = vunpack.c.l.b16 %v2520
    %v3177 = vunpack.c.l.b16 %v2521
    %v3178 = vunpack.c.l.b16 %v2522
    %v3179 = vunpack.c.l.b16 %v2523
    %v3180 = vunpack.c.l.b16 %v2524
    %v3181 = vunpack.c.l.b16 %v2525
    %v3182 = vunpack.c.l.b16 %v2526
    %v3183 = vunpack.c.l.b16 %v2527
    %v3184 = vunpack.c.l.b16 %v2528
    %v3185 = vunpack.c.l.b16 %v2529
    %v3186 = vunpack.c.l.b16 %v2530
    %v3187 = vunpack.c.l.b16 %v2531
    %v3188 = vunpack.c.l.b16 %v2532
    %v3189 = vunpack.c.l.b16 %v2533
    %v3190 = vunpack.c.l.b16 %v2534
    %v3191 = vunpack.c.l.b16 %v2535
    %v3192 = vunpack.c.l.b16 %v2536
    %v3193 = vunpack.c.l.b16 %v2537
    %v3194 = vunpack.c.l.b16 %v2538
    %v3195 = vunpack.c.l.b16 %v2539
    %v3196 = vunpack.c.l.b16 %v2540
    %v3197 = vunpack.c.l.b16 %v2541
    %v3198 = vunpack.c.l.b16 %v2542
    %v3199 = vunpack.c.l.b16 %v2543
    %v3200 = vunpack.c.l.b16 %v2544
    %v3201 = vunpack.c.l.b16 %v2545
    %v3202 = vunpack.c.l.b16 %v2546
    %v3203 = vunpack.c.l.b16 %v2547
    %v3204 = vunpack.c.l.b16 %v2548
    %v3205 = vunpack.c.l.b16 %v2549
    %v3206 = vunpack.c.l.b16 %v2550
    %v3207 = vunpack.c.l.b16 %v2551
    %v3208 = vunpack.c.l.b16 %v2552
    %v3209 = vunpack.c.l.b16 %v2553
    %v3210 = vunpack.c.l.b16 %v2554
    %v3211 = vunpack.c.l.b16 %v2555
    %v3212 = vunpack.c.l.b16 %v2556
    %v3213 = vunpack.c.l.b16 %v2557
    %v3214 = vunpack.c.l.b16 %v2558
    %v3215 = vunpack.c.l.b16 %v2559
    %v3216 = vunpack.c.l.b16 %v2560
    %v3217 = vunpack.c.l.b16 %v2561
    %v3218 = vunpack.c.l.b16 %v2562
    %v3219 = vunpack.c.l.b16 %v2563
    %v3220 = vunpack.c.l.b16 %v2564
    %v3221 = vunpack.c.l.b16 %v2565
    %v3222 = vunpack.c.l.b16 %v2566
    %v3223 = vunpack.c.l.b16 %v2567
    %v3224 = vunpack.c.l.b16 %v2568
    %v3225 = vunpack.c.l.b16 %v2569
    %v3226 = vunpack.c.l.b16 %v2570
    %v3227 = vunpack.c.l.b16 %v2571
    %v3228 = vunpack.c.l.b16 %v2572
    %v3229 = vunpack.c.l.b16 %v2573
    %v3230 = vunpack.c.l.b16 %v2574
    %v3231 = vunpack.c.l.b16 %v2575
    %v3232 = vunpack.c.l.b16 %v2576
    %v3233 = vunpack.c.l.b16 %v2577
    %v3234 = vunpack.c.l.b16 %v2578
    %v3235 = vunpack.c.l.b16 %v2579
    %v3236 = vunpack.c.l.b16 %v2580
    %v3237 = vunpack.c.l.b16 %v2581
    %v3238 = vunpack.c.l.b16 %v2582
    %v3239 = vunpack.c.l.b16 %v2583
    %v3240 = vunpack.c.l.b16 %v2584
    %v3241 = vunpack.c.l.b16 %v2585
    %v3242 = vunpack.c.l.b16 %v2586
    %v3243 = vunpack.c.l.b16 %v2587
    %v3244 = vunpack.c.l.b16 %v2588
    %v3245 = vunpack.c.l.b16 %v2589
    %v3246 = vunpack.c.l.b16 %v2590
    %v3247 = vunpack.c.l.b16 %v2591
    %v3248 = vunpack.c.l.b16 %v2592
    %v3249 = vunpack.c.l.b16 %v2593
    %v3250 = vunpack.c.l.b16 %v2594
    %v3251 = vunpack.c.l.b16 %v2595
    %v3252 = vunpack.c.l.b16 %v2596
    %v3253 = vunpack.c.l.b16 %v2597
    %v3254 = vunpack.c.l.b16 %v2598
    %v3255 = vunpack.c.l.b16 %v2599
    %v3256 = vunpack.c.l.b16 %v2600
    %v3257 = vunpack.c.l.b16 %v2601
    %v3258 = vunpack.c.l.b16 %v2602
    %v3259 = vunpack.c.l.b16 %v2603
    %v3260 = vunpack.c.l.b16 %v2604
    %v3261 = vunpack.c.l.b16 %v2605
    %v3262 = vunpack.c.l.b16 %v2606
    %v3263 = vunpack.c.l.b16 %v2607
    %v3264 = vunpack.c.l.b16 %v2608
    %v3265 = vunpack.c.l.b16 %v2609
    %v3266 = vunpack.c.l.b16 %v2610
    %v3267 = vunpack.c.l.b16 %v2611
    %v3268 = vunpack.c.l.b16 %v2612
    %v3269 = vunpack.c.l.b16 %v2613
    %v3270 = vunpack.c.l.b16 %v2614
    %v3271 = vunpack.c.l.b16 %v2615
    %v3272 = vunpack.c.l.b16 %v2616
    %v3273 = vunpack.c.l.b16 %v2617
    %v3274 = vunpack.c.l.b16 %v2618
    %v3275 = vunpack.c.l.b16 %v2619
    %v3276 = vunpack.c.l.b16 %v2620
    %v3277 = vunpack.c.l.b16 %v2621
    %v3278 = vunpack.c.l.b16 %v2622
    %v3279 = vunpack.c.l.b16 %v2623
    %v3280 = vunpack.c.l.b16 %v2624
    %v3281 = vunpack.c.l.b16 %v2625
    %v3282 = vunpack.c.l.b16 %v2626
    %v3283 = vunpack.c.l.b16 %v2627
    %v3284 = vunpack.c.l.b16 %v2628
    %v3285 = vunpack.c.l.b16 %v2629
    %v3286 = vunpack.c.l.b16 %v2630
    %v3287 = vunpack.c.l.b16 %v2631
    %v3288 = vunpack.c.l.b16 %v2632
    %v3289 = vunpack.c.l.b16 %v2633
    %v3290 = vunpack.c.l.b16 %v2634
    %v3291 = vunpack.c.l.b16 %v2635
    %v3292 = vunpack.c.l.b16 %v2636
    %v3293 = vunpack.c.l.b16 %v2637
    %v3294 = vunpack.c.l.b16 %v2638
    %v3295 = vunpack.c.l.b16 %v2639
    %v3296 = vunpack.c.l.b16 %v2640
    %v3297 = vunpack.c.l.b16 %v2641
    %v3298 = vunpack.c.l.b16 %v2642
    %v3299 = vunpack.c.l.b16 %v2643
    %v3300 = vpack.c.b16 %v3157, %v3156
    %v3301 = vpack.c.b16 %v3159, %v3158
    %v3302 = vpack.c.b16 %v3161, %v3160
    %v3303 = vpack.c.b16 %v3163, %v3162
    %v3304 = vpack.c.b16 %v3165, %v3164
    %v3305 = vpack.c.b16 %v3167, %v3166
    %v3306 = vpack.c.b16 %v3169, %v3168
    %v3307 = vpack.c.b16 %v3171, %v3170
    %v3308 = vpack.c.b16 %v3173, %v3172
    %v3309 = vpack.c.b16 %v3175, %v3174
    %v3310 = vpack.c.b16 %v3177, %v3176
    %v3311 = vpack.c.b16 %v3179, %v3178
    %v3312 = vpack.c.b16 %v3181, %v3180
    %v3313 = vpack.c.b16 %v3183, %v3182
    %v3314 = vpack.c.b16 %v3185, %v3184
    %v3315 = vpack.c.b16 %v3187, %v3186
    %v3316 = vpack.c.b16 %v3189, %v3188
    %v3317 = vpack.c.b16 %v3191, %v3190
    %v3318 = vpack.c.b16 %v3193, %v3192
    %v3319 = vpack.c.b16 %v3195, %v3194
    %v3320 = vpack.c.b16 %v3197, %v3196
    %v3321 = vpack.c.b16 %v3199, %v3198
    %v3322 = vpack.c.b16 %v3201, %v3200
    %v3323 = vpack.c.b16 %v3203, %v3202
    %v3324 = vpack.c.b16 %v3205, %v3204
    %v3325 = vpack.c.b16 %v3207, %v3206
    %v3326 = vpack.c.b16 %v3209, %v3208
    %v3327 = vpack.c.b16 %v3211, %v3210
    %v3328 = vpack.c.b16 %v3213, %v3212
    %v3329 = vpack.c.b16 %v3215, %v3214
    %v3330 = vpack.c.b16 %v3217, %v3216
    %v3331 = vpack.c.b16 %v3219, %v3218
    %v3332 = vpack.c.b16 %v3221, %v3220
    %v3333 = vpack.c.b16 %v3223, %v3222
    %v3334 = vpack.c.b16 %v3225, %v3224
    %v3335 = vpack.c.b16 %v3227, %v3226
    %v3336 = vpack.c.b16 %v3229, %v3228
    %v3337 = vpack.c.b16 %v3231, %v3230
    %v3338 = vpack.c.b16 %v3233, %v3232
    %v3339 = vpack.c.b16 %v3235, %v3234
    %v3340 = vpack.c.b16 %v3237, %v3236
    %v3341 = vpack.c.b16 %v3239, %v3238
    %v3342 = vpack.c.b16 %v3241, %v3240
    %v3343 = vpack.c.b16 %v3243, %v3242
    %v3344 = vpack.c.b16 %v3245, %v3244
    %v3345 = vpack.c.b16 %v3247, %v3246
    %v3346 = vpack.c.b16 %v3249, %v3248
    %v3347 = vpack.c.b16 %v3251, %v3250
    %v3348 = vpack.c.b16 %v3253, %v3252
    %v3349 = vpack.c.b16 %v3255, %v3254
    %v3350 = vpack.c.b16 %v3257, %v3256
    %v3351 = vpack.c.b16 %v3259, %v3258
    %v3352 = vpack.c.b16 %v3261, %v3260
    %v3353 = vpack.c.b16 %v3263, %v3262
    %v3354 = vpack.c.b16 %v3265, %v3264
    %v3355 = vpack.c.b16 %v3267, %v3266
    %v3356 = vpack.c.b16 %v3269, %v3268
    %v3357 = vpack.c.b16 %v3271, %v3270
    %v3358 = vpack.c.b16 %v3273, %v3272
    %v3359 = vpack.c.b16 %v3275, %v3274
    %v3360 = vpack.c.b16 %v3277, %v3276
    %v3361 = vpack.c.b16 %v3279, %v3278
    %v3362 = vpack.c.b16 %v3281, %v3280
    %v3363 = vpack.c.b16 %v3283, %v3282
    %v3364 = vpack.c.b16 %v3285, %v3284
    %v3365 = vpack.c.b16 %v3287, %v3286
    %v3366 = vpack.c.b16 %v3289, %v3288
    %v3367 = vpack.c.b16 %v3291, %v3290
    %v3368 = vpack.c.b16 %v3293, %v3292
    %v3369 = vpack.c.b16 %v3295, %v3294
    %v3370 = vpack.c.b16 %v3297, %v3296
    %v3371 = vpack.c.b16 %v3299, %v3298
    %3444 = vmatpush.bf16.msra.mxu0 %v3307
    %3445 = vmatpush.bf16.msra.mxu0 %v3306
    %3446 = vmatpush.bf16.msra.mxu0 %v3305
    %3447 = vmatpush.bf16.msra.mxu0 %v3304
    %3448 = vmatpush.bf16.msra.mxu0 %v3303
    %3449 = vmatpush.bf16.msra.mxu0 %v3302
    %3450 = vmatpush.bf16.msra.mxu0 %v3301
    %3451 = vmatpush.bf16.msra.mxu0 %v3300
    %3452 = vmatmul.bf16.gmra.mxu0 %v2868
    %v3453 = vpop.f32.mrf.mxu0
    %v3454 = vadd.f32 0.0, %v3453
    %v3455 = vpop.f32.mrf.mxu0
    %v3456 = vadd.f32 0.0, %v3455
    %3457 = vmatmul.bf16.gmra.mxu0 %v2877
    %v3458 = vpop.f32.mrf.mxu0
    %v3459 = vadd.f32 0.0, %v3458
    %v3460 = vpop.f32.mrf.mxu0
    %v3461 = vadd.f32 0.0, %v3460
    %3462 = vmatmul.bf16.gmra.mxu0 %v2886
    %v3463 = vpop.f32.mrf.mxu0
    %v3464 = vadd.f32 0.0, %v3463
    %v3465 = vpop.f32.mrf.mxu0
    %v3466 = vadd.f32 0.0, %v3465
    %3467 = vmatmul.bf16.gmra.mxu0 %v2895
    %v3468 = vpop.f32.mrf.mxu0
    %v3469 = vadd.f32 0.0, %v3468
    %v3470 = vpop.f32.mrf.mxu0
    %v3471 = vadd.f32 0.0, %v3470
    %3472 = vmatmul.bf16.gmra.mxu0 %v2904
    %v3473 = vpop.f32.mrf.mxu0
    %v3474 = vadd.f32 0.0, %v3473
    %v3475 = vpop.f32.mrf.mxu0
    %v3476 = vadd.f32 0.0, %v3475
    %3477 = vmatmul.bf16.gmra.mxu0 %v2913
    %v3478 = vpop.f32.mrf.mxu0
    %v3479 = vadd.f32 0.0, %v3478
    %v3480 = vpop.f32.mrf.mxu0
    %v3481 = vadd.f32 0.0, %v3480
    %3482 = vmatmul.bf16.gmra.mxu0 %v2922
    %v3483 = vpop.f32.mrf.mxu0
    %v3484 = vadd.f32 0.0, %v3483
    %v3485 = vpop.f32.mrf.mxu0
    %v3486 = vadd.f32 0.0, %v3485
    %3487 = vmatmul.bf16.gmra.mxu0 %v2931
    %v3488 = vpop.f32.mrf.mxu0
    %v3489 = vadd.f32 0.0, %v3488
    %v3490 = vpop.f32.mrf.mxu0
    %v3491 = vadd.f32 0.0, %v3490
    %3492 = vdwg.mxu0
    %3493 = vmatpush.bf16.msra.mxu0 %v3315
    %3494 = vmatpush.bf16.msra.mxu0 %v3314
    %3495 = vmatpush.bf16.msra.mxu0 %v3313
    %3496 = vmatpush.bf16.msra.mxu0 %v3312
    %3497 = vmatpush.bf16.msra.mxu0 %v3311
    %3498 = vmatpush.bf16.msra.mxu0 %v3310
    %3499 = vmatpush.bf16.msra.mxu0 %v3309
    %3500 = vmatpush.bf16.msra.mxu0 %v3308
    %3501 = vmatmul.bf16.gmra.mxu0 %v2869
    %v3502 = vpop.f32.mrf.mxu0
    %v3503 = vadd.f32 %v3454, %v3502
    %v3504 = vpop.f32.mrf.mxu0
    %v3505 = vadd.f32 %v3456, %v3504
    %3506 = vmatmul.bf16.gmra.mxu0 %v2878
    %v3507 = vpop.f32.mrf.mxu0
    %v3508 = vadd.f32 %v3459, %v3507
    %v3509 = vpop.f32.mrf.mxu0
    %v3510 = vadd.f32 %v3461, %v3509
    %3511 = vmatmul.bf16.gmra.mxu0 %v2887
    %v3512 = vpop.f32.mrf.mxu0
    %v3513 = vadd.f32 %v3464, %v3512
    %v3514 = vpop.f32.mrf.mxu0
    %v3515 = vadd.f32 %v3466, %v3514
    %3516 = vmatmul.bf16.gmra.mxu0 %v2896
    %v3517 = vpop.f32.mrf.mxu0
    %v3518 = vadd.f32 %v3469, %v3517
    %v3519 = vpop.f32.mrf.mxu0
    %v3520 = vadd.f32 %v3471, %v3519
    %3521 = vmatmul.bf16.gmra.mxu0 %v2905
    %v3522 = vpop.f32.mrf.mxu0
    %v3523 = vadd.f32 %v3474, %v3522
    %v3524 = vpop.f32.mrf.mxu0
    %v3525 = vadd.f32 %v3476, %v3524
    %3526 = vmatmul.bf16.gmra.mxu0 %v2914
    %v3527 = vpop.f32.mrf.mxu0
    %v3528 = vadd.f32 %v3479, %v3527
    %v3529 = vpop.f32.mrf.mxu0
    %v3530 = vadd.f32 %v3481, %v3529
    %3531 = vmatmul.bf16.gmra.mxu0 %v2923
    %v3532 = vpop.f32.mrf.mxu0
    %v3533 = vadd.f32 %v3484, %v3532
    %v3534 = vpop.f32.mrf.mxu0
    %v3535 = vadd.f32 %v3486, %v3534
    %3536 = vmatmul.bf16.gmra.mxu0 %v2932
    %v3537 = vpop.f32.mrf.mxu0
    %v3538 = vadd.f32 %v3489, %v3537
    %v3539 = vpop.f32.mrf.mxu0
    %v3540 = vadd.f32 %v3491, %v3539
    %3541 = vdwg.mxu0
    %3542 = vmatpush.bf16.msra.mxu0 %v3323
    %3543 = vmatpush.bf16.msra.mxu0 %v3322
    %3544 = vmatpush.bf16.msra.mxu0 %v3321
    %3545 = vmatpush.bf16.msra.mxu0 %v3320
    %3546 = vmatpush.bf16.msra.mxu0 %v3319
    %3547 = vmatpush.bf16.msra.mxu0 %v3318
    %3548 = vmatpush.bf16.msra.mxu0 %v3317
    %3549 = vmatpush.bf16.msra.mxu0 %v3316
    %3550 = vmatmul.bf16.gmra.mxu0 %v2870
    %v3551 = vpop.f32.mrf.mxu0
    %v3552 = vadd.f32 %v3503, %v3551
    %v3553 = vpop.f32.mrf.mxu0
    %v3554 = vadd.f32 %v3505, %v3553
    %3555 = vmatmul.bf16.gmra.mxu0 %v2879
    %v3556 = vpop.f32.mrf.mxu0
    %v3557 = vadd.f32 %v3508, %v3556
    %v3558 = vpop.f32.mrf.mxu0
    %v3559 = vadd.f32 %v3510, %v3558
    %3560 = vmatmul.bf16.gmra.mxu0 %v2888
    %v3561 = vpop.f32.mrf.mxu0
    %v3562 = vadd.f32 %v3513, %v3561
    %v3563 = vpop.f32.mrf.mxu0
    %v3564 = vadd.f32 %v3515, %v3563
    %3565 = vmatmul.bf16.gmra.mxu0 %v2897
    %v3566 = vpop.f32.mrf.mxu0
    %v3567 = vadd.f32 %v3518, %v3566
    %v3568 = vpop.f32.mrf.mxu0
    %v3569 = vadd.f32 %v3520, %v3568
    %3570 = vmatmul.bf16.gmra.mxu0 %v2906
    %v3571 = vpop.f32.mrf.mxu0
    %v3572 = vadd.f32 %v3523, %v3571
    %v3573 = vpop.f32.mrf.mxu0
    %v3574 = vadd.f32 %v3525, %v3573
    %3575 = vmatmul.bf16.gmra.mxu0 %v2915
    %v3576 = vpop.f32.mrf.mxu0
    %v3577 = vadd.f32 %v3528, %v3576
    %v3578 = vpop.f32.mrf.mxu0
    %v3579 = vadd.f32 %v3530, %v3578
    %3580 = vmatmul.bf16.gmra.mxu0 %v2924
    %v3581 = vpop.f32.mrf.mxu0
    %v3582 = vadd.f32 %v3533, %v3581
    %v3583 = vpop.f32.mrf.mxu0
    %v3584 = vadd.f32 %v3535, %v3583
    %3585 = vmatmul.bf16.gmra.mxu0 %v2933
    %v3586 = vpop.f32.mrf.mxu0
    %v3587 = vadd.f32 %v3538, %v3586
    %v3588 = vpop.f32.mrf.mxu0
    %v3589 = vadd.f32 %v3540, %v3588
    %3590 = vdwg.mxu0
    %3591 = vmatpush.bf16.msra.mxu0 %v3331
    %3592 = vmatpush.bf16.msra.mxu0 %v3330
    %3593 = vmatpush.bf16.msra.mxu0 %v3329
    %3594 = vmatpush.bf16.msra.mxu0 %v3328
    %3595 = vmatpush.bf16.msra.mxu0 %v3327
    %3596 = vmatpush.bf16.msra.mxu0 %v3326
    %3597 = vmatpush.bf16.msra.mxu0 %v3325
    %3598 = vmatpush.bf16.msra.mxu0 %v3324
    %3599 = vmatmul.bf16.gmra.mxu0 %v2871
    %v3600 = vpop.f32.mrf.mxu0
    %v3601 = vadd.f32 %v3552, %v3600
    %v3602 = vpop.f32.mrf.mxu0
    %v3603 = vadd.f32 %v3554, %v3602
    %3604 = vmatmul.bf16.gmra.mxu0 %v2880
    %v3605 = vpop.f32.mrf.mxu0
    %v3606 = vadd.f32 %v3557, %v3605
    %v3607 = vpop.f32.mrf.mxu0
    %v3608 = vadd.f32 %v3559, %v3607
    %3609 = vmatmul.bf16.gmra.mxu0 %v2889
    %v3610 = vpop.f32.mrf.mxu0
    %v3611 = vadd.f32 %v3562, %v3610
    %v3612 = vpop.f32.mrf.mxu0
    %v3613 = vadd.f32 %v3564, %v3612
    %3614 = vmatmul.bf16.gmra.mxu0 %v2898
    %v3615 = vpop.f32.mrf.mxu0
    %v3616 = vadd.f32 %v3567, %v3615
    %v3617 = vpop.f32.mrf.mxu0
    %v3618 = vadd.f32 %v3569, %v3617
    %3619 = vmatmul.bf16.gmra.mxu0 %v2907
    %v3620 = vpop.f32.mrf.mxu0
    %v3621 = vadd.f32 %v3572, %v3620
    %v3622 = vpop.f32.mrf.mxu0
    %v3623 = vadd.f32 %v3574, %v3622
    %3624 = vmatmul.bf16.gmra.mxu0 %v2916
    %v3625 = vpop.f32.mrf.mxu0
    %v3626 = vadd.f32 %v3577, %v3625
    %v3627 = vpop.f32.mrf.mxu0
    %v3628 = vadd.f32 %v3579, %v3627
    %3629 = vmatmul.bf16.gmra.mxu0 %v2925
    %v3630 = vpop.f32.mrf.mxu0
    %v3631 = vadd.f32 %v3582, %v3630
    %v3632 = vpop.f32.mrf.mxu0
    %v3633 = vadd.f32 %v3584, %v3632
    %3634 = vmatmul.bf16.gmra.mxu0 %v2934
    %v3635 = vpop.f32.mrf.mxu0
    %v3636 = vadd.f32 %v3587, %v3635
    %v3637 = vpop.f32.mrf.mxu0
    %v3638 = vadd.f32 %v3589, %v3637
    %3639 = vdwg.mxu0
    %3640 = vmatpush.bf16.msra.mxu0 %v3339
    %3641 = vmatpush.bf16.msra.mxu0 %v3338
    %3642 = vmatpush.bf16.msra.mxu0 %v3337
    %3643 = vmatpush.bf16.msra.mxu0 %v3336
    %3644 = vmatpush.bf16.msra.mxu0 %v3335
    %3645 = vmatpush.bf16.msra.mxu0 %v3334
    %3646 = vmatpush.bf16.msra.mxu0 %v3333
    %3647 = vmatpush.bf16.msra.mxu0 %v3332
    %3648 = vmatmul.bf16.gmra.mxu0 %v2872
    %v3649 = vpop.f32.mrf.mxu0
    %v3650 = vadd.f32 %v3601, %v3649
    %v3651 = vpop.f32.mrf.mxu0
    %v3652 = vadd.f32 %v3603, %v3651
    %3653 = vmatmul.bf16.gmra.mxu0 %v2881
    %v3654 = vpop.f32.mrf.mxu0
    %v3655 = vadd.f32 %v3606, %v3654
    %v3656 = vpop.f32.mrf.mxu0
    %v3657 = vadd.f32 %v3608, %v3656
    %3658 = vmatmul.bf16.gmra.mxu0 %v2890
    %v3659 = vpop.f32.mrf.mxu0
    %v3660 = vadd.f32 %v3611, %v3659
    %v3661 = vpop.f32.mrf.mxu0
    %v3662 = vadd.f32 %v3613, %v3661
    %3663 = vmatmul.bf16.gmra.mxu0 %v2899
    %v3664 = vpop.f32.mrf.mxu0
    %v3665 = vadd.f32 %v3616, %v3664
    %v3666 = vpop.f32.mrf.mxu0
    %v3667 = vadd.f32 %v3618, %v3666
    %3668 = vmatmul.bf16.gmra.mxu0 %v2908
    %v3669 = vpop.f32.mrf.mxu0
    %v3670 = vadd.f32 %v3621, %v3669
    %v3671 = vpop.f32.mrf.mxu0
    %v3672 = vadd.f32 %v3623, %v3671
    %3673 = vmatmul.bf16.gmra.mxu0 %v2917
    %v3674 = vpop.f32.mrf.mxu0
    %v3675 = vadd.f32 %v3626, %v3674
    %v3676 = vpop.f32.mrf.mxu0
    %v3677 = vadd.f32 %v3628, %v3676
    %3678 = vmatmul.bf16.gmra.mxu0 %v2926
    %v3679 = vpop.f32.mrf.mxu0
    %v3680 = vadd.f32 %v3631, %v3679
    %v3681 = vpop.f32.mrf.mxu0
    %v3682 = vadd.f32 %v3633, %v3681
    %3683 = vmatmul.bf16.gmra.mxu0 %v2935
    %v3684 = vpop.f32.mrf.mxu0
    %v3685 = vadd.f32 %v3636, %v3684
    %v3686 = vpop.f32.mrf.mxu0
    %v3687 = vadd.f32 %v3638, %v3686
    %3688 = vdwg.mxu0
    %3689 = vmatpush.bf16.msra.mxu0 %v3347
    %3690 = vmatpush.bf16.msra.mxu0 %v3346
    %3691 = vmatpush.bf16.msra.mxu0 %v3345
    %3692 = vmatpush.bf16.msra.mxu0 %v3344
    %3693 = vmatpush.bf16.msra.mxu0 %v3343
    %3694 = vmatpush.bf16.msra.mxu0 %v3342
    %3695 = vmatpush.bf16.msra.mxu0 %v3341
    %3696 = vmatpush.bf16.msra.mxu0 %v3340
    %3697 = vmatmul.bf16.gmra.mxu0 %v2873
    %v3698 = vpop.f32.mrf.mxu0
    %v3699 = vadd.f32 %v3650, %v3698
    %v3700 = vpop.f32.mrf.mxu0
    %v3701 = vadd.f32 %v3652, %v3700
    %3702 = vmatmul.bf16.gmra.mxu0 %v2882
    %v3703 = vpop.f32.mrf.mxu0
    %v3704 = vadd.f32 %v3655, %v3703
    %v3705 = vpop.f32.mrf.mxu0
    %v3706 = vadd.f32 %v3657, %v3705
    %3707 = vmatmul.bf16.gmra.mxu0 %v2891
    %v3708 = vpop.f32.mrf.mxu0
    %v3709 = vadd.f32 %v3660, %v3708
    %v3710 = vpop.f32.mrf.mxu0
    %v3711 = vadd.f32 %v3662, %v3710
    %3712 = vmatmul.bf16.gmra.mxu0 %v2900
    %v3713 = vpop.f32.mrf.mxu0
    %v3714 = vadd.f32 %v3665, %v3713
    %v3715 = vpop.f32.mrf.mxu0
    %v3716 = vadd.f32 %v3667, %v3715
    %3717 = vmatmul.bf16.gmra.mxu0 %v2909
    %v3718 = vpop.f32.mrf.mxu0
    %v3719 = vadd.f32 %v3670, %v3718
    %v3720 = vpop.f32.mrf.mxu0
    %v3721 = vadd.f32 %v3672, %v3720
    %3722 = vmatmul.bf16.gmra.mxu0 %v2918
    %v3723 = vpop.f32.mrf.mxu0
    %v3724 = vadd.f32 %v3675, %v3723
    %v3725 = vpop.f32.mrf.mxu0
    %v3726 = vadd.f32 %v3677, %v3725
    %3727 = vmatmul.bf16.gmra.mxu0 %v2927
    %v3728 = vpop.f32.mrf.mxu0
    %v3729 = vadd.f32 %v3680, %v3728
    %v3730 = vpop.f32.mrf.mxu0
    %v3731 = vadd.f32 %v3682, %v3730
    %3732 = vmatmul.bf16.gmra.mxu0 %v2936
    %v3733 = vpop.f32.mrf.mxu0
    %v3734 = vadd.f32 %v3685, %v3733
    %v3735 = vpop.f32.mrf.mxu0
    %v3736 = vadd.f32 %v3687, %v3735
    %3737 = vdwg.mxu0
    %3738 = vmatpush.bf16.msra.mxu0 %v3355
    %3739 = vmatpush.bf16.msra.mxu0 %v3354
    %3740 = vmatpush.bf16.msra.mxu0 %v3353
    %3741 = vmatpush.bf16.msra.mxu0 %v3352
    %3742 = vmatpush.bf16.msra.mxu0 %v3351
    %3743 = vmatpush.bf16.msra.mxu0 %v3350
    %3744 = vmatpush.bf16.msra.mxu0 %v3349
    %3745 = vmatpush.bf16.msra.mxu0 %v3348
    %3746 = vmatmul.bf16.gmra.mxu0 %v2874
    %v3747 = vpop.f32.mrf.mxu0
    %v3748 = vadd.f32 %v3699, %v3747
    %v3749 = vpop.f32.mrf.mxu0
    %v3750 = vadd.f32 %v3701, %v3749
    %3751 = vmatmul.bf16.gmra.mxu0 %v2883
    %v3752 = vpop.f32.mrf.mxu0
    %v3753 = vadd.f32 %v3704, %v3752
    %v3754 = vpop.f32.mrf.mxu0
    %v3755 = vadd.f32 %v3706, %v3754
    %3756 = vmatmul.bf16.gmra.mxu0 %v2892
    %v3757 = vpop.f32.mrf.mxu0
    %v3758 = vadd.f32 %v3709, %v3757
    %v3759 = vpop.f32.mrf.mxu0
    %v3760 = vadd.f32 %v3711, %v3759
    %3761 = vmatmul.bf16.gmra.mxu0 %v2901
    %v3762 = vpop.f32.mrf.mxu0
    %v3763 = vadd.f32 %v3714, %v3762
    %v3764 = vpop.f32.mrf.mxu0
    %v3765 = vadd.f32 %v3716, %v3764
    %3766 = vmatmul.bf16.gmra.mxu0 %v2910
    %v3767 = vpop.f32.mrf.mxu0
    %v3768 = vadd.f32 %v3719, %v3767
    %v3769 = vpop.f32.mrf.mxu0
    %v3770 = vadd.f32 %v3721, %v3769
    %3771 = vmatmul.bf16.gmra.mxu0 %v2919
    %v3772 = vpop.f32.mrf.mxu0
    %v3773 = vadd.f32 %v3724, %v3772
    %v3774 = vpop.f32.mrf.mxu0
    %v3775 = vadd.f32 %v3726, %v3774
    %3776 = vmatmul.bf16.gmra.mxu0 %v2928
    %v3777 = vpop.f32.mrf.mxu0
    %v3778 = vadd.f32 %v3729, %v3777
    %v3779 = vpop.f32.mrf.mxu0
    %v3780 = vadd.f32 %v3731, %v3779
    %3781 = vmatmul.bf16.gmra.mxu0 %v2937
    %v3782 = vpop.f32.mrf.mxu0
    %v3783 = vadd.f32 %v3734, %v3782
    %v3784 = vpop.f32.mrf.mxu0
    %v3785 = vadd.f32 %v3736, %v3784
    %3786 = vdwg.mxu0
    %3787 = vmatpush.bf16.msra.mxu0 %v3363
    %3788 = vmatpush.bf16.msra.mxu0 %v3362
    %3789 = vmatpush.bf16.msra.mxu0 %v3361
    %3790 = vmatpush.bf16.msra.mxu0 %v3360
    %3791 = vmatpush.bf16.msra.mxu0 %v3359
    %3792 = vmatpush.bf16.msra.mxu0 %v3358
    %3793 = vmatpush.bf16.msra.mxu0 %v3357
    %3794 = vmatpush.bf16.msra.mxu0 %v3356
    %3795 = vmatmul.bf16.gmra.mxu0 %v2875
    %v3796 = vpop.f32.mrf.mxu0
    %v3797 = vadd.f32 %v3748, %v3796
    %v3798 = vpop.f32.mrf.mxu0
    %v3799 = vadd.f32 %v3750, %v3798
    %3800 = vmatmul.bf16.gmra.mxu0 %v2884
    %v3801 = vpop.f32.mrf.mxu0
    %v3802 = vadd.f32 %v3753, %v3801
    %v3803 = vpop.f32.mrf.mxu0
    %v3804 = vadd.f32 %v3755, %v3803
    %3805 = vmatmul.bf16.gmra.mxu0 %v2893
    %v3806 = vpop.f32.mrf.mxu0
    %v3807 = vadd.f32 %v3758, %v3806
    %v3808 = vpop.f32.mrf.mxu0
    %v3809 = vadd.f32 %v3760, %v3808
    %3810 = vmatmul.bf16.gmra.mxu0 %v2902
    %v3811 = vpop.f32.mrf.mxu0
    %v3812 = vadd.f32 %v3763, %v3811
    %v3813 = vpop.f32.mrf.mxu0
    %v3814 = vadd.f32 %v3765, %v3813
    %3815 = vmatmul.bf16.gmra.mxu0 %v2911
    %v3816 = vpop.f32.mrf.mxu0
    %v3817 = vadd.f32 %v3768, %v3816
    %v3818 = vpop.f32.mrf.mxu0
    %v3819 = vadd.f32 %v3770, %v3818
    %3820 = vmatmul.bf16.gmra.mxu0 %v2920
    %v3821 = vpop.f32.mrf.mxu0
    %v3822 = vadd.f32 %v3773, %v3821
    %v3823 = vpop.f32.mrf.mxu0
    %v3824 = vadd.f32 %v3775, %v3823
    %3825 = vmatmul.bf16.gmra.mxu0 %v2929
    %v3826 = vpop.f32.mrf.mxu0
    %v3827 = vadd.f32 %v3778, %v3826
    %v3828 = vpop.f32.mrf.mxu0
    %v3829 = vadd.f32 %v3780, %v3828
    %3830 = vmatmul.bf16.gmra.mxu0 %v2938
    %v3831 = vpop.f32.mrf.mxu0
    %v3832 = vadd.f32 %v3783, %v3831
    %v3833 = vpop.f32.mrf.mxu0
    %v3834 = vadd.f32 %v3785, %v3833
    %3835 = vdwg.mxu0
    %3836 = vmatpush.bf16.msra.mxu0 %v3371
    %3837 = vmatpush.bf16.msra.mxu0 %v3370
    %3838 = vmatpush.bf16.msra.mxu0 %v3369
    %3839 = vmatpush.bf16.msra.mxu0 %v3368
    %3840 = vmatpush.bf16.msra.mxu0 %v3367
    %3841 = vmatpush.bf16.msra.mxu0 %v3366
    %3842 = vmatpush.bf16.msra.mxu0 %v3365
    %3843 = vmatpush.bf16.msra.mxu0 %v3364
    %3844 = vmatmul.bf16.gmra.mxu0 %v2876
    %v3845 = vpop.f32.mrf.mxu0
    %v3846 = vadd.f32 %v3797, %v3845
    %v3847 = vpop.f32.mrf.mxu0
    %v3848 = vadd.f32 %v3799, %v3847
    %3849 = vmatmul.bf16.gmra.mxu0 %v2885
    %v3850 = vpop.f32.mrf.mxu0
    %v3851 = vadd.f32 %v3802, %v3850
    %v3852 = vpop.f32.mrf.mxu0
    %v3853 = vadd.f32 %v3804, %v3852
    %3854 = vmatmul.bf16.gmra.mxu0 %v2894
    %v3855 = vpop.f32.mrf.mxu0
    %v3856 = vadd.f32 %v3807, %v3855
    %v3857 = vpop.f32.mrf.mxu0
    %v3858 = vadd.f32 %v3809, %v3857
    %3859 = vmatmul.bf16.gmra.mxu0 %v2903
    %v3860 = vpop.f32.mrf.mxu0
    %v3861 = vadd.f32 %v3812, %v3860
    %v3862 = vpop.f32.mrf.mxu0
    %v3863 = vadd.f32 %v3814, %v3862
    %3864 = vmatmul.bf16.gmra.mxu0 %v2912
    %v3865 = vpop.f32.mrf.mxu0
    %v3866 = vadd.f32 %v3817, %v3865
    %v3867 = vpop.f32.mrf.mxu0
    %v3868 = vadd.f32 %v3819, %v3867
    %3869 = vmatmul.bf16.gmra.mxu0 %v2921
    %v3870 = vpop.f32.mrf.mxu0
    %v3871 = vadd.f32 %v3822, %v3870
    %v3872 = vpop.f32.mrf.mxu0
    %v3873 = vadd.f32 %v3824, %v3872
    %3874 = vmatmul.bf16.gmra.mxu0 %v2930
    %v3875 = vpop.f32.mrf.mxu0
    %v3876 = vadd.f32 %v3827, %v3875
    %v3877 = vpop.f32.mrf.mxu0
    %v3878 = vadd.f32 %v3829, %v3877
    %3879 = vmatmul.bf16.gmra.mxu0 %v2939
    %v3880 = vpop.f32.mrf.mxu0
    %v3881 = vadd.f32 %v3832, %v3880
    %v3882 = vpop.f32.mrf.mxu0
    %v3883 = vadd.f32 %v3834, %v3882
    %3884 = vdwg.mxu0
    %v3885 = vmax.f32 %v3846, 0.0
    %v3886 = vmax.f32 %v3848, 0.0
    %v3887 = vmax.f32 %v3851, 0.0
    %v3888 = vmax.f32 %v3853, 0.0
    %v3889 = vmax.f32 %v3856, 0.0
    %v3890 = vmax.f32 %v3858, 0.0
    %v3891 = vmax.f32 %v3861, 0.0
    %v3892 = vmax.f32 %v3863, 0.0
    %v3893 = vmax.f32 %v3866, 0.0
    %v3894 = vmax.f32 %v3868, 0.0
    %v3895 = vmax.f32 %v3871, 0.0
    %v3896 = vmax.f32 %v3873, 0.0
    %v3897 = vmax.f32 %v3876, 0.0
    %v3898 = vmax.f32 %v3878, 0.0
    %v3899 = vmax.f32 %v3881, 0.0
    %v3900 = vmax.f32 %v3883, 0.0
    %v3901 = vpack.c.bf16 %v3886, %v3885
    %v3902 = vpack.c.bf16 %v3888, %v3887
    %v3903 = vpack.c.bf16 %v3890, %v3889
    %v3904 = vpack.c.bf16 %v3892, %v3891
    %v3905 = vpack.c.bf16 %v3894, %v3893
    %v3906 = vpack.c.bf16 %v3896, %v3895
    %v3907 = vpack.c.bf16 %v3898, %v3897
    %v3908 = vpack.c.bf16 %v3900, %v3899
    %s3909 = scalar_lea.vmem %s2, 16
    %v3910 = vld [vmem:[%s3909] sm:$0xf]
    %v3911 = vld [vmem:[%s3909 + $0x4] sm:$0xf]
    %v3912 = vld [vmem:[%s3909 + $0x8] sm:$0xf]
    %v3913 = vld [vmem:[%s3909 + $0xc] sm:$0xf]
    %v3918 = vunpack.c.l.b16 %v3910
    %v3919 = vunpack.c.l.b16 %v3911
    %v3920 = vunpack.c.l.b16 %v3912
    %v3921 = vunpack.c.l.b16 %v3913
    %v3922 = vpack.c.b16 %v3919, %v3918
    %v3923 = vpack.c.b16 %v3921, %v3920
    %v3927 = vsel %vm1937, %v3901, 0
    %v3930 = vsel %vm1937, %v3902, 0
    %v3933 = vsel %vm1937, %v3903, 0
    %v3936 = vsel %vm1937, %v3904, 0
    %v3939 = vsel %vm1937, %v3905, 0
    %v3942 = vsel %vm1937, %v3906, 0
    %v3945 = vsel %vm1937, %v3907, 0
    %v3948 = vsel %vm1937, %v3908, 0
    %3950 = vmatpush.bf16.msra.mxu0 0
    %3951 = vmatpush.bf16.msra.mxu0 0
    %3952 = vmatpush.bf16.msra.mxu0 0
    %3953 = vmatpush.bf16.msra.mxu0 0
    %3954 = vmatpush.bf16.msra.mxu0 0
    %3955 = vmatpush.bf16.msra.mxu0 0
    %3956 = vmatpush.bf16.msra.mxu0 %v3923
    %3957 = vmatpush.bf16.msra.mxu0 %v3922
    %3958 = vmatmul.bf16.gmra.mxu0 %v3927
    %v3959 = vpop.f32.mrf.mxu0
    %v3960 = vadd.f32 0.0, %v3959
    %v3961 = vpop.f32.mrf.mxu0
    %v3962 = vadd.f32 0.0, %v3961
    %3963 = vmatmul.bf16.gmra.mxu0 %v3930
    %v3964 = vpop.f32.mrf.mxu0
    %v3965 = vadd.f32 0.0, %v3964
    %v3966 = vpop.f32.mrf.mxu0
    %v3967 = vadd.f32 0.0, %v3966
    %3968 = vmatmul.bf16.gmra.mxu0 %v3933
    %v3969 = vpop.f32.mrf.mxu0
    %v3970 = vadd.f32 0.0, %v3969
    %v3971 = vpop.f32.mrf.mxu0
    %v3972 = vadd.f32 0.0, %v3971
    %3973 = vmatmul.bf16.gmra.mxu0 %v3936
    %v3974 = vpop.f32.mrf.mxu0
    %v3975 = vadd.f32 0.0, %v3974
    %v3976 = vpop.f32.mrf.mxu0
    %v3977 = vadd.f32 0.0, %v3976
    %3978 = vmatmul.bf16.gmra.mxu0 %v3939
    %v3979 = vpop.f32.mrf.mxu0
    %v3980 = vadd.f32 0.0, %v3979
    %v3981 = vpop.f32.mrf.mxu0
    %v3982 = vadd.f32 0.0, %v3981
    %3983 = vmatmul.bf16.gmra.mxu0 %v3942
    %v3984 = vpop.f32.mrf.mxu0
    %v3985 = vadd.f32 0.0, %v3984
    %v3986 = vpop.f32.mrf.mxu0
    %v3987 = vadd.f32 0.0, %v3986
    %3988 = vmatmul.bf16.gmra.mxu0 %v3945
    %v3989 = vpop.f32.mrf.mxu0
    %v3990 = vadd.f32 0.0, %v3989
    %v3991 = vpop.f32.mrf.mxu0
    %v3992 = vadd.f32 0.0, %v3991
    %3993 = vmatmul.bf16.gmra.mxu0 %v3948
    %v3994 = vpop.f32.mrf.mxu0
    %v3995 = vadd.f32 0.0, %v3994
    %v3996 = vpop.f32.mrf.mxu0
    %v3997 = vadd.f32 0.0, %v3996
    %3998 = vdwg.mxu0
    %v3999 = vadd.f32 %v2011, %v3960
    %v4000 = vadd.f32 %v2012, %v3962
    %v4001 = vadd.f32 %v2013, %v3965
    %v4002 = vadd.f32 %v2014, %v3967
    %v4003 = vadd.f32 %v2015, %v3970
    %v4004 = vadd.f32 %v2016, %v3972
    %v4005 = vadd.f32 %v2017, %v3975
    %v4006 = vadd.f32 %v2018, %v3977
    %v4007 = vadd.f32 %v2019, %v3980
    %v4008 = vadd.f32 %v2020, %v3982
    %v4009 = vadd.f32 %v2021, %v3985
    %v4010 = vadd.f32 %v2022, %v3987
    %v4011 = vadd.f32 %v2023, %v3990
    %v4012 = vadd.f32 %v2024, %v3992
    %v4013 = vadd.f32 %v2025, %v3995
    %v4014 = vadd.f32 %v2026, %v3997
    %v4015 = vmax.f32 %v3999, 0.0
    %v4016 = vmax.f32 %v4000, 0.0
    %v4017 = vmax.f32 %v4001, 0.0
    %v4018 = vmax.f32 %v4002, 0.0
    %v4019 = vmax.f32 %v4003, 0.0
    %v4020 = vmax.f32 %v4004, 0.0
    %v4021 = vmax.f32 %v4005, 0.0
    %v4022 = vmax.f32 %v4006, 0.0
    %v4023 = vmax.f32 %v4007, 0.0
    %v4024 = vmax.f32 %v4008, 0.0
    %v4025 = vmax.f32 %v4009, 0.0
    %v4026 = vmax.f32 %v4010, 0.0
    %v4027 = vmax.f32 %v4011, 0.0
    %v4028 = vmax.f32 %v4012, 0.0
    %v4029 = vmax.f32 %v4013, 0.0
    %v4030 = vmax.f32 %v4014, 0.0
    %4031 = vst [vmem:[#allocation3] sm:$0xff] %v4015
    %4032 = vst [vmem:[#allocation3 + $0x8] sm:$0xff] %v4016
    %4033 = vst [vmem:[#allocation3 + $0x10] sm:$0xff] %v4017
    %4034 = vst [vmem:[#allocation3 + $0x18] sm:$0xff] %v4018
    %4035 = vst [vmem:[#allocation3 + $0x20] sm:$0xff] %v4019
    %4036 = vst [vmem:[#allocation3 + $0x28] sm:$0xff] %v4020
    %4037 = vst [vmem:[#allocation3 + $0x30] sm:$0xff] %v4021
    %4038 = vst [vmem:[#allocation3 + $0x38] sm:$0xff] %v4022
    %4039 = vst [vmem:[#allocation3 + $0x40] sm:$0xff] %v4023
    %4040 = vst [vmem:[#allocation3 + $0x48] sm:$0xff] %v4024
    %4041 = vst [vmem:[#allocation3 + $0x50] sm:$0xff] %v4025
    %4042 = vst [vmem:[#allocation3 + $0x58] sm:$0xff] %v4026
    %4043 = vst [vmem:[#allocation3 + $0x60] sm:$0xff] %v4027
    %4044 = vst [vmem:[#allocation3 + $0x68] sm:$0xff] %v4028
    %4045 = vst [vmem:[#allocation3 + $0x70] sm:$0xff] %v4029
    %4046 = vst [vmem:[#allocation3 + $0x78] sm:$0xff] %v4030
    // Predicated region
    $region14: #{residual_stack.1} parent=1 // pred_check
      _
    $region15: #{residual_stack.1} parent=1 // pred_check_branch
      %4048 = sbr.rel (0) target = $region17
    $region16: #{residual_stack.1} parent=1 // pred_region
      %4050 = vsyncadd [#allocation4], 0
      %s4051 = sshll.u32 [#allocation3], 4
      %s4052 = int_to_ptr.vmem [resolvable:$true] %s4051
      %s4053 = sshll.u32 %s3, 4
      %s4054 = int_to_ptr.hbm [resolvable:$true] %s4053
      %4059 = dma.vmem_to_hbm [thread:$0]  %s4052, 2048, %s4054, [#allocation4], 128, 128, 8
    $region17: #{residual_stack.1} parent=1 // pred_fallthru
      _
    // Predicated region
    $region18: #{residual_stack.1} parent=1 // pred_check
      _
    $region19: #{residual_stack.1} parent=1 // pred_check_branch
      %4061 = sbr.rel (0) target = $region21
    $region20: #{residual_stack.1} parent=1 // pred_region
      %4063 = dma.done [#allocation4], 2048
    $region21: #{residual_stack.1} parent=1 // pred_fallthru
      _
    %4064 = vsyncpa [#allocation4], 1

</llo_original>
